<compile_context>
chip_gen: v5e
topology: v5e:2x2
jax: 0.10.0
libtpu: 0.0.40
codegen_flags: <defaults>
</compile_context>

<pallas_src>
import jax
import jax.numpy as jnp
from jax.experimental import pallas as pl
from jax.experimental.pallas import tpu as pltpu  # noqa: F401  (TPU backend)


# ---------------------------------------------------------------------------
# Pallas kernel: 2 stacked GRU layers (h0 = 0) + fused FC head
# ---------------------------------------------------------------------------
def fused_gru_fc_kernel(x_ref, w_ih1_ref, b_ih1_ref, w_hh1_ref, b_hh1_ref,
                        w_ih2_ref, b_ih2_ref, w_hh2_ref, b_hh2_ref,
                        w_fc_ref, b_fc_ref, o_ref):
    """x_ref   : (T, B, D)   input, time-major
       w_ih1   : (D, 3H)     pre-transposed weights
       w_hh1   : (H, 3H)
       w_ih2   : (H, 3H)
       w_hh2   : (H, 3H)
       b_*     : (1, 3H)
       w_fc    : (T, H, C)   fc weight laid out so w_fc[t] pairs with out[:, t, :]
       b_fc    : (1, C)
       o_ref   : (B, C)      logits
    """
    T, B, _ = x_ref.shape
    H = w_hh1_ref.shape[0]
    G = 3 * H
    C = o_ref.shape[1]

    # Loop-invariant loads / broadcasts hoisted out of the time loop.
    w_ih1 = w_ih1_ref[...]
    w_hh1 = w_hh1_ref[...]
    w_ih2 = w_ih2_ref[...]
    w_hh2 = w_hh2_ref[...]
    b_ih1 = jnp.broadcast_to(b_ih1_ref[...], (B, G))
    b_hh1 = jnp.broadcast_to(b_hh1_ref[...], (B, G))
    b_ih2 = jnp.broadcast_to(b_ih2_ref[...], (B, G))
    b_hh2 = jnp.broadcast_to(b_hh2_ref[...], (B, G))

    def gru_cell(gi, h_prev, w_hh, b_hh):
        # PyTorch nn.GRU gate order: r, z, n ; note b_hn stays inside r*(...)
        gh = jnp.dot(h_prev, w_hh, preferred_element_type=jnp.float32) + b_hh
        r = jax.nn.sigmoid(gi[:, 0:H] + gh[:, 0:H])
        z = jax.nn.sigmoid(gi[:, H:2 * H] + gh[:, H:2 * H])
        n = jnp.tanh(gi[:, 2 * H:3 * H] + r * gh[:, 2 * H:3 * H])
        return (1.0 - z) * n + z * h_prev

    def step(t, carry):
        h1, h2, acc = carry
        # Layer 1: input projection (carry-independent, overlappable) + cell.
        gi1 = jnp.dot(x_ref[t], w_ih1, preferred_element_type=jnp.float32) + b_ih1
        h1 = gru_cell(gi1, h1, w_hh1, b_hh1)
        # Layer 2: its input projection depends on h1_t of this very step.
        gi2 = jnp.dot(h1, w_ih2, preferred_element_type=jnp.float32) + b_ih2
        h2 = gru_cell(gi2, h2, w_hh2, b_hh2)
        # Fused FC head: logits += out[:, t, :] @ W_fc[t]  (off the serial path).
        acc = acc + jnp.dot(h2, w_fc_ref[t], preferred_element_type=jnp.float32)
        return h1, h2, acc

    init = (jnp.zeros((B, H), jnp.float32),                       # h1_0 = 0
            jnp.zeros((B, H), jnp.float32),                       # h2_0 = 0
            jnp.broadcast_to(b_fc_ref[...], (B, C)).astype(jnp.float32))
    _, _, logits = jax.lax.fori_loop(0, T, step, init, unroll=True)
    o_ref[...] = logits.astype(o_ref.dtype)


# ---------------------------------------------------------------------------
# Wrapper
# ---------------------------------------------------------------------------
def _full_spec(shape):
    zeros = (0,) * len(shape)
    return pl.BlockSpec(shape, lambda z=zeros: z)


@jax.jit
def gru_model_forward(x_btd, params):
    """x_btd: (B, T, input_size)  ->  logits (B, num_classes)."""
    B, T, _ = x_btd.shape
    l1, l2 = params["gru"]                        # spec module has num_layers=2
    H = l1["w_hh"].shape[1]
    C = params["fc_w"].shape[0]

    # Time-major input: kernel indexes the leading dim per step.
    x_tbd = jnp.transpose(x_btd, (1, 0, 2))       # (T, B, D)

    # One-time weight pre-transposes (keeps all transposes off the recurrence).
    w_ih1 = l1["w_ih"].T                          # (D, 3H)
    w_hh1 = l1["w_hh"].T                          # (H, 3H)
    w_ih2 = l2["w_ih"].T                          # (H, 3H)
    w_hh2 = l2["w_hh"].T                          # (H, 3H)
    w_fc3 = params["fc_w"].T.reshape(T, H, C)     # (T, H, C)

    operands = (x_tbd,
                w_ih1, l1["b_ih"], w_hh1, l1["b_hh"],
                w_ih2, l2["b_ih"], w_hh2, l2["b_hh"],
                w_fc3, params["fc_b"])

    return pl.pallas_call(
        fused_gru_fc_kernel,
        out_shape=jax.ShapeDtypeStruct((B, C), jnp.float32),
        in_specs=[_full_spec(op.shape) for op in operands],
        out_specs=_full_spec((B, C)),
    )(*operands)


# ---------------------------------------------------------------------------
# Pure-JAX reference (mirrors PyTorch nn.GRU + nn.Linear forward)
# ---------------------------------------------------------------------------
def gru_ref(x_btd, params):
    h = x_btd
    B = x_btd.shape[0]
    for layer in params["gru"]:
        H = layer["w_hh"].shape[1]
        h_t = jnp.zeros((B, H), jnp.float32)
        outs = []
        for t in range(h.shape[1]):
            gi = h[:, t, :] @ layer["w_ih"].T + layer["b_ih"]
            gh = h_t @ layer["w_hh"].T + layer["b_hh"]
            r = jax.nn.sigmoid(gi[:, :H] + gh[:, :H])
            z = jax.nn.sigmoid(gi[:, H:2 * H] + gh[:, H:2 * H])
            n = jnp.tanh(gi[:, 2 * H:] + r * gh[:, 2 * H:])
            h_t = (1.0 - z) * n + z * h_t
            outs.append(h_t)
        h = jnp.stack(outs, axis=1)
    flat = h.reshape(B, -1)
    return flat @ params["fc_w"].T + params["fc_b"]


# ---------------------------------------------------------------------------
# Main
# ---------------------------------------------------------------------------
if __name__ == "__main__":
    # Small, forward-consistent config (real module: 28/256/2/10/T=28).
    # H=128 keeps gate slices 128-lane aligned; B=8 fills the sublane dim.
    batch = 8
    seq_len = 8
    input_size = 28
    hidden_size = 128
    num_layers = 2
    num_classes = 10

    key = jax.random.PRNGKey(0)
    keys = jax.random.split(key, 4 * num_layers + 3)

    def uni(k, shape, bound):
        return jax.random.uniform(k, shape, jnp.float32, -bound, bound)

    bound = 1.0 / jnp.sqrt(hidden_size)
    gru_params = []
    ki = 0
    for layer in range(num_layers):
        d_in = input_size if layer == 0 else hidden_size
        gru_params.append(dict(
            w_ih=uni(keys[ki + 0], (3 * hidden_size, d_in), bound),
            w_hh=uni(keys[ki + 1], (3 * hidden_size, hidden_size), bound),
            b_ih=uni(keys[ki + 2], (1, 3 * hidden_size), bound),
            b_hh=uni(keys[ki + 3], (1, 3 * hidden_size), bound),
        ))
        ki += 4

    fc_in = hidden_size * seq_len
    fc_bound = 1.0 / jnp.sqrt(fc_in)
    params = dict(
        gru=gru_params,
        fc_w=uni(keys[ki + 0], (num_classes, fc_in), fc_bound),
        fc_b=uni(keys[ki + 1], (1, num_classes), fc_bound),
    )

    x = jax.random.normal(keys[ki + 2], (batch, seq_len, input_size),
                          jnp.float32)

    logits = jax.block_until_ready(gru_model_forward(x, params))
    ref = gru_ref(x, params)

    assert logits.shape == (batch, num_classes)
    assert jnp.allclose(logits, ref, rtol=2e-3, atol=2e-3), (
        "mismatch vs reference")
    print("KERNEL_OK")
</pallas_src>

<mosaic_0001>
module attributes {stable_mosaic.version = 11 : i64} {
  func.func @fused_gru_fc_kernel(%arg0: memref<8x8x28xf32, #tpu.memory_space<vmem>>, %arg1: memref<28x384xf32, #tpu.memory_space<vmem>>, %arg2: memref<1x384xf32, #tpu.memory_space<vmem>>, %arg3: memref<128x384xf32, #tpu.memory_space<vmem>>, %arg4: memref<1x384xf32, #tpu.memory_space<vmem>>, %arg5: memref<128x384xf32, #tpu.memory_space<vmem>>, %arg6: memref<1x384xf32, #tpu.memory_space<vmem>>, %arg7: memref<128x384xf32, #tpu.memory_space<vmem>>, %arg8: memref<1x384xf32, #tpu.memory_space<vmem>>, %arg9: memref<8x128x10xf32, #tpu.memory_space<vmem>>, %arg10: memref<1x10xf32, #tpu.memory_space<vmem>>, %arg11: memref<8x10xf32, #tpu.memory_space<vmem>>) attributes {dimension_semantics = [], scalar_prefetch = 0 : i64, scratch_operands = 0 : i64, tpu.core_type = #tpu.core_type<tc>} {
    %c0 = arith.constant 0 : index
    %c0_0 = arith.constant 0 : index
    %0 = vector.load %arg1[%c0, %c0_0] : memref<28x384xf32, #tpu.memory_space<vmem>>, vector<28x384xf32>
    %c0_1 = arith.constant 0 : index
    %c0_2 = arith.constant 0 : index
    %1 = vector.load %arg3[%c0_1, %c0_2] : memref<128x384xf32, #tpu.memory_space<vmem>>, vector<128x384xf32>
    %c0_3 = arith.constant 0 : index
    %c0_4 = arith.constant 0 : index
    %2 = vector.load %arg5[%c0_3, %c0_4] : memref<128x384xf32, #tpu.memory_space<vmem>>, vector<128x384xf32>
    %c0_5 = arith.constant 0 : index
    %c0_6 = arith.constant 0 : index
    %3 = vector.load %arg7[%c0_5, %c0_6] : memref<128x384xf32, #tpu.memory_space<vmem>>, vector<128x384xf32>
    %c0_7 = arith.constant 0 : index
    %c0_8 = arith.constant 0 : index
    %4 = vector.load %arg2[%c0_7, %c0_8] : memref<1x384xf32, #tpu.memory_space<vmem>>, vector<1x384xf32>
    %5 = vector.shape_cast %4 : vector<1x384xf32> to vector<1x384xf32>
    %6 = vector.broadcast %5 : vector<1x384xf32> to vector<8x384xf32>
    %c0_9 = arith.constant 0 : index
    %c0_10 = arith.constant 0 : index
    %7 = vector.load %arg4[%c0_9, %c0_10] : memref<1x384xf32, #tpu.memory_space<vmem>>, vector<1x384xf32>
    %8 = vector.shape_cast %7 : vector<1x384xf32> to vector<1x384xf32>
    %9 = vector.broadcast %8 : vector<1x384xf32> to vector<8x384xf32>
    %c0_11 = arith.constant 0 : index
    %c0_12 = arith.constant 0 : index
    %10 = vector.load %arg6[%c0_11, %c0_12] : memref<1x384xf32, #tpu.memory_space<vmem>>, vector<1x384xf32>
    %11 = vector.shape_cast %10 : vector<1x384xf32> to vector<1x384xf32>
    %12 = vector.broadcast %11 : vector<1x384xf32> to vector<8x384xf32>
    %c0_13 = arith.constant 0 : index
    %c0_14 = arith.constant 0 : index
    %13 = vector.load %arg8[%c0_13, %c0_14] : memref<1x384xf32, #tpu.memory_space<vmem>>, vector<1x384xf32>
    %14 = vector.shape_cast %13 : vector<1x384xf32> to vector<1x384xf32>
    %15 = vector.broadcast %14 : vector<1x384xf32> to vector<8x384xf32>
    %cst = arith.constant 0.000000e+00 : f32
    %16 = vector.broadcast %cst : f32 to vector<8x128xf32>
    %cst_15 = arith.constant 0.000000e+00 : f32
    %17 = vector.broadcast %cst_15 : f32 to vector<8x128xf32>
    %c0_16 = arith.constant 0 : index
    %c0_17 = arith.constant 0 : index
    %18 = vector.load %arg10[%c0_16, %c0_17] : memref<1x10xf32, #tpu.memory_space<vmem>>, vector<1x10xf32>
    %19 = vector.shape_cast %18 : vector<1x10xf32> to vector<1x10xf32>
    %20 = vector.broadcast %19 : vector<1x10xf32> to vector<8x10xf32>
    %c0_i32 = arith.constant 0 : i32
    %21 = arith.index_cast %c0_i32 : i32 to index
    %c0_18 = arith.constant 0 : index
    %c0_19 = arith.constant 0 : index
    %22 = vector.load %arg0[%21, %c0_18, %c0_19] : memref<8x8x28xf32, #tpu.memory_space<vmem>>, vector<1x8x28xf32>
    %23 = vector.shape_cast %22 : vector<1x8x28xf32> to vector<8x28xf32>
    %cst_20 = arith.constant dense<0.000000e+00> : vector<8x384xf32>
    %24 = tpu.matmul %23, %0, %cst_20 {dimension_numbers = #tpu.dot_dimension_numbers<[1], [0], [0], [1], [0, 0, 1, 1], [], []>} : vector<8x28xf32>, vector<28x384xf32>, vector<8x384xf32> -> vector<8x384xf32>
    %25 = arith.addf %24, %6 : vector<8x384xf32>
    %cst_21 = arith.constant dense<0.000000e+00> : vector<8x384xf32>
    %26 = tpu.matmul %16, %1, %cst_21 {dimension_numbers = #tpu.dot_dimension_numbers<[1], [0], [0], [1], [0, 0, 1, 1], [], []>} : vector<8x128xf32>, vector<128x384xf32>, vector<8x384xf32> -> vector<8x384xf32>
    %27 = arith.addf %26, %9 : vector<8x384xf32>
    %28 = vector.extract_strided_slice %25 {offsets = [0, 0], sizes = [8, 128], strides = [1, 1]} : vector<8x384xf32> to vector<8x128xf32>
    %29 = vector.extract_strided_slice %27 {offsets = [0, 0], sizes = [8, 128], strides = [1, 1]} : vector<8x384xf32> to vector<8x128xf32>
    %30 = arith.addf %28, %29 : vector<8x128xf32>
    %31 = arith.negf %30 : vector<8x128xf32>
    %32 = math.exp %31 : vector<8x128xf32>
    %cst_22 = arith.constant 1.000000e+00 : f32
    %33 = vector.broadcast %cst_22 : f32 to vector<8x128xf32>
    %34 = arith.addf %33, %32 : vector<8x128xf32>
    %35 = arith.divf %33, %34 : vector<8x128xf32>
    %36 = vector.extract_strided_slice %25 {offsets = [0, 128], sizes = [8, 128], strides = [1, 1]} : vector<8x384xf32> to vector<8x128xf32>
    %37 = vector.extract_strided_slice %27 {offsets = [0, 128], sizes = [8, 128], strides = [1, 1]} : vector<8x384xf32> to vector<8x128xf32>
    %38 = arith.addf %36, %37 : vector<8x128xf32>
    %39 = arith.negf %38 : vector<8x128xf32>
    %40 = math.exp %39 : vector<8x128xf32>
    %cst_23 = arith.constant 1.000000e+00 : f32
    %41 = vector.broadcast %cst_23 : f32 to vector<8x128xf32>
    %42 = arith.addf %41, %40 : vector<8x128xf32>
    %43 = arith.divf %41, %42 : vector<8x128xf32>
    %44 = vector.extract_strided_slice %25 {offsets = [0, 256], sizes = [8, 128], strides = [1, 1]} : vector<8x384xf32> to vector<8x128xf32>
    %45 = vector.extract_strided_slice %27 {offsets = [0, 256], sizes = [8, 128], strides = [1, 1]} : vector<8x384xf32> to vector<8x128xf32>
    %46 = arith.mulf %35, %45 : vector<8x128xf32>
    %47 = arith.addf %44, %46 : vector<8x128xf32>
    %48 = math.tanh %47 : vector<8x128xf32>
    %cst_24 = arith.constant 1.000000e+00 : f32
    %49 = vector.broadcast %cst_24 : f32 to vector<8x128xf32>
    %50 = arith.subf %49, %43 : vector<8x128xf32>
    %51 = arith.mulf %50, %48 : vector<8x128xf32>
    %52 = arith.mulf %43, %16 : vector<8x128xf32>
    %53 = arith.addf %51, %52 : vector<8x128xf32>
    %cst_25 = arith.constant dense<0.000000e+00> : vector<8x384xf32>
    %54 = tpu.matmul %53, %2, %cst_25 {dimension_numbers = #tpu.dot_dimension_numbers<[1], [0], [0], [1], [0, 0, 1, 1], [], []>} : vector<8x128xf32>, vector<128x384xf32>, vector<8x384xf32> -> vector<8x384xf32>
    %55 = arith.addf %54, %12 : vector<8x384xf32>
    %cst_26 = arith.constant dense<0.000000e+00> : vector<8x384xf32>
    %56 = tpu.matmul %17, %3, %cst_26 {dimension_numbers = #tpu.dot_dimension_numbers<[1], [0], [0], [1], [0, 0, 1, 1], [], []>} : vector<8x128xf32>, vector<128x384xf32>, vector<8x384xf32> -> vector<8x384xf32>
    %57 = arith.addf %56, %15 : vector<8x384xf32>
    %58 = vector.extract_strided_slice %55 {offsets = [0, 0], sizes = [8, 128], strides = [1, 1]} : vector<8x384xf32> to vector<8x128xf32>
    %59 = vector.extract_strided_slice %57 {offsets = [0, 0], sizes = [8, 128], strides = [1, 1]} : vector<8x384xf32> to vector<8x128xf32>
    %60 = arith.addf %58, %59 : vector<8x128xf32>
    %61 = arith.negf %60 : vector<8x128xf32>
    %62 = math.exp %61 : vector<8x128xf32>
    %cst_27 = arith.constant 1.000000e+00 : f32
    %63 = vector.broadcast %cst_27 : f32 to vector<8x128xf32>
    %64 = arith.addf %63, %62 : vector<8x128xf32>
    %65 = arith.divf %63, %64 : vector<8x128xf32>
    %66 = vector.extract_strided_slice %55 {offsets = [0, 128], sizes = [8, 128], strides = [1, 1]} : vector<8x384xf32> to vector<8x128xf32>
    %67 = vector.extract_strided_slice %57 {offsets = [0, 128], sizes = [8, 128], strides = [1, 1]} : vector<8x384xf32> to vector<8x128xf32>
    %68 = arith.addf %66, %67 : vector<8x128xf32>
    %69 = arith.negf %68 : vector<8x128xf32>
    %70 = math.exp %69 : vector<8x128xf32>
    %cst_28 = arith.constant 1.000000e+00 : f32
    %71 = vector.broadcast %cst_28 : f32 to vector<8x128xf32>
    %72 = arith.addf %71, %70 : vector<8x128xf32>
    %73 = arith.divf %71, %72 : vector<8x128xf32>
    %74 = vector.extract_strided_slice %55 {offsets = [0, 256], sizes = [8, 128], strides = [1, 1]} : vector<8x384xf32> to vector<8x128xf32>
    %75 = vector.extract_strided_slice %57 {offsets = [0, 256], sizes = [8, 128], strides = [1, 1]} : vector<8x384xf32> to vector<8x128xf32>
    %76 = arith.mulf %65, %75 : vector<8x128xf32>
    %77 = arith.addf %74, %76 : vector<8x128xf32>
    %78 = math.tanh %77 : vector<8x128xf32>
    %cst_29 = arith.constant 1.000000e+00 : f32
    %79 = vector.broadcast %cst_29 : f32 to vector<8x128xf32>
    %80 = arith.subf %79, %73 : vector<8x128xf32>
    %81 = arith.mulf %80, %78 : vector<8x128xf32>
    %82 = arith.mulf %73, %17 : vector<8x128xf32>
    %83 = arith.addf %81, %82 : vector<8x128xf32>
    %84 = arith.index_cast %c0_i32 : i32 to index
    %c0_30 = arith.constant 0 : index
    %c0_31 = arith.constant 0 : index
    %85 = vector.load %arg9[%84, %c0_30, %c0_31] : memref<8x128x10xf32, #tpu.memory_space<vmem>>, vector<1x128x10xf32>
    %86 = vector.shape_cast %85 : vector<1x128x10xf32> to vector<128x10xf32>
    %cst_32 = arith.constant dense<0.000000e+00> : vector<8x10xf32>
    %87 = tpu.matmul %83, %86, %cst_32 {dimension_numbers = #tpu.dot_dimension_numbers<[1], [0], [0], [1], [0, 0, 1, 1], [], []>} : vector<8x128xf32>, vector<128x10xf32>, vector<8x10xf32> -> vector<8x10xf32>
    %88 = arith.addf %20, %87 : vector<8x10xf32>
    %c1_i32 = arith.constant 1 : i32
    %89 = arith.index_cast %c1_i32 : i32 to index
    %c0_33 = arith.constant 0 : index
    %c0_34 = arith.constant 0 : index
    %90 = vector.load %arg0[%89, %c0_33, %c0_34] : memref<8x8x28xf32, #tpu.memory_space<vmem>>, vector<1x8x28xf32>
    %91 = vector.shape_cast %90 : vector<1x8x28xf32> to vector<8x28xf32>
    %cst_35 = arith.constant dense<0.000000e+00> : vector<8x384xf32>
    %92 = tpu.matmul %91, %0, %cst_35 {dimension_numbers = #tpu.dot_dimension_numbers<[1], [0], [0], [1], [0, 0, 1, 1], [], []>} : vector<8x28xf32>, vector<28x384xf32>, vector<8x384xf32> -> vector<8x384xf32>
    %93 = arith.addf %92, %6 : vector<8x384xf32>
    %cst_36 = arith.constant dense<0.000000e+00> : vector<8x384xf32>
    %94 = tpu.matmul %53, %1, %cst_36 {dimension_numbers = #tpu.dot_dimension_numbers<[1], [0], [0], [1], [0, 0, 1, 1], [], []>} : vector<8x128xf32>, vector<128x384xf32>, vector<8x384xf32> -> vector<8x384xf32>
    %95 = arith.addf %94, %9 : vector<8x384xf32>
    %96 = vector.extract_strided_slice %93 {offsets = [0, 0], sizes = [8, 128], strides = [1, 1]} : vector<8x384xf32> to vector<8x128xf32>
    %97 = vector.extract_strided_slice %95 {offsets = [0, 0], sizes = [8, 128], strides = [1, 1]} : vector<8x384xf32> to vector<8x128xf32>
    %98 = arith.addf %96, %97 : vector<8x128xf32>
    %99 = arith.negf %98 : vector<8x128xf32>
    %100 = math.exp %99 : vector<8x128xf32>
    %cst_37 = arith.constant 1.000000e+00 : f32
    %101 = vector.broadcast %cst_37 : f32 to vector<8x128xf32>
    %102 = arith.addf %101, %100 : vector<8x128xf32>
    %103 = arith.divf %101, %102 : vector<8x128xf32>
    %104 = vector.extract_strided_slice %93 {offsets = [0, 128], sizes = [8, 128], strides = [1, 1]} : vector<8x384xf32> to vector<8x128xf32>
    %105 = vector.extract_strided_slice %95 {offsets = [0, 128], sizes = [8, 128], strides = [1, 1]} : vector<8x384xf32> to vector<8x128xf32>
    %106 = arith.addf %104, %105 : vector<8x128xf32>
    %107 = arith.negf %106 : vector<8x128xf32>
    %108 = math.exp %107 : vector<8x128xf32>
    %cst_38 = arith.constant 1.000000e+00 : f32
    %109 = vector.broadcast %cst_38 : f32 to vector<8x128xf32>
    %110 = arith.addf %109, %108 : vector<8x128xf32>
    %111 = arith.divf %109, %110 : vector<8x128xf32>
    %112 = vector.extract_strided_slice %93 {offsets = [0, 256], sizes = [8, 128], strides = [1, 1]} : vector<8x384xf32> to vector<8x128xf32>
    %113 = vector.extract_strided_slice %95 {offsets = [0, 256], sizes = [8, 128], strides = [1, 1]} : vector<8x384xf32> to vector<8x128xf32>
    %114 = arith.mulf %103, %113 : vector<8x128xf32>
    %115 = arith.addf %112, %114 : vector<8x128xf32>
    %116 = math.tanh %115 : vector<8x128xf32>
    %cst_39 = arith.constant 1.000000e+00 : f32
    %117 = vector.broadcast %cst_39 : f32 to vector<8x128xf32>
    %118 = arith.subf %117, %111 : vector<8x128xf32>
    %119 = arith.mulf %118, %116 : vector<8x128xf32>
    %120 = arith.mulf %111, %53 : vector<8x128xf32>
    %121 = arith.addf %119, %120 : vector<8x128xf32>
    %cst_40 = arith.constant dense<0.000000e+00> : vector<8x384xf32>
    %122 = tpu.matmul %121, %2, %cst_40 {dimension_numbers = #tpu.dot_dimension_numbers<[1], [0], [0], [1], [0, 0, 1, 1], [], []>} : vector<8x128xf32>, vector<128x384xf32>, vector<8x384xf32> -> vector<8x384xf32>
    %123 = arith.addf %122, %12 : vector<8x384xf32>
    %cst_41 = arith.constant dense<0.000000e+00> : vector<8x384xf32>
    %124 = tpu.matmul %83, %3, %cst_41 {dimension_numbers = #tpu.dot_dimension_numbers<[1], [0], [0], [1], [0, 0, 1, 1], [], []>} : vector<8x128xf32>, vector<128x384xf32>, vector<8x384xf32> -> vector<8x384xf32>
    %125 = arith.addf %124, %15 : vector<8x384xf32>
    %126 = vector.extract_strided_slice %123 {offsets = [0, 0], sizes = [8, 128], strides = [1, 1]} : vector<8x384xf32> to vector<8x128xf32>
    %127 = vector.extract_strided_slice %125 {offsets = [0, 0], sizes = [8, 128], strides = [1, 1]} : vector<8x384xf32> to vector<8x128xf32>
    %128 = arith.addf %126, %127 : vector<8x128xf32>
    %129 = arith.negf %128 : vector<8x128xf32>
    %130 = math.exp %129 : vector<8x128xf32>
    %cst_42 = arith.constant 1.000000e+00 : f32
    %131 = vector.broadcast %cst_42 : f32 to vector<8x128xf32>
    %132 = arith.addf %131, %130 : vector<8x128xf32>
    %133 = arith.divf %131, %132 : vector<8x128xf32>
    %134 = vector.extract_strided_slice %123 {offsets = [0, 128], sizes = [8, 128], strides = [1, 1]} : vector<8x384xf32> to vector<8x128xf32>
    %135 = vector.extract_strided_slice %125 {offsets = [0, 128], sizes = [8, 128], strides = [1, 1]} : vector<8x384xf32> to vector<8x128xf32>
    %136 = arith.addf %134, %135 : vector<8x128xf32>
    %137 = arith.negf %136 : vector<8x128xf32>
    %138 = math.exp %137 : vector<8x128xf32>
    %cst_43 = arith.constant 1.000000e+00 : f32
    %139 = vector.broadcast %cst_43 : f32 to vector<8x128xf32>
    %140 = arith.addf %139, %138 : vector<8x128xf32>
    %141 = arith.divf %139, %140 : vector<8x128xf32>
    %142 = vector.extract_strided_slice %123 {offsets = [0, 256], sizes = [8, 128], strides = [1, 1]} : vector<8x384xf32> to vector<8x128xf32>
    %143 = vector.extract_strided_slice %125 {offsets = [0, 256], sizes = [8, 128], strides = [1, 1]} : vector<8x384xf32> to vector<8x128xf32>
    %144 = arith.mulf %133, %143 : vector<8x128xf32>
    %145 = arith.addf %142, %144 : vector<8x128xf32>
    %146 = math.tanh %145 : vector<8x128xf32>
    %cst_44 = arith.constant 1.000000e+00 : f32
    %147 = vector.broadcast %cst_44 : f32 to vector<8x128xf32>
    %148 = arith.subf %147, %141 : vector<8x128xf32>
    %149 = arith.mulf %148, %146 : vector<8x128xf32>
    %150 = arith.mulf %141, %83 : vector<8x128xf32>
    %151 = arith.addf %149, %150 : vector<8x128xf32>
    %152 = arith.index_cast %c1_i32 : i32 to index
    %c0_45 = arith.constant 0 : index
    %c0_46 = arith.constant 0 : index
    %153 = vector.load %arg9[%152, %c0_45, %c0_46] : memref<8x128x10xf32, #tpu.memory_space<vmem>>, vector<1x128x10xf32>
    %154 = vector.shape_cast %153 : vector<1x128x10xf32> to vector<128x10xf32>
    %cst_47 = arith.constant dense<0.000000e+00> : vector<8x10xf32>
    %155 = tpu.matmul %151, %154, %cst_47 {dimension_numbers = #tpu.dot_dimension_numbers<[1], [0], [0], [1], [0, 0, 1, 1], [], []>} : vector<8x128xf32>, vector<128x10xf32>, vector<8x10xf32> -> vector<8x10xf32>
    %156 = arith.addf %88, %155 : vector<8x10xf32>
    %c2_i32 = arith.constant 2 : i32
    %157 = arith.index_cast %c2_i32 : i32 to index
    %c0_48 = arith.constant 0 : index
    %c0_49 = arith.constant 0 : index
    %158 = vector.load %arg0[%157, %c0_48, %c0_49] : memref<8x8x28xf32, #tpu.memory_space<vmem>>, vector<1x8x28xf32>
    %159 = vector.shape_cast %158 : vector<1x8x28xf32> to vector<8x28xf32>
    %cst_50 = arith.constant dense<0.000000e+00> : vector<8x384xf32>
    %160 = tpu.matmul %159, %0, %cst_50 {dimension_numbers = #tpu.dot_dimension_numbers<[1], [0], [0], [1], [0, 0, 1, 1], [], []>} : vector<8x28xf32>, vector<28x384xf32>, vector<8x384xf32> -> vector<8x384xf32>
    %161 = arith.addf %160, %6 : vector<8x384xf32>
    %cst_51 = arith.constant dense<0.000000e+00> : vector<8x384xf32>
    %162 = tpu.matmul %121, %1, %cst_51 {dimension_numbers = #tpu.dot_dimension_numbers<[1], [0], [0], [1], [0, 0, 1, 1], [], []>} : vector<8x128xf32>, vector<128x384xf32>, vector<8x384xf32> -> vector<8x384xf32>
    %163 = arith.addf %162, %9 : vector<8x384xf32>
    %164 = vector.extract_strided_slice %161 {offsets = [0, 0], sizes = [8, 128], strides = [1, 1]} : vector<8x384xf32> to vector<8x128xf32>
    %165 = vector.extract_strided_slice %163 {offsets = [0, 0], sizes = [8, 128], strides = [1, 1]} : vector<8x384xf32> to vector<8x128xf32>
    %166 = arith.addf %164, %165 : vector<8x128xf32>
    %167 = arith.negf %166 : vector<8x128xf32>
    %168 = math.exp %167 : vector<8x128xf32>
    %cst_52 = arith.constant 1.000000e+00 : f32
    %169 = vector.broadcast %cst_52 : f32 to vector<8x128xf32>
    %170 = arith.addf %169, %168 : vector<8x128xf32>
    %171 = arith.divf %169, %170 : vector<8x128xf32>
    %172 = vector.extract_strided_slice %161 {offsets = [0, 128], sizes = [8, 128], strides = [1, 1]} : vector<8x384xf32> to vector<8x128xf32>
    %173 = vector.extract_strided_slice %163 {offsets = [0, 128], sizes = [8, 128], strides = [1, 1]} : vector<8x384xf32> to vector<8x128xf32>
    %174 = arith.addf %172, %173 : vector<8x128xf32>
    %175 = arith.negf %174 : vector<8x128xf32>
    %176 = math.exp %175 : vector<8x128xf32>
    %cst_53 = arith.constant 1.000000e+00 : f32
    %177 = vector.broadcast %cst_53 : f32 to vector<8x128xf32>
    %178 = arith.addf %177, %176 : vector<8x128xf32>
    %179 = arith.divf %177, %178 : vector<8x128xf32>
    %180 = vector.extract_strided_slice %161 {offsets = [0, 256], sizes = [8, 128], strides = [1, 1]} : vector<8x384xf32> to vector<8x128xf32>
    %181 = vector.extract_strided_slice %163 {offsets = [0, 256], sizes = [8, 128], strides = [1, 1]} : vector<8x384xf32> to vector<8x128xf32>
    %182 = arith.mulf %171, %181 : vector<8x128xf32>
    %183 = arith.addf %180, %182 : vector<8x128xf32>
    %184 = math.tanh %183 : vector<8x128xf32>
    %cst_54 = arith.constant 1.000000e+00 : f32
    %185 = vector.broadcast %cst_54 : f32 to vector<8x128xf32>
    %186 = arith.subf %185, %179 : vector<8x128xf32>
    %187 = arith.mulf %186, %184 : vector<8x128xf32>
    %188 = arith.mulf %179, %121 : vector<8x128xf32>
    %189 = arith.addf %187, %188 : vector<8x128xf32>
    %cst_55 = arith.constant dense<0.000000e+00> : vector<8x384xf32>
    %190 = tpu.matmul %189, %2, %cst_55 {dimension_numbers = #tpu.dot_dimension_numbers<[1], [0], [0], [1], [0, 0, 1, 1], [], []>} : vector<8x128xf32>, vector<128x384xf32>, vector<8x384xf32> -> vector<8x384xf32>
    %191 = arith.addf %190, %12 : vector<8x384xf32>
    %cst_56 = arith.constant dense<0.000000e+00> : vector<8x384xf32>
    %192 = tpu.matmul %151, %3, %cst_56 {dimension_numbers = #tpu.dot_dimension_numbers<[1], [0], [0], [1], [0, 0, 1, 1], [], []>} : vector<8x128xf32>, vector<128x384xf32>, vector<8x384xf32> -> vector<8x384xf32>
    %193 = arith.addf %192, %15 : vector<8x384xf32>
    %194 = vector.extract_strided_slice %191 {offsets = [0, 0], sizes = [8, 128], strides = [1, 1]} : vector<8x384xf32> to vector<8x128xf32>
    %195 = vector.extract_strided_slice %193 {offsets = [0, 0], sizes = [8, 128], strides = [1, 1]} : vector<8x384xf32> to vector<8x128xf32>
    %196 = arith.addf %194, %195 : vector<8x128xf32>
    %197 = arith.negf %196 : vector<8x128xf32>
    %198 = math.exp %197 : vector<8x128xf32>
    %cst_57 = arith.constant 1.000000e+00 : f32
    %199 = vector.broadcast %cst_57 : f32 to vector<8x128xf32>
    %200 = arith.addf %199, %198 : vector<8x128xf32>
    %201 = arith.divf %199, %200 : vector<8x128xf32>
    %202 = vector.extract_strided_slice %191 {offsets = [0, 128], sizes = [8, 128], strides = [1, 1]} : vector<8x384xf32> to vector<8x128xf32>
    %203 = vector.extract_strided_slice %193 {offsets = [0, 128], sizes = [8, 128], strides = [1, 1]} : vector<8x384xf32> to vector<8x128xf32>
    %204 = arith.addf %202, %203 : vector<8x128xf32>
    %205 = arith.negf %204 : vector<8x128xf32>
    %206 = math.exp %205 : vector<8x128xf32>
    %cst_58 = arith.constant 1.000000e+00 : f32
    %207 = vector.broadcast %cst_58 : f32 to vector<8x128xf32>
    %208 = arith.addf %207, %206 : vector<8x128xf32>
    %209 = arith.divf %207, %208 : vector<8x128xf32>
    %210 = vector.extract_strided_slice %191 {offsets = [0, 256], sizes = [8, 128], strides = [1, 1]} : vector<8x384xf32> to vector<8x128xf32>
    %211 = vector.extract_strided_slice %193 {offsets = [0, 256], sizes = [8, 128], strides = [1, 1]} : vector<8x384xf32> to vector<8x128xf32>
    %212 = arith.mulf %201, %211 : vector<8x128xf32>
    %213 = arith.addf %210, %212 : vector<8x128xf32>
    %214 = math.tanh %213 : vector<8x128xf32>
    %cst_59 = arith.constant 1.000000e+00 : f32
    %215 = vector.broadcast %cst_59 : f32 to vector<8x128xf32>
    %216 = arith.subf %215, %209 : vector<8x128xf32>
    %217 = arith.mulf %216, %214 : vector<8x128xf32>
    %218 = arith.mulf %209, %151 : vector<8x128xf32>
    %219 = arith.addf %217, %218 : vector<8x128xf32>
    %220 = arith.index_cast %c2_i32 : i32 to index
    %c0_60 = arith.constant 0 : index
    %c0_61 = arith.constant 0 : index
    %221 = vector.load %arg9[%220, %c0_60, %c0_61] : memref<8x128x10xf32, #tpu.memory_space<vmem>>, vector<1x128x10xf32>
    %222 = vector.shape_cast %221 : vector<1x128x10xf32> to vector<128x10xf32>
    %cst_62 = arith.constant dense<0.000000e+00> : vector<8x10xf32>
    %223 = tpu.matmul %219, %222, %cst_62 {dimension_numbers = #tpu.dot_dimension_numbers<[1], [0], [0], [1], [0, 0, 1, 1], [], []>} : vector<8x128xf32>, vector<128x10xf32>, vector<8x10xf32> -> vector<8x10xf32>
    %224 = arith.addf %156, %223 : vector<8x10xf32>
    %c3_i32 = arith.constant 3 : i32
    %225 = arith.index_cast %c3_i32 : i32 to index
    %c0_63 = arith.constant 0 : index
    %c0_64 = arith.constant 0 : index
    %226 = vector.load %arg0[%225, %c0_63, %c0_64] : memref<8x8x28xf32, #tpu.memory_space<vmem>>, vector<1x8x28xf32>
    %227 = vector.shape_cast %226 : vector<1x8x28xf32> to vector<8x28xf32>
    %cst_65 = arith.constant dense<0.000000e+00> : vector<8x384xf32>
    %228 = tpu.matmul %227, %0, %cst_65 {dimension_numbers = #tpu.dot_dimension_numbers<[1], [0], [0], [1], [0, 0, 1, 1], [], []>} : vector<8x28xf32>, vector<28x384xf32>, vector<8x384xf32> -> vector<8x384xf32>
    %229 = arith.addf %228, %6 : vector<8x384xf32>
    %cst_66 = arith.constant dense<0.000000e+00> : vector<8x384xf32>
    %230 = tpu.matmul %189, %1, %cst_66 {dimension_numbers = #tpu.dot_dimension_numbers<[1], [0], [0], [1], [0, 0, 1, 1], [], []>} : vector<8x128xf32>, vector<128x384xf32>, vector<8x384xf32> -> vector<8x384xf32>
    %231 = arith.addf %230, %9 : vector<8x384xf32>
    %232 = vector.extract_strided_slice %229 {offsets = [0, 0], sizes = [8, 128], strides = [1, 1]} : vector<8x384xf32> to vector<8x128xf32>
    %233 = vector.extract_strided_slice %231 {offsets = [0, 0], sizes = [8, 128], strides = [1, 1]} : vector<8x384xf32> to vector<8x128xf32>
    %234 = arith.addf %232, %233 : vector<8x128xf32>
    %235 = arith.negf %234 : vector<8x128xf32>
    %236 = math.exp %235 : vector<8x128xf32>
    %cst_67 = arith.constant 1.000000e+00 : f32
    %237 = vector.broadcast %cst_67 : f32 to vector<8x128xf32>
    %238 = arith.addf %237, %236 : vector<8x128xf32>
    %239 = arith.divf %237, %238 : vector<8x128xf32>
    %240 = vector.extract_strided_slice %229 {offsets = [0, 128], sizes = [8, 128], strides = [1, 1]} : vector<8x384xf32> to vector<8x128xf32>
    %241 = vector.extract_strided_slice %231 {offsets = [0, 128], sizes = [8, 128], strides = [1, 1]} : vector<8x384xf32> to vector<8x128xf32>
    %242 = arith.addf %240, %241 : vector<8x128xf32>
    %243 = arith.negf %242 : vector<8x128xf32>
    %244 = math.exp %243 : vector<8x128xf32>
    %cst_68 = arith.constant 1.000000e+00 : f32
    %245 = vector.broadcast %cst_68 : f32 to vector<8x128xf32>
    %246 = arith.addf %245, %244 : vector<8x128xf32>
    %247 = arith.divf %245, %246 : vector<8x128xf32>
    %248 = vector.extract_strided_slice %229 {offsets = [0, 256], sizes = [8, 128], strides = [1, 1]} : vector<8x384xf32> to vector<8x128xf32>
    %249 = vector.extract_strided_slice %231 {offsets = [0, 256], sizes = [8, 128], strides = [1, 1]} : vector<8x384xf32> to vector<8x128xf32>
    %250 = arith.mulf %239, %249 : vector<8x128xf32>
    %251 = arith.addf %248, %250 : vector<8x128xf32>
    %252 = math.tanh %251 : vector<8x128xf32>
    %cst_69 = arith.constant 1.000000e+00 : f32
    %253 = vector.broadcast %cst_69 : f32 to vector<8x128xf32>
    %254 = arith.subf %253, %247 : vector<8x128xf32>
    %255 = arith.mulf %254, %252 : vector<8x128xf32>
    %256 = arith.mulf %247, %189 : vector<8x128xf32>
    %257 = arith.addf %255, %256 : vector<8x128xf32>
    %cst_70 = arith.constant dense<0.000000e+00> : vector<8x384xf32>
    %258 = tpu.matmul %257, %2, %cst_70 {dimension_numbers = #tpu.dot_dimension_numbers<[1], [0], [0], [1], [0, 0, 1, 1], [], []>} : vector<8x128xf32>, vector<128x384xf32>, vector<8x384xf32> -> vector<8x384xf32>
    %259 = arith.addf %258, %12 : vector<8x384xf32>
    %cst_71 = arith.constant dense<0.000000e+00> : vector<8x384xf32>
    %260 = tpu.matmul %219, %3, %cst_71 {dimension_numbers = #tpu.dot_dimension_numbers<[1], [0], [0], [1], [0, 0, 1, 1], [], []>} : vector<8x128xf32>, vector<128x384xf32>, vector<8x384xf32> -> vector<8x384xf32>
    %261 = arith.addf %260, %15 : vector<8x384xf32>
    %262 = vector.extract_strided_slice %259 {offsets = [0, 0], sizes = [8, 128], strides = [1, 1]} : vector<8x384xf32> to vector<8x128xf32>
    %263 = vector.extract_strided_slice %261 {offsets = [0, 0], sizes = [8, 128], strides = [1, 1]} : vector<8x384xf32> to vector<8x128xf32>
    %264 = arith.addf %262, %263 : vector<8x128xf32>
    %265 = arith.negf %264 : vector<8x128xf32>
    %266 = math.exp %265 : vector<8x128xf32>
    %cst_72 = arith.constant 1.000000e+00 : f32
    %267 = vector.broadcast %cst_72 : f32 to vector<8x128xf32>
    %268 = arith.addf %267, %266 : vector<8x128xf32>
    %269 = arith.divf %267, %268 : vector<8x128xf32>
    %270 = vector.extract_strided_slice %259 {offsets = [0, 128], sizes = [8, 128], strides = [1, 1]} : vector<8x384xf32> to vector<8x128xf32>
    %271 = vector.extract_strided_slice %261 {offsets = [0, 128], sizes = [8, 128], strides = [1, 1]} : vector<8x384xf32> to vector<8x128xf32>
    %272 = arith.addf %270, %271 : vector<8x128xf32>
    %273 = arith.negf %272 : vector<8x128xf32>
    %274 = math.exp %273 : vector<8x128xf32>
    %cst_73 = arith.constant 1.000000e+00 : f32
    %275 = vector.broadcast %cst_73 : f32 to vector<8x128xf32>
    %276 = arith.addf %275, %274 : vector<8x128xf32>
    %277 = arith.divf %275, %276 : vector<8x128xf32>
    %278 = vector.extract_strided_slice %259 {offsets = [0, 256], sizes = [8, 128], strides = [1, 1]} : vector<8x384xf32> to vector<8x128xf32>
    %279 = vector.extract_strided_slice %261 {offsets = [0, 256], sizes = [8, 128], strides = [1, 1]} : vector<8x384xf32> to vector<8x128xf32>
    %280 = arith.mulf %269, %279 : vector<8x128xf32>
    %281 = arith.addf %278, %280 : vector<8x128xf32>
    %282 = math.tanh %281 : vector<8x128xf32>
    %cst_74 = arith.constant 1.000000e+00 : f32
    %283 = vector.broadcast %cst_74 : f32 to vector<8x128xf32>
    %284 = arith.subf %283, %277 : vector<8x128xf32>
    %285 = arith.mulf %284, %282 : vector<8x128xf32>
    %286 = arith.mulf %277, %219 : vector<8x128xf32>
    %287 = arith.addf %285, %286 : vector<8x128xf32>
    %288 = arith.index_cast %c3_i32 : i32 to index
    %c0_75 = arith.constant 0 : index
    %c0_76 = arith.constant 0 : index
    %289 = vector.load %arg9[%288, %c0_75, %c0_76] : memref<8x128x10xf32, #tpu.memory_space<vmem>>, vector<1x128x10xf32>
    %290 = vector.shape_cast %289 : vector<1x128x10xf32> to vector<128x10xf32>
    %cst_77 = arith.constant dense<0.000000e+00> : vector<8x10xf32>
    %291 = tpu.matmul %287, %290, %cst_77 {dimension_numbers = #tpu.dot_dimension_numbers<[1], [0], [0], [1], [0, 0, 1, 1], [], []>} : vector<8x128xf32>, vector<128x10xf32>, vector<8x10xf32> -> vector<8x10xf32>
    %292 = arith.addf %224, %291 : vector<8x10xf32>
    %c4_i32 = arith.constant 4 : i32
    %293 = arith.index_cast %c4_i32 : i32 to index
    %c0_78 = arith.constant 0 : index
    %c0_79 = arith.constant 0 : index
    %294 = vector.load %arg0[%293, %c0_78, %c0_79] : memref<8x8x28xf32, #tpu.memory_space<vmem>>, vector<1x8x28xf32>
    %295 = vector.shape_cast %294 : vector<1x8x28xf32> to vector<8x28xf32>
    %cst_80 = arith.constant dense<0.000000e+00> : vector<8x384xf32>
    %296 = tpu.matmul %295, %0, %cst_80 {dimension_numbers = #tpu.dot_dimension_numbers<[1], [0], [0], [1], [0, 0, 1, 1], [], []>} : vector<8x28xf32>, vector<28x384xf32>, vector<8x384xf32> -> vector<8x384xf32>
    %297 = arith.addf %296, %6 : vector<8x384xf32>
    %cst_81 = arith.constant dense<0.000000e+00> : vector<8x384xf32>
    %298 = tpu.matmul %257, %1, %cst_81 {dimension_numbers = #tpu.dot_dimension_numbers<[1], [0], [0], [1], [0, 0, 1, 1], [], []>} : vector<8x128xf32>, vector<128x384xf32>, vector<8x384xf32> -> vector<8x384xf32>
    %299 = arith.addf %298, %9 : vector<8x384xf32>
    %300 = vector.extract_strided_slice %297 {offsets = [0, 0], sizes = [8, 128], strides = [1, 1]} : vector<8x384xf32> to vector<8x128xf32>
    %301 = vector.extract_strided_slice %299 {offsets = [0, 0], sizes = [8, 128], strides = [1, 1]} : vector<8x384xf32> to vector<8x128xf32>
    %302 = arith.addf %300, %301 : vector<8x128xf32>
    %303 = arith.negf %302 : vector<8x128xf32>
    %304 = math.exp %303 : vector<8x128xf32>
    %cst_82 = arith.constant 1.000000e+00 : f32
    %305 = vector.broadcast %cst_82 : f32 to vector<8x128xf32>
    %306 = arith.addf %305, %304 : vector<8x128xf32>
    %307 = arith.divf %305, %306 : vector<8x128xf32>
    %308 = vector.extract_strided_slice %297 {offsets = [0, 128], sizes = [8, 128], strides = [1, 1]} : vector<8x384xf32> to vector<8x128xf32>
    %309 = vector.extract_strided_slice %299 {offsets = [0, 128], sizes = [8, 128], strides = [1, 1]} : vector<8x384xf32> to vector<8x128xf32>
    %310 = arith.addf %308, %309 : vector<8x128xf32>
    %311 = arith.negf %310 : vector<8x128xf32>
    %312 = math.exp %311 : vector<8x128xf32>
    %cst_83 = arith.constant 1.000000e+00 : f32
    %313 = vector.broadcast %cst_83 : f32 to vector<8x128xf32>
    %314 = arith.addf %313, %312 : vector<8x128xf32>
    %315 = arith.divf %313, %314 : vector<8x128xf32>
    %316 = vector.extract_strided_slice %297 {offsets = [0, 256], sizes = [8, 128], strides = [1, 1]} : vector<8x384xf32> to vector<8x128xf32>
    %317 = vector.extract_strided_slice %299 {offsets = [0, 256], sizes = [8, 128], strides = [1, 1]} : vector<8x384xf32> to vector<8x128xf32>
    %318 = arith.mulf %307, %317 : vector<8x128xf32>
    %319 = arith.addf %316, %318 : vector<8x128xf32>
    %320 = math.tanh %319 : vector<8x128xf32>
    %cst_84 = arith.constant 1.000000e+00 : f32
    %321 = vector.broadcast %cst_84 : f32 to vector<8x128xf32>
    %322 = arith.subf %321, %315 : vector<8x128xf32>
    %323 = arith.mulf %322, %320 : vector<8x128xf32>
    %324 = arith.mulf %315, %257 : vector<8x128xf32>
    %325 = arith.addf %323, %324 : vector<8x128xf32>
    %cst_85 = arith.constant dense<0.000000e+00> : vector<8x384xf32>
    %326 = tpu.matmul %325, %2, %cst_85 {dimension_numbers = #tpu.dot_dimension_numbers<[1], [0], [0], [1], [0, 0, 1, 1], [], []>} : vector<8x128xf32>, vector<128x384xf32>, vector<8x384xf32> -> vector<8x384xf32>
    %327 = arith.addf %326, %12 : vector<8x384xf32>
    %cst_86 = arith.constant dense<0.000000e+00> : vector<8x384xf32>
    %328 = tpu.matmul %287, %3, %cst_86 {dimension_numbers = #tpu.dot_dimension_numbers<[1], [0], [0], [1], [0, 0, 1, 1], [], []>} : vector<8x128xf32>, vector<128x384xf32>, vector<8x384xf32> -> vector<8x384xf32>
    %329 = arith.addf %328, %15 : vector<8x384xf32>
    %330 = vector.extract_strided_slice %327 {offsets = [0, 0], sizes = [8, 128], strides = [1, 1]} : vector<8x384xf32> to vector<8x128xf32>
    %331 = vector.extract_strided_slice %329 {offsets = [0, 0], sizes = [8, 128], strides = [1, 1]} : vector<8x384xf32> to vector<8x128xf32>
    %332 = arith.addf %330, %331 : vector<8x128xf32>
    %333 = arith.negf %332 : vector<8x128xf32>
    %334 = math.exp %333 : vector<8x128xf32>
    %cst_87 = arith.constant 1.000000e+00 : f32
    %335 = vector.broadcast %cst_87 : f32 to vector<8x128xf32>
    %336 = arith.addf %335, %334 : vector<8x128xf32>
    %337 = arith.divf %335, %336 : vector<8x128xf32>
    %338 = vector.extract_strided_slice %327 {offsets = [0, 128], sizes = [8, 128], strides = [1, 1]} : vector<8x384xf32> to vector<8x128xf32>
    %339 = vector.extract_strided_slice %329 {offsets = [0, 128], sizes = [8, 128], strides = [1, 1]} : vector<8x384xf32> to vector<8x128xf32>
    %340 = arith.addf %338, %339 : vector<8x128xf32>
    %341 = arith.negf %340 : vector<8x128xf32>
    %342 = math.exp %341 : vector<8x128xf32>
    %cst_88 = arith.constant 1.000000e+00 : f32
    %343 = vector.broadcast %cst_88 : f32 to vector<8x128xf32>
    %344 = arith.addf %343, %342 : vector<8x128xf32>
    %345 = arith.divf %343, %344 : vector<8x128xf32>
    %346 = vector.extract_strided_slice %327 {offsets = [0, 256], sizes = [8, 128], strides = [1, 1]} : vector<8x384xf32> to vector<8x128xf32>
    %347 = vector.extract_strided_slice %329 {offsets = [0, 256], sizes = [8, 128], strides = [1, 1]} : vector<8x384xf32> to vector<8x128xf32>
    %348 = arith.mulf %337, %347 : vector<8x128xf32>
    %349 = arith.addf %346, %348 : vector<8x128xf32>
    %350 = math.tanh %349 : vector<8x128xf32>
    %cst_89 = arith.constant 1.000000e+00 : f32
    %351 = vector.broadcast %cst_89 : f32 to vector<8x128xf32>
    %352 = arith.subf %351, %345 : vector<8x128xf32>
    %353 = arith.mulf %352, %350 : vector<8x128xf32>
    %354 = arith.mulf %345, %287 : vector<8x128xf32>
    %355 = arith.addf %353, %354 : vector<8x128xf32>
    %356 = arith.index_cast %c4_i32 : i32 to index
    %c0_90 = arith.constant 0 : index
    %c0_91 = arith.constant 0 : index
    %357 = vector.load %arg9[%356, %c0_90, %c0_91] : memref<8x128x10xf32, #tpu.memory_space<vmem>>, vector<1x128x10xf32>
    %358 = vector.shape_cast %357 : vector<1x128x10xf32> to vector<128x10xf32>
    %cst_92 = arith.constant dense<0.000000e+00> : vector<8x10xf32>
    %359 = tpu.matmul %355, %358, %cst_92 {dimension_numbers = #tpu.dot_dimension_numbers<[1], [0], [0], [1], [0, 0, 1, 1], [], []>} : vector<8x128xf32>, vector<128x10xf32>, vector<8x10xf32> -> vector<8x10xf32>
    %360 = arith.addf %292, %359 : vector<8x10xf32>
    %c5_i32 = arith.constant 5 : i32
    %361 = arith.index_cast %c5_i32 : i32 to index
    %c0_93 = arith.constant 0 : index
    %c0_94 = arith.constant 0 : index
    %362 = vector.load %arg0[%361, %c0_93, %c0_94] : memref<8x8x28xf32, #tpu.memory_space<vmem>>, vector<1x8x28xf32>
    %363 = vector.shape_cast %362 : vector<1x8x28xf32> to vector<8x28xf32>
    %cst_95 = arith.constant dense<0.000000e+00> : vector<8x384xf32>
    %364 = tpu.matmul %363, %0, %cst_95 {dimension_numbers = #tpu.dot_dimension_numbers<[1], [0], [0], [1], [0, 0, 1, 1], [], []>} : vector<8x28xf32>, vector<28x384xf32>, vector<8x384xf32> -> vector<8x384xf32>
    %365 = arith.addf %364, %6 : vector<8x384xf32>
    %cst_96 = arith.constant dense<0.000000e+00> : vector<8x384xf32>
    %366 = tpu.matmul %325, %1, %cst_96 {dimension_numbers = #tpu.dot_dimension_numbers<[1], [0], [0], [1], [0, 0, 1, 1], [], []>} : vector<8x128xf32>, vector<128x384xf32>, vector<8x384xf32> -> vector<8x384xf32>
    %367 = arith.addf %366, %9 : vector<8x384xf32>
    %368 = vector.extract_strided_slice %365 {offsets = [0, 0], sizes = [8, 128], strides = [1, 1]} : vector<8x384xf32> to vector<8x128xf32>
    %369 = vector.extract_strided_slice %367 {offsets = [0, 0], sizes = [8, 128], strides = [1, 1]} : vector<8x384xf32> to vector<8x128xf32>
    %370 = arith.addf %368, %369 : vector<8x128xf32>
    %371 = arith.negf %370 : vector<8x128xf32>
    %372 = math.exp %371 : vector<8x128xf32>
    %cst_97 = arith.constant 1.000000e+00 : f32
    %373 = vector.broadcast %cst_97 : f32 to vector<8x128xf32>
    %374 = arith.addf %373, %372 : vector<8x128xf32>
    %375 = arith.divf %373, %374 : vector<8x128xf32>
    %376 = vector.extract_strided_slice %365 {offsets = [0, 128], sizes = [8, 128], strides = [1, 1]} : vector<8x384xf32> to vector<8x128xf32>
    %377 = vector.extract_strided_slice %367 {offsets = [0, 128], sizes = [8, 128], strides = [1, 1]} : vector<8x384xf32> to vector<8x128xf32>
    %378 = arith.addf %376, %377 : vector<8x128xf32>
    %379 = arith.negf %378 : vector<8x128xf32>
    %380 = math.exp %379 : vector<8x128xf32>
    %cst_98 = arith.constant 1.000000e+00 : f32
    %381 = vector.broadcast %cst_98 : f32 to vector<8x128xf32>
    %382 = arith.addf %381, %380 : vector<8x128xf32>
    %383 = arith.divf %381, %382 : vector<8x128xf32>
    %384 = vector.extract_strided_slice %365 {offsets = [0, 256], sizes = [8, 128], strides = [1, 1]} : vector<8x384xf32> to vector<8x128xf32>
    %385 = vector.extract_strided_slice %367 {offsets = [0, 256], sizes = [8, 128], strides = [1, 1]} : vector<8x384xf32> to vector<8x128xf32>
    %386 = arith.mulf %375, %385 : vector<8x128xf32>
    %387 = arith.addf %384, %386 : vector<8x128xf32>
    %388 = math.tanh %387 : vector<8x128xf32>
    %cst_99 = arith.constant 1.000000e+00 : f32
    %389 = vector.broadcast %cst_99 : f32 to vector<8x128xf32>
    %390 = arith.subf %389, %383 : vector<8x128xf32>
    %391 = arith.mulf %390, %388 : vector<8x128xf32>
    %392 = arith.mulf %383, %325 : vector<8x128xf32>
    %393 = arith.addf %391, %392 : vector<8x128xf32>
    %cst_100 = arith.constant dense<0.000000e+00> : vector<8x384xf32>
    %394 = tpu.matmul %393, %2, %cst_100 {dimension_numbers = #tpu.dot_dimension_numbers<[1], [0], [0], [1], [0, 0, 1, 1], [], []>} : vector<8x128xf32>, vector<128x384xf32>, vector<8x384xf32> -> vector<8x384xf32>
    %395 = arith.addf %394, %12 : vector<8x384xf32>
    %cst_101 = arith.constant dense<0.000000e+00> : vector<8x384xf32>
    %396 = tpu.matmul %355, %3, %cst_101 {dimension_numbers = #tpu.dot_dimension_numbers<[1], [0], [0], [1], [0, 0, 1, 1], [], []>} : vector<8x128xf32>, vector<128x384xf32>, vector<8x384xf32> -> vector<8x384xf32>
    %397 = arith.addf %396, %15 : vector<8x384xf32>
    %398 = vector.extract_strided_slice %395 {offsets = [0, 0], sizes = [8, 128], strides = [1, 1]} : vector<8x384xf32> to vector<8x128xf32>
    %399 = vector.extract_strided_slice %397 {offsets = [0, 0], sizes = [8, 128], strides = [1, 1]} : vector<8x384xf32> to vector<8x128xf32>
    %400 = arith.addf %398, %399 : vector<8x128xf32>
    %401 = arith.negf %400 : vector<8x128xf32>
    %402 = math.exp %401 : vector<8x128xf32>
    %cst_102 = arith.constant 1.000000e+00 : f32
    %403 = vector.broadcast %cst_102 : f32 to vector<8x128xf32>
    %404 = arith.addf %403, %402 : vector<8x128xf32>
    %405 = arith.divf %403, %404 : vector<8x128xf32>
    %406 = vector.extract_strided_slice %395 {offsets = [0, 128], sizes = [8, 128], strides = [1, 1]} : vector<8x384xf32> to vector<8x128xf32>
    %407 = vector.extract_strided_slice %397 {offsets = [0, 128], sizes = [8, 128], strides = [1, 1]} : vector<8x384xf32> to vector<8x128xf32>
    %408 = arith.addf %406, %407 : vector<8x128xf32>
    %409 = arith.negf %408 : vector<8x128xf32>
    %410 = math.exp %409 : vector<8x128xf32>
    %cst_103 = arith.constant 1.000000e+00 : f32
    %411 = vector.broadcast %cst_103 : f32 to vector<8x128xf32>
    %412 = arith.addf %411, %410 : vector<8x128xf32>
    %413 = arith.divf %411, %412 : vector<8x128xf32>
    %414 = vector.extract_strided_slice %395 {offsets = [0, 256], sizes = [8, 128], strides = [1, 1]} : vector<8x384xf32> to vector<8x128xf32>
    %415 = vector.extract_strided_slice %397 {offsets = [0, 256], sizes = [8, 128], strides = [1, 1]} : vector<8x384xf32> to vector<8x128xf32>
    %416 = arith.mulf %405, %415 : vector<8x128xf32>
    %417 = arith.addf %414, %416 : vector<8x128xf32>
    %418 = math.tanh %417 : vector<8x128xf32>
    %cst_104 = arith.constant 1.000000e+00 : f32
    %419 = vector.broadcast %cst_104 : f32 to vector<8x128xf32>
    %420 = arith.subf %419, %413 : vector<8x128xf32>
    %421 = arith.mulf %420, %418 : vector<8x128xf32>
    %422 = arith.mulf %413, %355 : vector<8x128xf32>
    %423 = arith.addf %421, %422 : vector<8x128xf32>
    %424 = arith.index_cast %c5_i32 : i32 to index
    %c0_105 = arith.constant 0 : index
    %c0_106 = arith.constant 0 : index
    %425 = vector.load %arg9[%424, %c0_105, %c0_106] : memref<8x128x10xf32, #tpu.memory_space<vmem>>, vector<1x128x10xf32>
    %426 = vector.shape_cast %425 : vector<1x128x10xf32> to vector<128x10xf32>
    %cst_107 = arith.constant dense<0.000000e+00> : vector<8x10xf32>
    %427 = tpu.matmul %423, %426, %cst_107 {dimension_numbers = #tpu.dot_dimension_numbers<[1], [0], [0], [1], [0, 0, 1, 1], [], []>} : vector<8x128xf32>, vector<128x10xf32>, vector<8x10xf32> -> vector<8x10xf32>
    %428 = arith.addf %360, %427 : vector<8x10xf32>
    %c6_i32 = arith.constant 6 : i32
    %429 = arith.index_cast %c6_i32 : i32 to index
    %c0_108 = arith.constant 0 : index
    %c0_109 = arith.constant 0 : index
    %430 = vector.load %arg0[%429, %c0_108, %c0_109] : memref<8x8x28xf32, #tpu.memory_space<vmem>>, vector<1x8x28xf32>
    %431 = vector.shape_cast %430 : vector<1x8x28xf32> to vector<8x28xf32>
    %cst_110 = arith.constant dense<0.000000e+00> : vector<8x384xf32>
    %432 = tpu.matmul %431, %0, %cst_110 {dimension_numbers = #tpu.dot_dimension_numbers<[1], [0], [0], [1], [0, 0, 1, 1], [], []>} : vector<8x28xf32>, vector<28x384xf32>, vector<8x384xf32> -> vector<8x384xf32>
    %433 = arith.addf %432, %6 : vector<8x384xf32>
    %cst_111 = arith.constant dense<0.000000e+00> : vector<8x384xf32>
    %434 = tpu.matmul %393, %1, %cst_111 {dimension_numbers = #tpu.dot_dimension_numbers<[1], [0], [0], [1], [0, 0, 1, 1], [], []>} : vector<8x128xf32>, vector<128x384xf32>, vector<8x384xf32> -> vector<8x384xf32>
    %435 = arith.addf %434, %9 : vector<8x384xf32>
    %436 = vector.extract_strided_slice %433 {offsets = [0, 0], sizes = [8, 128], strides = [1, 1]} : vector<8x384xf32> to vector<8x128xf32>
    %437 = vector.extract_strided_slice %435 {offsets = [0, 0], sizes = [8, 128], strides = [1, 1]} : vector<8x384xf32> to vector<8x128xf32>
    %438 = arith.addf %436, %437 : vector<8x128xf32>
    %439 = arith.negf %438 : vector<8x128xf32>
    %440 = math.exp %439 : vector<8x128xf32>
    %cst_112 = arith.constant 1.000000e+00 : f32
    %441 = vector.broadcast %cst_112 : f32 to vector<8x128xf32>
    %442 = arith.addf %441, %440 : vector<8x128xf32>
    %443 = arith.divf %441, %442 : vector<8x128xf32>
    %444 = vector.extract_strided_slice %433 {offsets = [0, 128], sizes = [8, 128], strides = [1, 1]} : vector<8x384xf32> to vector<8x128xf32>
    %445 = vector.extract_strided_slice %435 {offsets = [0, 128], sizes = [8, 128], strides = [1, 1]} : vector<8x384xf32> to vector<8x128xf32>
    %446 = arith.addf %444, %445 : vector<8x128xf32>
    %447 = arith.negf %446 : vector<8x128xf32>
    %448 = math.exp %447 : vector<8x128xf32>
    %cst_113 = arith.constant 1.000000e+00 : f32
    %449 = vector.broadcast %cst_113 : f32 to vector<8x128xf32>
    %450 = arith.addf %449, %448 : vector<8x128xf32>
    %451 = arith.divf %449, %450 : vector<8x128xf32>
    %452 = vector.extract_strided_slice %433 {offsets = [0, 256], sizes = [8, 128], strides = [1, 1]} : vector<8x384xf32> to vector<8x128xf32>
    %453 = vector.extract_strided_slice %435 {offsets = [0, 256], sizes = [8, 128], strides = [1, 1]} : vector<8x384xf32> to vector<8x128xf32>
    %454 = arith.mulf %443, %453 : vector<8x128xf32>
    %455 = arith.addf %452, %454 : vector<8x128xf32>
    %456 = math.tanh %455 : vector<8x128xf32>
    %cst_114 = arith.constant 1.000000e+00 : f32
    %457 = vector.broadcast %cst_114 : f32 to vector<8x128xf32>
    %458 = arith.subf %457, %451 : vector<8x128xf32>
    %459 = arith.mulf %458, %456 : vector<8x128xf32>
    %460 = arith.mulf %451, %393 : vector<8x128xf32>
    %461 = arith.addf %459, %460 : vector<8x128xf32>
    %cst_115 = arith.constant dense<0.000000e+00> : vector<8x384xf32>
    %462 = tpu.matmul %461, %2, %cst_115 {dimension_numbers = #tpu.dot_dimension_numbers<[1], [0], [0], [1], [0, 0, 1, 1], [], []>} : vector<8x128xf32>, vector<128x384xf32>, vector<8x384xf32> -> vector<8x384xf32>
    %463 = arith.addf %462, %12 : vector<8x384xf32>
    %cst_116 = arith.constant dense<0.000000e+00> : vector<8x384xf32>
    %464 = tpu.matmul %423, %3, %cst_116 {dimension_numbers = #tpu.dot_dimension_numbers<[1], [0], [0], [1], [0, 0, 1, 1], [], []>} : vector<8x128xf32>, vector<128x384xf32>, vector<8x384xf32> -> vector<8x384xf32>
    %465 = arith.addf %464, %15 : vector<8x384xf32>
    %466 = vector.extract_strided_slice %463 {offsets = [0, 0], sizes = [8, 128], strides = [1, 1]} : vector<8x384xf32> to vector<8x128xf32>
    %467 = vector.extract_strided_slice %465 {offsets = [0, 0], sizes = [8, 128], strides = [1, 1]} : vector<8x384xf32> to vector<8x128xf32>
    %468 = arith.addf %466, %467 : vector<8x128xf32>
    %469 = arith.negf %468 : vector<8x128xf32>
    %470 = math.exp %469 : vector<8x128xf32>
    %cst_117 = arith.constant 1.000000e+00 : f32
    %471 = vector.broadcast %cst_117 : f32 to vector<8x128xf32>
    %472 = arith.addf %471, %470 : vector<8x128xf32>
    %473 = arith.divf %471, %472 : vector<8x128xf32>
    %474 = vector.extract_strided_slice %463 {offsets = [0, 128], sizes = [8, 128], strides = [1, 1]} : vector<8x384xf32> to vector<8x128xf32>
    %475 = vector.extract_strided_slice %465 {offsets = [0, 128], sizes = [8, 128], strides = [1, 1]} : vector<8x384xf32> to vector<8x128xf32>
    %476 = arith.addf %474, %475 : vector<8x128xf32>
    %477 = arith.negf %476 : vector<8x128xf32>
    %478 = math.exp %477 : vector<8x128xf32>
    %cst_118 = arith.constant 1.000000e+00 : f32
    %479 = vector.broadcast %cst_118 : f32 to vector<8x128xf32>
    %480 = arith.addf %479, %478 : vector<8x128xf32>
    %481 = arith.divf %479, %480 : vector<8x128xf32>
    %482 = vector.extract_strided_slice %463 {offsets = [0, 256], sizes = [8, 128], strides = [1, 1]} : vector<8x384xf32> to vector<8x128xf32>
    %483 = vector.extract_strided_slice %465 {offsets = [0, 256], sizes = [8, 128], strides = [1, 1]} : vector<8x384xf32> to vector<8x128xf32>
    %484 = arith.mulf %473, %483 : vector<8x128xf32>
    %485 = arith.addf %482, %484 : vector<8x128xf32>
    %486 = math.tanh %485 : vector<8x128xf32>
    %cst_119 = arith.constant 1.000000e+00 : f32
    %487 = vector.broadcast %cst_119 : f32 to vector<8x128xf32>
    %488 = arith.subf %487, %481 : vector<8x128xf32>
    %489 = arith.mulf %488, %486 : vector<8x128xf32>
    %490 = arith.mulf %481, %423 : vector<8x128xf32>
    %491 = arith.addf %489, %490 : vector<8x128xf32>
    %492 = arith.index_cast %c6_i32 : i32 to index
    %c0_120 = arith.constant 0 : index
    %c0_121 = arith.constant 0 : index
    %493 = vector.load %arg9[%492, %c0_120, %c0_121] : memref<8x128x10xf32, #tpu.memory_space<vmem>>, vector<1x128x10xf32>
    %494 = vector.shape_cast %493 : vector<1x128x10xf32> to vector<128x10xf32>
    %cst_122 = arith.constant dense<0.000000e+00> : vector<8x10xf32>
    %495 = tpu.matmul %491, %494, %cst_122 {dimension_numbers = #tpu.dot_dimension_numbers<[1], [0], [0], [1], [0, 0, 1, 1], [], []>} : vector<8x128xf32>, vector<128x10xf32>, vector<8x10xf32> -> vector<8x10xf32>
    %496 = arith.addf %428, %495 : vector<8x10xf32>
    %c7_i32 = arith.constant 7 : i32
    %497 = arith.index_cast %c7_i32 : i32 to index
    %c0_123 = arith.constant 0 : index
    %c0_124 = arith.constant 0 : index
    %498 = vector.load %arg0[%497, %c0_123, %c0_124] : memref<8x8x28xf32, #tpu.memory_space<vmem>>, vector<1x8x28xf32>
    %499 = vector.shape_cast %498 : vector<1x8x28xf32> to vector<8x28xf32>
    %cst_125 = arith.constant dense<0.000000e+00> : vector<8x384xf32>
    %500 = tpu.matmul %499, %0, %cst_125 {dimension_numbers = #tpu.dot_dimension_numbers<[1], [0], [0], [1], [0, 0, 1, 1], [], []>} : vector<8x28xf32>, vector<28x384xf32>, vector<8x384xf32> -> vector<8x384xf32>
    %501 = arith.addf %500, %6 : vector<8x384xf32>
    %cst_126 = arith.constant dense<0.000000e+00> : vector<8x384xf32>
    %502 = tpu.matmul %461, %1, %cst_126 {dimension_numbers = #tpu.dot_dimension_numbers<[1], [0], [0], [1], [0, 0, 1, 1], [], []>} : vector<8x128xf32>, vector<128x384xf32>, vector<8x384xf32> -> vector<8x384xf32>
    %503 = arith.addf %502, %9 : vector<8x384xf32>
    %504 = vector.extract_strided_slice %501 {offsets = [0, 0], sizes = [8, 128], strides = [1, 1]} : vector<8x384xf32> to vector<8x128xf32>
    %505 = vector.extract_strided_slice %503 {offsets = [0, 0], sizes = [8, 128], strides = [1, 1]} : vector<8x384xf32> to vector<8x128xf32>
    %506 = arith.addf %504, %505 : vector<8x128xf32>
    %507 = arith.negf %506 : vector<8x128xf32>
    %508 = math.exp %507 : vector<8x128xf32>
    %cst_127 = arith.constant 1.000000e+00 : f32
    %509 = vector.broadcast %cst_127 : f32 to vector<8x128xf32>
    %510 = arith.addf %509, %508 : vector<8x128xf32>
    %511 = arith.divf %509, %510 : vector<8x128xf32>
    %512 = vector.extract_strided_slice %501 {offsets = [0, 128], sizes = [8, 128], strides = [1, 1]} : vector<8x384xf32> to vector<8x128xf32>
    %513 = vector.extract_strided_slice %503 {offsets = [0, 128], sizes = [8, 128], strides = [1, 1]} : vector<8x384xf32> to vector<8x128xf32>
    %514 = arith.addf %512, %513 : vector<8x128xf32>
    %515 = arith.negf %514 : vector<8x128xf32>
    %516 = math.exp %515 : vector<8x128xf32>
    %cst_128 = arith.constant 1.000000e+00 : f32
    %517 = vector.broadcast %cst_128 : f32 to vector<8x128xf32>
    %518 = arith.addf %517, %516 : vector<8x128xf32>
    %519 = arith.divf %517, %518 : vector<8x128xf32>
    %520 = vector.extract_strided_slice %501 {offsets = [0, 256], sizes = [8, 128], strides = [1, 1]} : vector<8x384xf32> to vector<8x128xf32>
    %521 = vector.extract_strided_slice %503 {offsets = [0, 256], sizes = [8, 128], strides = [1, 1]} : vector<8x384xf32> to vector<8x128xf32>
    %522 = arith.mulf %511, %521 : vector<8x128xf32>
    %523 = arith.addf %520, %522 : vector<8x128xf32>
    %524 = math.tanh %523 : vector<8x128xf32>
    %cst_129 = arith.constant 1.000000e+00 : f32
    %525 = vector.broadcast %cst_129 : f32 to vector<8x128xf32>
    %526 = arith.subf %525, %519 : vector<8x128xf32>
    %527 = arith.mulf %526, %524 : vector<8x128xf32>
    %528 = arith.mulf %519, %461 : vector<8x128xf32>
    %529 = arith.addf %527, %528 : vector<8x128xf32>
    %cst_130 = arith.constant dense<0.000000e+00> : vector<8x384xf32>
    %530 = tpu.matmul %529, %2, %cst_130 {dimension_numbers = #tpu.dot_dimension_numbers<[1], [0], [0], [1], [0, 0, 1, 1], [], []>} : vector<8x128xf32>, vector<128x384xf32>, vector<8x384xf32> -> vector<8x384xf32>
    %531 = arith.addf %530, %12 : vector<8x384xf32>
    %cst_131 = arith.constant dense<0.000000e+00> : vector<8x384xf32>
    %532 = tpu.matmul %491, %3, %cst_131 {dimension_numbers = #tpu.dot_dimension_numbers<[1], [0], [0], [1], [0, 0, 1, 1], [], []>} : vector<8x128xf32>, vector<128x384xf32>, vector<8x384xf32> -> vector<8x384xf32>
    %533 = arith.addf %532, %15 : vector<8x384xf32>
    %534 = vector.extract_strided_slice %531 {offsets = [0, 0], sizes = [8, 128], strides = [1, 1]} : vector<8x384xf32> to vector<8x128xf32>
    %535 = vector.extract_strided_slice %533 {offsets = [0, 0], sizes = [8, 128], strides = [1, 1]} : vector<8x384xf32> to vector<8x128xf32>
    %536 = arith.addf %534, %535 : vector<8x128xf32>
    %537 = arith.negf %536 : vector<8x128xf32>
    %538 = math.exp %537 : vector<8x128xf32>
    %cst_132 = arith.constant 1.000000e+00 : f32
    %539 = vector.broadcast %cst_132 : f32 to vector<8x128xf32>
    %540 = arith.addf %539, %538 : vector<8x128xf32>
    %541 = arith.divf %539, %540 : vector<8x128xf32>
    %542 = vector.extract_strided_slice %531 {offsets = [0, 128], sizes = [8, 128], strides = [1, 1]} : vector<8x384xf32> to vector<8x128xf32>
    %543 = vector.extract_strided_slice %533 {offsets = [0, 128], sizes = [8, 128], strides = [1, 1]} : vector<8x384xf32> to vector<8x128xf32>
    %544 = arith.addf %542, %543 : vector<8x128xf32>
    %545 = arith.negf %544 : vector<8x128xf32>
    %546 = math.exp %545 : vector<8x128xf32>
    %cst_133 = arith.constant 1.000000e+00 : f32
    %547 = vector.broadcast %cst_133 : f32 to vector<8x128xf32>
    %548 = arith.addf %547, %546 : vector<8x128xf32>
    %549 = arith.divf %547, %548 : vector<8x128xf32>
    %550 = vector.extract_strided_slice %531 {offsets = [0, 256], sizes = [8, 128], strides = [1, 1]} : vector<8x384xf32> to vector<8x128xf32>
    %551 = vector.extract_strided_slice %533 {offsets = [0, 256], sizes = [8, 128], strides = [1, 1]} : vector<8x384xf32> to vector<8x128xf32>
    %552 = arith.mulf %541, %551 : vector<8x128xf32>
    %553 = arith.addf %550, %552 : vector<8x128xf32>
    %554 = math.tanh %553 : vector<8x128xf32>
    %cst_134 = arith.constant 1.000000e+00 : f32
    %555 = vector.broadcast %cst_134 : f32 to vector<8x128xf32>
    %556 = arith.subf %555, %549 : vector<8x128xf32>
    %557 = arith.mulf %556, %554 : vector<8x128xf32>
    %558 = arith.mulf %549, %491 : vector<8x128xf32>
    %559 = arith.addf %557, %558 : vector<8x128xf32>
    %560 = arith.index_cast %c7_i32 : i32 to index
    %c0_135 = arith.constant 0 : index
    %c0_136 = arith.constant 0 : index
    %561 = vector.load %arg9[%560, %c0_135, %c0_136] : memref<8x128x10xf32, #tpu.memory_space<vmem>>, vector<1x128x10xf32>
    %562 = vector.shape_cast %561 : vector<1x128x10xf32> to vector<128x10xf32>
    %cst_137 = arith.constant dense<0.000000e+00> : vector<8x10xf32>
    %563 = tpu.matmul %559, %562, %cst_137 {dimension_numbers = #tpu.dot_dimension_numbers<[1], [0], [0], [1], [0, 0, 1, 1], [], []>} : vector<8x128xf32>, vector<128x10xf32>, vector<8x10xf32> -> vector<8x10xf32>
    %564 = arith.addf %496, %563 : vector<8x10xf32>
    %c8_i32 = arith.constant 8 : i32
    %c0_138 = arith.constant 0 : index
    %c0_139 = arith.constant 0 : index
    %565 = vector.load %arg11[%c0_138, %c0_139] : memref<8x10xf32, #tpu.memory_space<vmem>>, vector<8x10xf32>
    tpu.vector_store %arg11[%c0_138, %c0_139], %564 {strides = array<i32>} : memref<8x10xf32, #tpu.memory_space<vmem>>, vector<8x10xf32>,
    return
  }
}

</mosaic_0001>

<llo_original>
// kernel: gru_model_forward.1
$region0: #{gru_model_forward.1}
  #allocation0 [shape = 'u32[]', space=smem, size = 0x4, offset = 0x4, fixed_abs, tag = 'smem constant byte address 0x4 - core index']
  #allocation1 [shape = 'u32[72,128]{1,0:T(1,128)}', space=vmem, size = 0x9000, scoped, tag = 'internal scratch']
  %s0 = inlined_call_operand.vmem [shape: f32[8,8,28], index: 0, kind: input, shape index: {}]
  %s1 = inlined_call_operand.vmem [shape: f32[28,384], index: 1, kind: input, shape index: {}]
  %s2 = inlined_call_operand.vmem [shape: f32[1,384], index: 2, kind: input, shape index: {}]
  %s3 = inlined_call_operand.vmem [shape: f32[128,384], index: 3, kind: input, shape index: {}]
  %s4 = inlined_call_operand.vmem [shape: f32[1,384], index: 4, kind: input, shape index: {}]
  %s5 = inlined_call_operand.vmem [shape: f32[128,384], index: 5, kind: input, shape index: {}]
  %s6 = inlined_call_operand.vmem [shape: f32[1,384], index: 6, kind: input, shape index: {}]
  %s7 = inlined_call_operand.vmem [shape: f32[128,384], index: 7, kind: input, shape index: {}]
  %s8 = inlined_call_operand.vmem [shape: f32[1,384], index: 8, kind: input, shape index: {}]
  %s9 = inlined_call_operand.vmem [shape: f32[8,128,10], index: 9, kind: input, shape index: {}]
  %s10 = inlined_call_operand.vmem [shape: f32[1,10], index: 10, kind: input, shape index: {}]
  %s11 = inlined_call_operand.hbm [shape: f32[8,10], index: 11, kind: output, shape index: {}]
  %s12 = sld [smem:[#allocation0]]
  $region54: #{gru_model_forward.1} parent=0
    _
  %s14 = ssub.s32 1, %s12
  %s15 = scalar_select 0, %s14, %s12
  $region1: #{gru_model_forward.1} parent=0
    #allocation2 [shape = 'u8[4096]{0}', space=vmem, size = 0x1000, scoped, tag = 'output window, operand 0, single buffered']
    #allocation3 [shape = 's32[1]{0}', space=sflag, size = 0x4, scoped, tag = 'scoped memory for gru_model_forward.1']
    %16 = vsyncpa [#allocation3], 0
    // Predicated region
    $region2: #{gru_model_forward.1} parent=1 // pred_check
      _
    $region3: #{gru_model_forward.1} parent=1 // pred_check_branch
      %18 = sbr.rel (0) target = $region5
    $region4: #{gru_model_forward.1} parent=1 // pred_region
      _
    $region5: #{gru_model_forward.1} parent=1 // pred_fallthru
      _
    // Predicated region
    $region6: #{gru_model_forward.1} parent=1 // pred_check
      _
    $region7: #{gru_model_forward.1} parent=1 // pred_check_branch
      %20 = sbr.rel (0) target = $region9
    $region8: #{gru_model_forward.1} parent=1 // pred_region
      _
    $region9: #{gru_model_forward.1} parent=1 // pred_fallthru
      _
    // Predicated region
    $region10: #{gru_model_forward.1} parent=1 // pred_check
      _
    $region11: #{gru_model_forward.1} parent=1 // pred_check_branch
      %22 = sbr.rel (0) target = $region13
    $region12: #{gru_model_forward.1} parent=1 // pred_region
      _
    $region13: #{gru_model_forward.1} parent=1 // pred_fallthru
      _
    // Predicated region
    $region14: #{gru_model_forward.1} parent=1 // pred_check
      _
    $region15: #{gru_model_forward.1} parent=1 // pred_check_branch
      %24 = sbr.rel (0) target = $region17
    $region16: #{gru_model_forward.1} parent=1 // pred_region
      _
    $region17: #{gru_model_forward.1} parent=1 // pred_fallthru
      _
    // Predicated region
    $region18: #{gru_model_forward.1} parent=1 // pred_check
      _
    $region19: #{gru_model_forward.1} parent=1 // pred_check_branch
      %26 = sbr.rel (0) target = $region21
    $region20: #{gru_model_forward.1} parent=1 // pred_region
      _
    $region21: #{gru_model_forward.1} parent=1 // pred_fallthru
      _
    // Predicated region
    $region22: #{gru_model_forward.1} parent=1 // pred_check
      _
    $region23: #{gru_model_forward.1} parent=1 // pred_check_branch
      %28 = sbr.rel (0) target = $region25
    $region24: #{gru_model_forward.1} parent=1 // pred_region
      _
    $region25: #{gru_model_forward.1} parent=1 // pred_fallthru
      _
    // Predicated region
    $region26: #{gru_model_forward.1} parent=1 // pred_check
      _
    $region27: #{gru_model_forward.1} parent=1 // pred_check_branch
      %30 = sbr.rel (0) target = $region29
    $region28: #{gru_model_forward.1} parent=1 // pred_region
      _
    $region29: #{gru_model_forward.1} parent=1 // pred_fallthru
      _
    // Predicated region
    $region30: #{gru_model_forward.1} parent=1 // pred_check
      _
    $region31: #{gru_model_forward.1} parent=1 // pred_check_branch
      %32 = sbr.rel (0) target = $region33
    $region32: #{gru_model_forward.1} parent=1 // pred_region
      _
    $region33: #{gru_model_forward.1} parent=1 // pred_fallthru
      _
    // Predicated region
    $region34: #{gru_model_forward.1} parent=1 // pred_check
      _
    $region35: #{gru_model_forward.1} parent=1 // pred_check_branch
      %34 = sbr.rel (0) target = $region37
    $region36: #{gru_model_forward.1} parent=1 // pred_region
      _
    $region37: #{gru_model_forward.1} parent=1 // pred_fallthru
      _
    // Predicated region
    $region38: #{gru_model_forward.1} parent=1 // pred_check
      _
    $region39: #{gru_model_forward.1} parent=1 // pred_check_branch
      %36 = sbr.rel (0) target = $region41
    $region40: #{gru_model_forward.1} parent=1 // pred_region
      _
    $region41: #{gru_model_forward.1} parent=1 // pred_fallthru
      _
    // Predicated region
    $region42: #{gru_model_forward.1} parent=1 // pred_check
      _
    $region43: #{gru_model_forward.1} parent=1 // pred_check_branch
      %38 = sbr.rel (0) target = $region45
    $region44: #{gru_model_forward.1} parent=1 // pred_region
      _
    $region45: #{gru_model_forward.1} parent=1 // pred_fallthru
      _
    %v39 = vld [vmem:[%s1] sm:$0xff]
    %v40 = vld [vmem:[%s1 + $0x8] sm:$0xff]
    %v41 = vld [vmem:[%s1 + $0x10] sm:$0xff]
    %v42 = vld [vmem:[%s1 + $0x18] sm:$0xff]
    %v43 = vld [vmem:[%s1 + $0x20] sm:$0xff]
    %v44 = vld [vmem:[%s1 + $0x28] sm:$0xff]
    %v45 = vld [vmem:[%s1 + $0x30] sm:$0xff]
    %v46 = vld [vmem:[%s1 + $0x38] sm:$0xff]
    %v47 = vld [vmem:[%s1 + $0x40] sm:$0xff]
    %v48 = vld [vmem:[%s1 + $0x48] sm:$0xf]
    %v49 = vld [vmem:[%s1 + $0x50] sm:$0xf]
    %v50 = vld [vmem:[%s1 + $0x58] sm:$0xf]
    %v51 = vld [vmem:[%s3] sm:$0xff]
    %v52 = vld [vmem:[%s3 + $0x8] sm:$0xff]
    %v53 = vld [vmem:[%s3 + $0x10] sm:$0xff]
    %v54 = vld [vmem:[%s3 + $0x18] sm:$0xff]
    %v55 = vld [vmem:[%s3 + $0x20] sm:$0xff]
    %v56 = vld [vmem:[%s3 + $0x28] sm:$0xff]
    %v57 = vld [vmem:[%s3 + $0x30] sm:$0xff]
    %v58 = vld [vmem:[%s3 + $0x38] sm:$0xff]
    %v59 = vld [vmem:[%s3 + $0x40] sm:$0xff]
    %v60 = vld [vmem:[%s3 + $0x48] sm:$0xff]
    %v61 = vld [vmem:[%s3 + $0x50] sm:$0xff]
    %v62 = vld [vmem:[%s3 + $0x58] sm:$0xff]
    %v63 = vld [vmem:[%s3 + $0x60] sm:$0xff]
    %v64 = vld [vmem:[%s3 + $0x68] sm:$0xff]
    %v65 = vld [vmem:[%s3 + $0x70] sm:$0xff]
    %v66 = vld [vmem:[%s3 + $0x78] sm:$0xff]
    %v67 = vld [vmem:[%s3 + $0x80] sm:$0xff]
    %v68 = vld [vmem:[%s3 + $0x88] sm:$0xff]
    %v69 = vld [vmem:[%s3 + $0x90] sm:$0xff]
    %v70 = vld [vmem:[%s3 + $0x98] sm:$0xff]
    %v71 = vld [vmem:[%s3 + $0xa0] sm:$0xff]
    %v72 = vld [vmem:[%s3 + $0xa8] sm:$0xff]
    %v73 = vld [vmem:[%s3 + $0xb0] sm:$0xff]
    %v74 = vld [vmem:[%s3 + $0xb8] sm:$0xff]
    %v75 = vld [vmem:[%s3 + $0xc0] sm:$0xff]
    %v76 = vld [vmem:[%s3 + $0xc8] sm:$0xff]
    %v77 = vld [vmem:[%s3 + $0xd0] sm:$0xff]
    %v78 = vld [vmem:[%s3 + $0xd8] sm:$0xff]
    %v79 = vld [vmem:[%s3 + $0xe0] sm:$0xff]
    %v80 = vld [vmem:[%s3 + $0xe8] sm:$0xff]
    %v81 = vld [vmem:[%s3 + $0xf0] sm:$0xff]
    %v82 = vld [vmem:[%s3 + $0xf8] sm:$0xff]
    %v83 = vld [vmem:[%s3 + $0x100] sm:$0xff]
    %v84 = vld [vmem:[%s3 + $0x108] sm:$0xff]
    %v85 = vld [vmem:[%s3 + $0x110] sm:$0xff]
    %v86 = vld [vmem:[%s3 + $0x118] sm:$0xff]
    %v87 = vld [vmem:[%s3 + $0x120] sm:$0xff]
    %v88 = vld [vmem:[%s3 + $0x128] sm:$0xff]
    %v89 = vld [vmem:[%s3 + $0x130] sm:$0xff]
    %v90 = vld [vmem:[%s3 + $0x138] sm:$0xff]
    %v91 = vld [vmem:[%s3 + $0x140] sm:$0xff]
    %v92 = vld [vmem:[%s3 + $0x148] sm:$0xff]
    %v93 = vld [vmem:[%s3 + $0x150] sm:$0xff]
    %v94 = vld [vmem:[%s3 + $0x158] sm:$0xff]
    %v95 = vld [vmem:[%s3 + $0x160] sm:$0xff]
    %v96 = vld [vmem:[%s3 + $0x168] sm:$0xff]
    %v97 = vld [vmem:[%s3 + $0x170] sm:$0xff]
    %v98 = vld [vmem:[%s3 + $0x178] sm:$0xff]
    %v99 = vld [vmem:[%s5] sm:$0xff]
    %v100 = vld [vmem:[%s5 + $0x8] sm:$0xff]
    %v101 = vld [vmem:[%s5 + $0x10] sm:$0xff]
    %v102 = vld [vmem:[%s5 + $0x18] sm:$0xff]
    %v103 = vld [vmem:[%s5 + $0x20] sm:$0xff]
    %v104 = vld [vmem:[%s5 + $0x28] sm:$0xff]
    %v105 = vld [vmem:[%s5 + $0x30] sm:$0xff]
    %v106 = vld [vmem:[%s5 + $0x38] sm:$0xff]
    %v107 = vld [vmem:[%s5 + $0x40] sm:$0xff]
    %v108 = vld [vmem:[%s5 + $0x48] sm:$0xff]
    %v109 = vld [vmem:[%s5 + $0x50] sm:$0xff]
    %v110 = vld [vmem:[%s5 + $0x58] sm:$0xff]
    %v111 = vld [vmem:[%s5 + $0x60] sm:$0xff]
    %v112 = vld [vmem:[%s5 + $0x68] sm:$0xff]
    %v113 = vld [vmem:[%s5 + $0x70] sm:$0xff]
    %v114 = vld [vmem:[%s5 + $0x78] sm:$0xff]
    %v115 = vld [vmem:[%s5 + $0x80] sm:$0xff]
    %v116 = vld [vmem:[%s5 + $0x88] sm:$0xff]
    %v117 = vld [vmem:[%s5 + $0x90] sm:$0xff]
    %v118 = vld [vmem:[%s5 + $0x98] sm:$0xff]
    %v119 = vld [vmem:[%s5 + $0xa0] sm:$0xff]
    %v120 = vld [vmem:[%s5 + $0xa8] sm:$0xff]
    %v121 = vld [vmem:[%s5 + $0xb0] sm:$0xff]
    %v122 = vld [vmem:[%s5 + $0xb8] sm:$0xff]
    %v123 = vld [vmem:[%s5 + $0xc0] sm:$0xff]
    %v124 = vld [vmem:[%s5 + $0xc8] sm:$0xff]
    %v125 = vld [vmem:[%s5 + $0xd0] sm:$0xff]
    %v126 = vld [vmem:[%s5 + $0xd8] sm:$0xff]
    %v127 = vld [vmem:[%s5 + $0xe0] sm:$0xff]
    %v128 = vld [vmem:[%s5 + $0xe8] sm:$0xff]
    %v129 = vld [vmem:[%s5 + $0xf0] sm:$0xff]
    %v130 = vld [vmem:[%s5 + $0xf8] sm:$0xff]
    %v131 = vld [vmem:[%s5 + $0x100] sm:$0xff]
    %v132 = vld [vmem:[%s5 + $0x108] sm:$0xff]
    %v133 = vld [vmem:[%s5 + $0x110] sm:$0xff]
    %v134 = vld [vmem:[%s5 + $0x118] sm:$0xff]
    %v135 = vld [vmem:[%s5 + $0x120] sm:$0xff]
    %v136 = vld [vmem:[%s5 + $0x128] sm:$0xff]
    %v137 = vld [vmem:[%s5 + $0x130] sm:$0xff]
    %v138 = vld [vmem:[%s5 + $0x138] sm:$0xff]
    %v139 = vld [vmem:[%s5 + $0x140] sm:$0xff]
    %v140 = vld [vmem:[%s5 + $0x148] sm:$0xff]
    %v141 = vld [vmem:[%s5 + $0x150] sm:$0xff]
    %v142 = vld [vmem:[%s5 + $0x158] sm:$0xff]
    %v143 = vld [vmem:[%s5 + $0x160] sm:$0xff]
    %v144 = vld [vmem:[%s5 + $0x168] sm:$0xff]
    %v145 = vld [vmem:[%s5 + $0x170] sm:$0xff]
    %v146 = vld [vmem:[%s5 + $0x178] sm:$0xff]
    %v147 = vld [vmem:[%s7] sm:$0xff]
    %v148 = vld [vmem:[%s7 + $0x8] sm:$0xff]
    %v149 = vld [vmem:[%s7 + $0x10] sm:$0xff]
    %v150 = vld [vmem:[%s7 + $0x18] sm:$0xff]
    %v151 = vld [vmem:[%s7 + $0x20] sm:$0xff]
    %v152 = vld [vmem:[%s7 + $0x28] sm:$0xff]
    %v153 = vld [vmem:[%s7 + $0x30] sm:$0xff]
    %v154 = vld [vmem:[%s7 + $0x38] sm:$0xff]
    %v155 = vld [vmem:[%s7 + $0x40] sm:$0xff]
    %v156 = vld [vmem:[%s7 + $0x48] sm:$0xff]
    %v157 = vld [vmem:[%s7 + $0x50] sm:$0xff]
    %v158 = vld [vmem:[%s7 + $0x58] sm:$0xff]
    %v159 = vld [vmem:[%s7 + $0x60] sm:$0xff]
    %v160 = vld [vmem:[%s7 + $0x68] sm:$0xff]
    %v161 = vld [vmem:[%s7 + $0x70] sm:$0xff]
    %v162 = vld [vmem:[%s7 + $0x78] sm:$0xff]
    %v163 = vld [vmem:[%s7 + $0x80] sm:$0xff]
    %v164 = vld [vmem:[%s7 + $0x88] sm:$0xff]
    %v165 = vld [vmem:[%s7 + $0x90] sm:$0xff]
    %v166 = vld [vmem:[%s7 + $0x98] sm:$0xff]
    %v167 = vld [vmem:[%s7 + $0xa0] sm:$0xff]
    %v168 = vld [vmem:[%s7 + $0xa8] sm:$0xff]
    %v169 = vld [vmem:[%s7 + $0xb0] sm:$0xff]
    %v170 = vld [vmem:[%s7 + $0xb8] sm:$0xff]
    %v171 = vld [vmem:[%s7 + $0xc0] sm:$0xff]
    %v172 = vld [vmem:[%s7 + $0xc8] sm:$0xff]
    %v173 = vld [vmem:[%s7 + $0xd0] sm:$0xff]
    %v174 = vld [vmem:[%s7 + $0xd8] sm:$0xff]
    %v175 = vld [vmem:[%s7 + $0xe0] sm:$0xff]
    %v176 = vld [vmem:[%s7 + $0xe8] sm:$0xff]
    %v177 = vld [vmem:[%s7 + $0xf0] sm:$0xff]
    %v178 = vld [vmem:[%s7 + $0xf8] sm:$0xff]
    %v179 = vld [vmem:[%s7 + $0x100] sm:$0xff]
    %v180 = vld [vmem:[%s7 + $0x108] sm:$0xff]
    %v181 = vld [vmem:[%s7 + $0x110] sm:$0xff]
    %v182 = vld [vmem:[%s7 + $0x118] sm:$0xff]
    %v183 = vld [vmem:[%s7 + $0x120] sm:$0xff]
    %v184 = vld [vmem:[%s7 + $0x128] sm:$0xff]
    %v185 = vld [vmem:[%s7 + $0x130] sm:$0xff]
    %v186 = vld [vmem:[%s7 + $0x138] sm:$0xff]
    %v187 = vld [vmem:[%s7 + $0x140] sm:$0xff]
    %v188 = vld [vmem:[%s7 + $0x148] sm:$0xff]
    %v189 = vld [vmem:[%s7 + $0x150] sm:$0xff]
    %v190 = vld [vmem:[%s7 + $0x158] sm:$0xff]
    %v191 = vld [vmem:[%s7 + $0x160] sm:$0xff]
    %v192 = vld [vmem:[%s7 + $0x168] sm:$0xff]
    %v193 = vld [vmem:[%s7 + $0x170] sm:$0xff]
    %v194 = vld [vmem:[%s7 + $0x178] sm:$0xff]
    %v195 = vld [vmem:[%s2] sm:$0x7]
    %v197 = vperm.slane %v195, 0
    %v198 = vperm.slane %v195, 1
    %v199 = vperm.slane %v195, 2
    %v203 = vld [vmem:[%s4] sm:$0x7]
    %v205 = vperm.slane %v203, 0
    %v206 = vperm.slane %v203, 1
    %v207 = vperm.slane %v203, 2
    %v211 = vld [vmem:[%s6] sm:$0x7]
    %v213 = vperm.slane %v211, 0
    %v214 = vperm.slane %v211, 1
    %v215 = vperm.slane %v211, 2
    %v219 = vld [vmem:[%s8] sm:$0x7]
    %v221 = vperm.slane %v219, 0
    %v222 = vperm.slane %v219, 1
    %v223 = vperm.slane %v219, 2
    %v227 = vld [vmem:[%s10] sm:$0x1]
    %v229 = vperm.slane %v227, 0
    %v231 = vld [vmem:[%s0] sm:$0xff]
    %vm232 = vcmask 228352
    %v234 = vsel %vm232, %v231, 0
    %vm236 = vcmask 1043456
    %v238 = vsel %vm236, %v48, 0
    %v241 = vsel %vm236, %v49, 0
    %v244 = vsel %vm236, %v50, 0
    %246 = vmatpush.msra.mxu0 0.0
    %247 = vmatpush.msra.mxu0 0.0
    %248 = vmatpush.msra.mxu0 0.0
    %249 = vmatpush.msra.mxu0 0.0
    %250 = vmatpush.msra.mxu0 0.0
    %251 = vmatpush.msra.mxu0 0.0
    %252 = vmatpush.msra.mxu0 0.0
    %253 = vmatpush.msra.mxu0 0.0
    %254 = vmatpush.msra.mxu0 0.0
    %255 = vmatpush.msra.mxu0 0.0
    %256 = vmatpush.msra.mxu0 0.0
    %257 = vmatpush.msra.mxu0 0.0
    %258 = vmatpush.msra.mxu0 %v238
    %259 = vmatpush.msra.mxu0 %v45
    %260 = vmatpush.msra.mxu0 %v42
    %261 = vmatpush.msra.mxu0 %v39
    %262 = vmatmul.f32.gmra.mxu0 %v234
    %v263 = vpop.f32.mrf.mxu0
    %v264 = vadd.f32 %v197, %v263
    %265 = vdwg.mxu0
    %266 = vmatpush.msra.mxu0 0.0
    %267 = vmatpush.msra.mxu0 0.0
    %268 = vmatpush.msra.mxu0 0.0
    %269 = vmatpush.msra.mxu0 0.0
    %270 = vmatpush.msra.mxu0 0.0
    %271 = vmatpush.msra.mxu0 0.0
    %272 = vmatpush.msra.mxu0 0.0
    %273 = vmatpush.msra.mxu0 0.0
    %274 = vmatpush.msra.mxu0 0.0
    %275 = vmatpush.msra.mxu0 0.0
    %276 = vmatpush.msra.mxu0 0.0
    %277 = vmatpush.msra.mxu0 0.0
    %278 = vmatpush.msra.mxu0 %v241
    %279 = vmatpush.msra.mxu0 %v46
    %280 = vmatpush.msra.mxu0 %v43
    %281 = vmatpush.msra.mxu0 %v40
    %282 = vmatmul.f32.gmra.mxu0 %v234
    %v283 = vpop.f32.mrf.mxu0
    %v284 = vadd.f32 %v198, %v283
    %285 = vdwg.mxu0
    %286 = vmatpush.msra.mxu0 0.0
    %287 = vmatpush.msra.mxu0 0.0
    %288 = vmatpush.msra.mxu0 0.0
    %289 = vmatpush.msra.mxu0 0.0
    %290 = vmatpush.msra.mxu0 0.0
    %291 = vmatpush.msra.mxu0 0.0
    %292 = vmatpush.msra.mxu0 0.0
    %293 = vmatpush.msra.mxu0 0.0
    %294 = vmatpush.msra.mxu0 0.0
    %295 = vmatpush.msra.mxu0 0.0
    %296 = vmatpush.msra.mxu0 0.0
    %297 = vmatpush.msra.mxu0 0.0
    %298 = vmatpush.msra.mxu0 %v244
    %299 = vmatpush.msra.mxu0 %v47
    %300 = vmatpush.msra.mxu0 %v44
    %301 = vmatpush.msra.mxu0 %v41
    %302 = vmatmul.f32.gmra.mxu0 %v234
    %v303 = vpop.f32.mrf.mxu0
    %v304 = vadd.f32 %v199, %v303
    %305 = vdwg.mxu0
    %306 = vmatpush.msra.mxu0 %v96
    %307 = vmatpush.msra.mxu0 %v93
    %308 = vmatpush.msra.mxu0 %v90
    %309 = vmatpush.msra.mxu0 %v87
    %310 = vmatpush.msra.mxu0 %v84
    %311 = vmatpush.msra.mxu0 %v81
    %312 = vmatpush.msra.mxu0 %v78
    %313 = vmatpush.msra.mxu0 %v75
    %314 = vmatpush.msra.mxu0 %v72
    %315 = vmatpush.msra.mxu0 %v69
    %316 = vmatpush.msra.mxu0 %v66
    %317 = vmatpush.msra.mxu0 %v63
    %318 = vmatpush.msra.mxu0 %v60
    %319 = vmatpush.msra.mxu0 %v57
    %320 = vmatpush.msra.mxu0 %v54
    %321 = vmatpush.msra.mxu0 %v51
    %322 = vmatmul.f32.gmra.mxu0 0.0
    %v323 = vpop.f32.mrf.mxu0
    %v324 = vadd.f32 %v205, %v323
    %325 = vdwg.mxu0
    %326 = vmatpush.msra.mxu0 %v97
    %327 = vmatpush.msra.mxu0 %v94
    %328 = vmatpush.msra.mxu0 %v91
    %329 = vmatpush.msra.mxu0 %v88
    %330 = vmatpush.msra.mxu0 %v85
    %331 = vmatpush.msra.mxu0 %v82
    %332 = vmatpush.msra.mxu0 %v79
    %333 = vmatpush.msra.mxu0 %v76
    %334 = vmatpush.msra.mxu0 %v73
    %335 = vmatpush.msra.mxu0 %v70
    %336 = vmatpush.msra.mxu0 %v67
    %337 = vmatpush.msra.mxu0 %v64
    %338 = vmatpush.msra.mxu0 %v61
    %339 = vmatpush.msra.mxu0 %v58
    %340 = vmatpush.msra.mxu0 %v55
    %341 = vmatpush.msra.mxu0 %v52
    %342 = vmatmul.f32.gmra.mxu0 0.0
    %v343 = vpop.f32.mrf.mxu0
    %v344 = vadd.f32 %v206, %v343
    %345 = vdwg.mxu0
    %346 = vmatpush.msra.mxu0 %v98
    %347 = vmatpush.msra.mxu0 %v95
    %348 = vmatpush.msra.mxu0 %v92
    %349 = vmatpush.msra.mxu0 %v89
    %350 = vmatpush.msra.mxu0 %v86
    %351 = vmatpush.msra.mxu0 %v83
    %352 = vmatpush.msra.mxu0 %v80
    %353 = vmatpush.msra.mxu0 %v77
    %354 = vmatpush.msra.mxu0 %v74
    %355 = vmatpush.msra.mxu0 %v71
    %356 = vmatpush.msra.mxu0 %v68
    %357 = vmatpush.msra.mxu0 %v65
    %358 = vmatpush.msra.mxu0 %v62
    %359 = vmatpush.msra.mxu0 %v59
    %360 = vmatpush.msra.mxu0 %v56
    %361 = vmatpush.msra.mxu0 %v53
    %362 = vmatmul.f32.gmra.mxu0 0.0
    %v363 = vpop.f32.mrf.mxu0
    %v364 = vadd.f32 %v207, %v363
    %365 = vdwg.mxu0
    %v366 = vadd.f32 %v264, %v324
    %v367 = vxor.u32 %v366, 2147483648
    %v368 = vmul.f32 %v367, 1.442695
    %v369 = vpow.pop %v368
    %v370 = vadd.f32 %v369, 1.0
    %v371 = vrcp.pop %v370
    %v372 = vmul.f32 %v370, %v371
    %v373 = vsub.f32 1.0, %v372
    %v374 = vmul.f32 %v371, %v373
    %v375 = vadd.f32 %v371, %v374
    %vm376 = vweird.f32 %v370
    %vm377 = vweird.f32 %v371
    %vm378 = vmor %vm376, %vm377
    %v379 = vsel %vm378, %v371, %v375
    %v380 = vand.u32 2147483647, %v370
    %vm381 = vcmp.eq.f32.partialorder %v380, 8.507059e+37
    %v382 = vand.u32 %v370, 2147483648
    %v383 = vor.u32 1.1754944e-38, %v382
    %v384 = vsel %vm381, %v383, %v379
    %v385 = vmul.f32 1.0, %v384
    %v386 = vadd.f32 %v284, %v344
    %v387 = vxor.u32 %v386, 2147483648
    %v388 = vmul.f32 %v387, 1.442695
    %v389 = vpow.pop %v388
    %v390 = vadd.f32 %v389, 1.0
    %v391 = vrcp.pop %v390
    %v392 = vmul.f32 %v390, %v391
    %v393 = vsub.f32 1.0, %v392
    %v394 = vmul.f32 %v391, %v393
    %v395 = vadd.f32 %v391, %v394
    %vm396 = vweird.f32 %v390
    %vm397 = vweird.f32 %v391
    %vm398 = vmor %vm396, %vm397
    %v399 = vsel %vm398, %v391, %v395
    %v400 = vand.u32 2147483647, %v390
    %vm401 = vcmp.eq.f32.partialorder %v400, 8.507059e+37
    %v402 = vand.u32 %v390, 2147483648
    %v403 = vor.u32 1.1754944e-38, %v402
    %v404 = vsel %vm401, %v403, %v399
    %v405 = vmul.f32 1.0, %v404
    %v406 = vmul.f32 %v385, %v364
    %v407 = vadd.f32 %v304, %v406
    %v408 = vtanh.pop %v407
    %v409 = vsub.f32 1.0, %v405
    %v410 = vmul.f32 %v409, %v408
    %v411 = vmul.f32 %v405, 0.0
    %v412 = vadd.f32 %v410, %v411
    %413 = vmatpush.msra.mxu0 %v144
    %414 = vmatpush.msra.mxu0 %v141
    %415 = vmatpush.msra.mxu0 %v138
    %416 = vmatpush.msra.mxu0 %v135
    %417 = vmatpush.msra.mxu0 %v132
    %418 = vmatpush.msra.mxu0 %v129
    %419 = vmatpush.msra.mxu0 %v126
    %420 = vmatpush.msra.mxu0 %v123
    %421 = vmatpush.msra.mxu0 %v120
    %422 = vmatpush.msra.mxu0 %v117
    %423 = vmatpush.msra.mxu0 %v114
    %424 = vmatpush.msra.mxu0 %v111
    %425 = vmatpush.msra.mxu0 %v108
    %426 = vmatpush.msra.mxu0 %v105
    %427 = vmatpush.msra.mxu0 %v102
    %428 = vmatpush.msra.mxu0 %v99
    %429 = vmatmul.f32.gmra.mxu0 %v412
    %v430 = vpop.f32.mrf.mxu0
    %v431 = vadd.f32 %v213, %v430
    %432 = vdwg.mxu0
    %433 = vmatpush.msra.mxu0 %v145
    %434 = vmatpush.msra.mxu0 %v142
    %435 = vmatpush.msra.mxu0 %v139
    %436 = vmatpush.msra.mxu0 %v136
    %437 = vmatpush.msra.mxu0 %v133
    %438 = vmatpush.msra.mxu0 %v130
    %439 = vmatpush.msra.mxu0 %v127
    %440 = vmatpush.msra.mxu0 %v124
    %441 = vmatpush.msra.mxu0 %v121
    %442 = vmatpush.msra.mxu0 %v118
    %443 = vmatpush.msra.mxu0 %v115
    %444 = vmatpush.msra.mxu0 %v112
    %445 = vmatpush.msra.mxu0 %v109
    %446 = vmatpush.msra.mxu0 %v106
    %447 = vmatpush.msra.mxu0 %v103
    %448 = vmatpush.msra.mxu0 %v100
    %449 = vmatmul.f32.gmra.mxu0 %v412
    %v450 = vpop.f32.mrf.mxu0
    %v451 = vadd.f32 %v214, %v450
    %452 = vdwg.mxu0
    %453 = vmatpush.msra.mxu0 %v146
    %454 = vmatpush.msra.mxu0 %v143
    %455 = vmatpush.msra.mxu0 %v140
    %456 = vmatpush.msra.mxu0 %v137
    %457 = vmatpush.msra.mxu0 %v134
    %458 = vmatpush.msra.mxu0 %v131
    %459 = vmatpush.msra.mxu0 %v128
    %460 = vmatpush.msra.mxu0 %v125
    %461 = vmatpush.msra.mxu0 %v122
    %462 = vmatpush.msra.mxu0 %v119
    %463 = vmatpush.msra.mxu0 %v116
    %464 = vmatpush.msra.mxu0 %v113
    %465 = vmatpush.msra.mxu0 %v110
    %466 = vmatpush.msra.mxu0 %v107
    %467 = vmatpush.msra.mxu0 %v104
    %468 = vmatpush.msra.mxu0 %v101
    %469 = vmatmul.f32.gmra.mxu0 %v412
    %v470 = vpop.f32.mrf.mxu0
    %v471 = vadd.f32 %v215, %v470
    %472 = vdwg.mxu0
    %473 = vmatpush.msra.mxu0 %v192
    %474 = vmatpush.msra.mxu0 %v189
    %475 = vmatpush.msra.mxu0 %v186
    %476 = vmatpush.msra.mxu0 %v183
    %477 = vmatpush.msra.mxu0 %v180
    %478 = vmatpush.msra.mxu0 %v177
    %479 = vmatpush.msra.mxu0 %v174
    %480 = vmatpush.msra.mxu0 %v171
    %481 = vmatpush.msra.mxu0 %v168
    %482 = vmatpush.msra.mxu0 %v165
    %483 = vmatpush.msra.mxu0 %v162
    %484 = vmatpush.msra.mxu0 %v159
    %485 = vmatpush.msra.mxu0 %v156
    %486 = vmatpush.msra.mxu0 %v153
    %487 = vmatpush.msra.mxu0 %v150
    %488 = vmatpush.msra.mxu0 %v147
    %489 = vmatmul.f32.gmra.mxu0 0.0
    %v490 = vpop.f32.mrf.mxu0
    %v491 = vadd.f32 %v221, %v490
    %492 = vdwg.mxu0
    %493 = vmatpush.msra.mxu0 %v193
    %494 = vmatpush.msra.mxu0 %v190
    %495 = vmatpush.msra.mxu0 %v187
    %496 = vmatpush.msra.mxu0 %v184
    %497 = vmatpush.msra.mxu0 %v181
    %498 = vmatpush.msra.mxu0 %v178
    %499 = vmatpush.msra.mxu0 %v175
    %500 = vmatpush.msra.mxu0 %v172
    %501 = vmatpush.msra.mxu0 %v169
    %502 = vmatpush.msra.mxu0 %v166
    %503 = vmatpush.msra.mxu0 %v163
    %504 = vmatpush.msra.mxu0 %v160
    %505 = vmatpush.msra.mxu0 %v157
    %506 = vmatpush.msra.mxu0 %v154
    %507 = vmatpush.msra.mxu0 %v151
    %508 = vmatpush.msra.mxu0 %v148
    %509 = vmatmul.f32.gmra.mxu0 0.0
    %v510 = vpop.f32.mrf.mxu0
    %v511 = vadd.f32 %v222, %v510
    %512 = vdwg.mxu0
    %513 = vmatpush.msra.mxu0 %v194
    %514 = vmatpush.msra.mxu0 %v191
    %515 = vmatpush.msra.mxu0 %v188
    %516 = vmatpush.msra.mxu0 %v185
    %517 = vmatpush.msra.mxu0 %v182
    %518 = vmatpush.msra.mxu0 %v179
    %519 = vmatpush.msra.mxu0 %v176
    %520 = vmatpush.msra.mxu0 %v173
    %521 = vmatpush.msra.mxu0 %v170
    %522 = vmatpush.msra.mxu0 %v167
    %523 = vmatpush.msra.mxu0 %v164
    %524 = vmatpush.msra.mxu0 %v161
    %525 = vmatpush.msra.mxu0 %v158
    %526 = vmatpush.msra.mxu0 %v155
    %527 = vmatpush.msra.mxu0 %v152
    %528 = vmatpush.msra.mxu0 %v149
    %529 = vmatmul.f32.gmra.mxu0 0.0
    %v530 = vpop.f32.mrf.mxu0
    %v531 = vadd.f32 %v223, %v530
    %532 = vdwg.mxu0
    %v533 = vadd.f32 %v431, %v491
    %v534 = vxor.u32 %v533, 2147483648
    %v535 = vmul.f32 %v534, 1.442695
    %v536 = vpow.pop %v535
    %v537 = vadd.f32 %v536, 1.0
    %v538 = vrcp.pop %v537
    %v539 = vmul.f32 %v537, %v538
    %v540 = vsub.f32 1.0, %v539
    %v541 = vmul.f32 %v538, %v540
    %v542 = vadd.f32 %v538, %v541
    %vm543 = vweird.f32 %v537
    %vm544 = vweird.f32 %v538
    %vm545 = vmor %vm543, %vm544
    %v546 = vsel %vm545, %v538, %v542
    %v547 = vand.u32 2147483647, %v537
    %vm548 = vcmp.eq.f32.partialorder %v547, 8.507059e+37
    %v549 = vand.u32 %v537, 2147483648
    %v550 = vor.u32 1.1754944e-38, %v549
    %v551 = vsel %vm548, %v550, %v546
    %v552 = vmul.f32 1.0, %v551
    %v553 = vadd.f32 %v451, %v511
    %v554 = vxor.u32 %v553, 2147483648
    %v555 = vmul.f32 %v554, 1.442695
    %v556 = vpow.pop %v555
    %v557 = vadd.f32 %v556, 1.0
    %v558 = vrcp.pop %v557
    %v559 = vmul.f32 %v557, %v558
    %v560 = vsub.f32 1.0, %v559
    %v561 = vmul.f32 %v558, %v560
    %v562 = vadd.f32 %v558, %v561
    %vm563 = vweird.f32 %v557
    %vm564 = vweird.f32 %v558
    %vm565 = vmor %vm563, %vm564
    %v566 = vsel %vm565, %v558, %v562
    %v567 = vand.u32 2147483647, %v557
    %vm568 = vcmp.eq.f32.partialorder %v567, 8.507059e+37
    %v569 = vand.u32 %v557, 2147483648
    %v570 = vor.u32 1.1754944e-38, %v569
    %v571 = vsel %vm568, %v570, %v566
    %v572 = vmul.f32 1.0, %v571
    %v573 = vmul.f32 %v552, %v531
    %v574 = vadd.f32 %v471, %v573
    %v575 = vtanh.pop %v574
    %v576 = vsub.f32 1.0, %v572
    %v577 = vmul.f32 %v576, %v575
    %v578 = vmul.f32 %v572, 0.0
    %v579 = vadd.f32 %v577, %v578
    %v580 = vld [vmem:[%s9] sm:$0xff]
    %v581 = vld [vmem:[%s9 + $0x8] sm:$0xff]
    %v582 = vld [vmem:[%s9 + $0x10] sm:$0xff]
    %v583 = vld [vmem:[%s9 + $0x18] sm:$0xff]
    %v584 = vld [vmem:[%s9 + $0x20] sm:$0xff]
    %v585 = vld [vmem:[%s9 + $0x28] sm:$0xff]
    %v586 = vld [vmem:[%s9 + $0x30] sm:$0xff]
    %v587 = vld [vmem:[%s9 + $0x38] sm:$0xff]
    %v588 = vld [vmem:[%s9 + $0x40] sm:$0xff]
    %v589 = vld [vmem:[%s9 + $0x48] sm:$0xff]
    %v590 = vld [vmem:[%s9 + $0x50] sm:$0xff]
    %v591 = vld [vmem:[%s9 + $0x58] sm:$0xff]
    %v592 = vld [vmem:[%s9 + $0x60] sm:$0xff]
    %v593 = vld [vmem:[%s9 + $0x68] sm:$0xff]
    %v594 = vld [vmem:[%s9 + $0x70] sm:$0xff]
    %v595 = vld [vmem:[%s9 + $0x78] sm:$0xff]
    %596 = vmatpush.msra.mxu0 %v595
    %597 = vmatpush.msra.mxu0 %v594
    %598 = vmatpush.msra.mxu0 %v593
    %599 = vmatpush.msra.mxu0 %v592
    %600 = vmatpush.msra.mxu0 %v591
    %601 = vmatpush.msra.mxu0 %v590
    %602 = vmatpush.msra.mxu0 %v589
    %603 = vmatpush.msra.mxu0 %v588
    %604 = vmatpush.msra.mxu0 %v587
    %605 = vmatpush.msra.mxu0 %v586
    %606 = vmatpush.msra.mxu0 %v585
    %607 = vmatpush.msra.mxu0 %v584
    %608 = vmatpush.msra.mxu0 %v583
    %609 = vmatpush.msra.mxu0 %v582
    %610 = vmatpush.msra.mxu0 %v581
    %611 = vmatpush.msra.mxu0 %v580
    %612 = vmatmul.f32.gmra.mxu0 %v579
    %v613 = vpop.f32.mrf.mxu0
    %v614 = vadd.f32 0.0, %v613
    %615 = vdwg.mxu0
    %v616 = vadd.f32 %v229, %v614
    %s617 = scalar_lea.vmem %s0, 8
    %v618 = vld [vmem:[%s617] sm:$0xff]
    %v620 = vsel %vm232, %v618, 0
    %622 = vmatpush.msra.mxu0 0.0
    %623 = vmatpush.msra.mxu0 0.0
    %624 = vmatpush.msra.mxu0 0.0
    %625 = vmatpush.msra.mxu0 0.0
    %626 = vmatpush.msra.mxu0 0.0
    %627 = vmatpush.msra.mxu0 0.0
    %628 = vmatpush.msra.mxu0 0.0
    %629 = vmatpush.msra.mxu0 0.0
    %630 = vmatpush.msra.mxu0 0.0
    %631 = vmatpush.msra.mxu0 0.0
    %632 = vmatpush.msra.mxu0 0.0
    %633 = vmatpush.msra.mxu0 0.0
    %634 = vmatpush.msra.mxu0 %v238
    %635 = vmatpush.msra.mxu0 %v45
    %636 = vmatpush.msra.mxu0 %v42
    %637 = vmatpush.msra.mxu0 %v39
    %638 = vmatmul.f32.gmra.mxu0 %v620
    %v639 = vpop.f32.mrf.mxu0
    %v640 = vadd.f32 %v197, %v639
    %641 = vdwg.mxu0
    %642 = vmatpush.msra.mxu0 0.0
    %643 = vmatpush.msra.mxu0 0.0
    %644 = vmatpush.msra.mxu0 0.0
    %645 = vmatpush.msra.mxu0 0.0
    %646 = vmatpush.msra.mxu0 0.0
    %647 = vmatpush.msra.mxu0 0.0
    %648 = vmatpush.msra.mxu0 0.0
    %649 = vmatpush.msra.mxu0 0.0
    %650 = vmatpush.msra.mxu0 0.0
    %651 = vmatpush.msra.mxu0 0.0
    %652 = vmatpush.msra.mxu0 0.0
    %653 = vmatpush.msra.mxu0 0.0
    %654 = vmatpush.msra.mxu0 %v241
    %655 = vmatpush.msra.mxu0 %v46
    %656 = vmatpush.msra.mxu0 %v43
    %657 = vmatpush.msra.mxu0 %v40
    %658 = vmatmul.f32.gmra.mxu0 %v620
    %v659 = vpop.f32.mrf.mxu0
    %v660 = vadd.f32 %v198, %v659
    %661 = vdwg.mxu0
    %662 = vmatpush.msra.mxu0 0.0
    %663 = vmatpush.msra.mxu0 0.0
    %664 = vmatpush.msra.mxu0 0.0
    %665 = vmatpush.msra.mxu0 0.0
    %666 = vmatpush.msra.mxu0 0.0
    %667 = vmatpush.msra.mxu0 0.0
    %668 = vmatpush.msra.mxu0 0.0
    %669 = vmatpush.msra.mxu0 0.0
    %670 = vmatpush.msra.mxu0 0.0
    %671 = vmatpush.msra.mxu0 0.0
    %672 = vmatpush.msra.mxu0 0.0
    %673 = vmatpush.msra.mxu0 0.0
    %674 = vmatpush.msra.mxu0 %v244
    %675 = vmatpush.msra.mxu0 %v47
    %676 = vmatpush.msra.mxu0 %v44
    %677 = vmatpush.msra.mxu0 %v41
    %678 = vmatmul.f32.gmra.mxu0 %v620
    %v679 = vpop.f32.mrf.mxu0
    %v680 = vadd.f32 %v199, %v679
    %681 = vdwg.mxu0
    %682 = vmatpush.msra.mxu0 %v96
    %683 = vmatpush.msra.mxu0 %v93
    %684 = vmatpush.msra.mxu0 %v90
    %685 = vmatpush.msra.mxu0 %v87
    %686 = vmatpush.msra.mxu0 %v84
    %687 = vmatpush.msra.mxu0 %v81
    %688 = vmatpush.msra.mxu0 %v78
    %689 = vmatpush.msra.mxu0 %v75
    %690 = vmatpush.msra.mxu0 %v72
    %691 = vmatpush.msra.mxu0 %v69
    %692 = vmatpush.msra.mxu0 %v66
    %693 = vmatpush.msra.mxu0 %v63
    %694 = vmatpush.msra.mxu0 %v60
    %695 = vmatpush.msra.mxu0 %v57
    %696 = vmatpush.msra.mxu0 %v54
    %697 = vmatpush.msra.mxu0 %v51
    %698 = vmatmul.f32.gmra.mxu0 %v412
    %v699 = vpop.f32.mrf.mxu0
    %v700 = vadd.f32 %v205, %v699
    %701 = vdwg.mxu0
    %702 = vmatpush.msra.mxu0 %v97
    %703 = vmatpush.msra.mxu0 %v94
    %704 = vmatpush.msra.mxu0 %v91
    %705 = vmatpush.msra.mxu0 %v88
    %706 = vmatpush.msra.mxu0 %v85
    %707 = vmatpush.msra.mxu0 %v82
    %708 = vmatpush.msra.mxu0 %v79
    %709 = vmatpush.msra.mxu0 %v76
    %710 = vmatpush.msra.mxu0 %v73
    %711 = vmatpush.msra.mxu0 %v70
    %712 = vmatpush.msra.mxu0 %v67
    %713 = vmatpush.msra.mxu0 %v64
    %714 = vmatpush.msra.mxu0 %v61
    %715 = vmatpush.msra.mxu0 %v58
    %716 = vmatpush.msra.mxu0 %v55
    %717 = vmatpush.msra.mxu0 %v52
    %718 = vmatmul.f32.gmra.mxu0 %v412
    %v719 = vpop.f32.mrf.mxu0
    %v720 = vadd.f32 %v206, %v719
    %721 = vdwg.mxu0
    %722 = vmatpush.msra.mxu0 %v98
    %723 = vmatpush.msra.mxu0 %v95
    %724 = vmatpush.msra.mxu0 %v92
    %725 = vmatpush.msra.mxu0 %v89
    %726 = vmatpush.msra.mxu0 %v86
    %727 = vmatpush.msra.mxu0 %v83
    %728 = vmatpush.msra.mxu0 %v80
    %729 = vmatpush.msra.mxu0 %v77
    %730 = vmatpush.msra.mxu0 %v74
    %731 = vmatpush.msra.mxu0 %v71
    %732 = vmatpush.msra.mxu0 %v68
    %733 = vmatpush.msra.mxu0 %v65
    %734 = vmatpush.msra.mxu0 %v62
    %735 = vmatpush.msra.mxu0 %v59
    %736 = vmatpush.msra.mxu0 %v56
    %737 = vmatpush.msra.mxu0 %v53
    %738 = vmatmul.f32.gmra.mxu0 %v412
    %v739 = vpop.f32.mrf.mxu0
    %v740 = vadd.f32 %v207, %v739
    %741 = vdwg.mxu0
    %v742 = vadd.f32 %v640, %v700
    %v743 = vxor.u32 %v742, 2147483648
    %v744 = vmul.f32 %v743, 1.442695
    %v745 = vpow.pop %v744
    %v746 = vadd.f32 %v745, 1.0
    %v747 = vrcp.pop %v746
    %v748 = vmul.f32 %v746, %v747
    %v749 = vsub.f32 1.0, %v748
    %v750 = vmul.f32 %v747, %v749
    %v751 = vadd.f32 %v747, %v750
    %vm752 = vweird.f32 %v746
    %vm753 = vweird.f32 %v747
    %vm754 = vmor %vm752, %vm753
    %v755 = vsel %vm754, %v747, %v751
    %v756 = vand.u32 2147483647, %v746
    %vm757 = vcmp.eq.f32.partialorder %v756, 8.507059e+37
    %v758 = vand.u32 %v746, 2147483648
    %v759 = vor.u32 1.1754944e-38, %v758
    %v760 = vsel %vm757, %v759, %v755
    %v761 = vmul.f32 1.0, %v760
    %v762 = vadd.f32 %v660, %v720
    %v763 = vxor.u32 %v762, 2147483648
    %v764 = vmul.f32 %v763, 1.442695
    %v765 = vpow.pop %v764
    %v766 = vadd.f32 %v765, 1.0
    %v767 = vrcp.pop %v766
    %v768 = vmul.f32 %v766, %v767
    %v769 = vsub.f32 1.0, %v768
    %v770 = vmul.f32 %v767, %v769
    %v771 = vadd.f32 %v767, %v770
    %vm772 = vweird.f32 %v766
    %vm773 = vweird.f32 %v767
    %vm774 = vmor %vm772, %vm773
    %v775 = vsel %vm774, %v767, %v771
    %v776 = vand.u32 2147483647, %v766
    %vm777 = vcmp.eq.f32.partialorder %v776, 8.507059e+37
    %v778 = vand.u32 %v766, 2147483648
    %v779 = vor.u32 1.1754944e-38, %v778
    %v780 = vsel %vm777, %v779, %v775
    %v781 = vmul.f32 1.0, %v780
    %v782 = vmul.f32 %v761, %v740
    %v783 = vadd.f32 %v680, %v782
    %v784 = vtanh.pop %v783
    %v785 = vsub.f32 1.0, %v781
    %v786 = vmul.f32 %v785, %v784
    %v787 = vmul.f32 %v781, %v412
    %v788 = vadd.f32 %v786, %v787
    %789 = vmatpush.msra.mxu0 %v144
    %790 = vmatpush.msra.mxu0 %v141
    %791 = vmatpush.msra.mxu0 %v138
    %792 = vmatpush.msra.mxu0 %v135
    %793 = vmatpush.msra.mxu0 %v132
    %794 = vmatpush.msra.mxu0 %v129
    %795 = vmatpush.msra.mxu0 %v126
    %796 = vmatpush.msra.mxu0 %v123
    %797 = vmatpush.msra.mxu0 %v120
    %798 = vmatpush.msra.mxu0 %v117
    %799 = vmatpush.msra.mxu0 %v114
    %800 = vmatpush.msra.mxu0 %v111
    %801 = vmatpush.msra.mxu0 %v108
    %802 = vmatpush.msra.mxu0 %v105
    %803 = vmatpush.msra.mxu0 %v102
    %804 = vmatpush.msra.mxu0 %v99
    %805 = vmatmul.f32.gmra.mxu0 %v788
    %v806 = vpop.f32.mrf.mxu0
    %v807 = vadd.f32 %v213, %v806
    %808 = vdwg.mxu0
    %809 = vmatpush.msra.mxu0 %v145
    %810 = vmatpush.msra.mxu0 %v142
    %811 = vmatpush.msra.mxu0 %v139
    %812 = vmatpush.msra.mxu0 %v136
    %813 = vmatpush.msra.mxu0 %v133
    %814 = vmatpush.msra.mxu0 %v130
    %815 = vmatpush.msra.mxu0 %v127
    %816 = vmatpush.msra.mxu0 %v124
    %817 = vmatpush.msra.mxu0 %v121
    %818 = vmatpush.msra.mxu0 %v118
    %819 = vmatpush.msra.mxu0 %v115
    %820 = vmatpush.msra.mxu0 %v112
    %821 = vmatpush.msra.mxu0 %v109
    %822 = vmatpush.msra.mxu0 %v106
    %823 = vmatpush.msra.mxu0 %v103
    %824 = vmatpush.msra.mxu0 %v100
    %825 = vmatmul.f32.gmra.mxu0 %v788
    %v826 = vpop.f32.mrf.mxu0
    %v827 = vadd.f32 %v214, %v826
    %828 = vdwg.mxu0
    %829 = vmatpush.msra.mxu0 %v146
    %830 = vmatpush.msra.mxu0 %v143
    %831 = vmatpush.msra.mxu0 %v140
    %832 = vmatpush.msra.mxu0 %v137
    %833 = vmatpush.msra.mxu0 %v134
    %834 = vmatpush.msra.mxu0 %v131
    %835 = vmatpush.msra.mxu0 %v128
    %836 = vmatpush.msra.mxu0 %v125
    %837 = vmatpush.msra.mxu0 %v122
    %838 = vmatpush.msra.mxu0 %v119
    %839 = vmatpush.msra.mxu0 %v116
    %840 = vmatpush.msra.mxu0 %v113
    %841 = vmatpush.msra.mxu0 %v110
    %842 = vmatpush.msra.mxu0 %v107
    %843 = vmatpush.msra.mxu0 %v104
    %844 = vmatpush.msra.mxu0 %v101
    %845 = vmatmul.f32.gmra.mxu0 %v788
    %v846 = vpop.f32.mrf.mxu0
    %v847 = vadd.f32 %v215, %v846
    %848 = vdwg.mxu0
    %849 = vmatpush.msra.mxu0 %v192
    %850 = vmatpush.msra.mxu0 %v189
    %851 = vmatpush.msra.mxu0 %v186
    %852 = vmatpush.msra.mxu0 %v183
    %853 = vmatpush.msra.mxu0 %v180
    %854 = vmatpush.msra.mxu0 %v177
    %855 = vmatpush.msra.mxu0 %v174
    %856 = vmatpush.msra.mxu0 %v171
    %857 = vmatpush.msra.mxu0 %v168
    %858 = vmatpush.msra.mxu0 %v165
    %859 = vmatpush.msra.mxu0 %v162
    %860 = vmatpush.msra.mxu0 %v159
    %861 = vmatpush.msra.mxu0 %v156
    %862 = vmatpush.msra.mxu0 %v153
    %863 = vmatpush.msra.mxu0 %v150
    %864 = vmatpush.msra.mxu0 %v147
    %865 = vmatmul.f32.gmra.mxu0 %v579
    %v866 = vpop.f32.mrf.mxu0
    %v867 = vadd.f32 %v221, %v866
    %868 = vdwg.mxu0
    %869 = vmatpush.msra.mxu0 %v193
    %870 = vmatpush.msra.mxu0 %v190
    %871 = vmatpush.msra.mxu0 %v187
    %872 = vmatpush.msra.mxu0 %v184
    %873 = vmatpush.msra.mxu0 %v181
    %874 = vmatpush.msra.mxu0 %v178
    %875 = vmatpush.msra.mxu0 %v175
    %876 = vmatpush.msra.mxu0 %v172
    %877 = vmatpush.msra.mxu0 %v169
    %878 = vmatpush.msra.mxu0 %v166
    %879 = vmatpush.msra.mxu0 %v163
    %880 = vmatpush.msra.mxu0 %v160
    %881 = vmatpush.msra.mxu0 %v157
    %882 = vmatpush.msra.mxu0 %v154
    %883 = vmatpush.msra.mxu0 %v151
    %884 = vmatpush.msra.mxu0 %v148
    %885 = vmatmul.f32.gmra.mxu0 %v579
    %v886 = vpop.f32.mrf.mxu0
    %v887 = vadd.f32 %v222, %v886
    %888 = vdwg.mxu0
    %889 = vmatpush.msra.mxu0 %v194
    %890 = vmatpush.msra.mxu0 %v191
    %891 = vmatpush.msra.mxu0 %v188
    %892 = vmatpush.msra.mxu0 %v185
    %893 = vmatpush.msra.mxu0 %v182
    %894 = vmatpush.msra.mxu0 %v179
    %895 = vmatpush.msra.mxu0 %v176
    %896 = vmatpush.msra.mxu0 %v173
    %897 = vmatpush.msra.mxu0 %v170
    %898 = vmatpush.msra.mxu0 %v167
    %899 = vmatpush.msra.mxu0 %v164
    %900 = vmatpush.msra.mxu0 %v161
    %901 = vmatpush.msra.mxu0 %v158
    %902 = vmatpush.msra.mxu0 %v155
    %903 = vmatpush.msra.mxu0 %v152
    %904 = vmatpush.msra.mxu0 %v149
    %905 = vmatmul.f32.gmra.mxu0 %v579
    %v906 = vpop.f32.mrf.mxu0
    %v907 = vadd.f32 %v223, %v906
    %908 = vdwg.mxu0
    %v909 = vadd.f32 %v807, %v867
    %v910 = vxor.u32 %v909, 2147483648
    %v911 = vmul.f32 %v910, 1.442695
    %v912 = vpow.pop %v911
    %v913 = vadd.f32 %v912, 1.0
    %v914 = vrcp.pop %v913
    %v915 = vmul.f32 %v913, %v914
    %v916 = vsub.f32 1.0, %v915
    %v917 = vmul.f32 %v914, %v916
    %v918 = vadd.f32 %v914, %v917
    %vm919 = vweird.f32 %v913
    %vm920 = vweird.f32 %v914
    %vm921 = vmor %vm919, %vm920
    %v922 = vsel %vm921, %v914, %v918
    %v923 = vand.u32 2147483647, %v913
    %vm924 = vcmp.eq.f32.partialorder %v923, 8.507059e+37
    %v925 = vand.u32 %v913, 2147483648
    %v926 = vor.u32 1.1754944e-38, %v925
    %v927 = vsel %vm924, %v926, %v922
    %v928 = vmul.f32 1.0, %v927
    %v929 = vadd.f32 %v827, %v887
    %v930 = vxor.u32 %v929, 2147483648
    %v931 = vmul.f32 %v930, 1.442695
    %v932 = vpow.pop %v931
    %v933 = vadd.f32 %v932, 1.0
    %v934 = vrcp.pop %v933
    %v935 = vmul.f32 %v933, %v934
    %v936 = vsub.f32 1.0, %v935
    %v937 = vmul.f32 %v934, %v936
    %v938 = vadd.f32 %v934, %v937
    %vm939 = vweird.f32 %v933
    %vm940 = vweird.f32 %v934
    %vm941 = vmor %vm939, %vm940
    %v942 = vsel %vm941, %v934, %v938
    %v943 = vand.u32 2147483647, %v933
    %vm944 = vcmp.eq.f32.partialorder %v943, 8.507059e+37
    %v945 = vand.u32 %v933, 2147483648
    %v946 = vor.u32 1.1754944e-38, %v945
    %v947 = vsel %vm944, %v946, %v942
    %v948 = vmul.f32 1.0, %v947
    %v949 = vmul.f32 %v928, %v907
    %v950 = vadd.f32 %v847, %v949
    %v951 = vtanh.pop %v950
    %v952 = vsub.f32 1.0, %v948
    %v953 = vmul.f32 %v952, %v951
    %v954 = vmul.f32 %v948, %v579
    %v955 = vadd.f32 %v953, %v954
    %s956 = scalar_lea.vmem %s9, 128
    %v957 = vld [vmem:[%s956] sm:$0xff]
    %v958 = vld [vmem:[%s956 + $0x8] sm:$0xff]
    %v959 = vld [vmem:[%s956 + $0x10] sm:$0xff]
    %v960 = vld [vmem:[%s956 + $0x18] sm:$0xff]
    %v961 = vld [vmem:[%s956 + $0x20] sm:$0xff]
    %v962 = vld [vmem:[%s956 + $0x28] sm:$0xff]
    %v963 = vld [vmem:[%s956 + $0x30] sm:$0xff]
    %v964 = vld [vmem:[%s956 + $0x38] sm:$0xff]
    %v965 = vld [vmem:[%s956 + $0x40] sm:$0xff]
    %v966 = vld [vmem:[%s956 + $0x48] sm:$0xff]
    %v967 = vld [vmem:[%s956 + $0x50] sm:$0xff]
    %v968 = vld [vmem:[%s956 + $0x58] sm:$0xff]
    %v969 = vld [vmem:[%s956 + $0x60] sm:$0xff]
    %v970 = vld [vmem:[%s956 + $0x68] sm:$0xff]
    %v971 = vld [vmem:[%s956 + $0x70] sm:$0xff]
    %v972 = vld [vmem:[%s956 + $0x78] sm:$0xff]
    %973 = vmatpush.msra.mxu0 %v972
    %974 = vmatpush.msra.mxu0 %v971
    %975 = vmatpush.msra.mxu0 %v970
    %976 = vmatpush.msra.mxu0 %v969
    %977 = vmatpush.msra.mxu0 %v968
    %978 = vmatpush.msra.mxu0 %v967
    %979 = vmatpush.msra.mxu0 %v966
    %980 = vmatpush.msra.mxu0 %v965
    %981 = vmatpush.msra.mxu0 %v964
    %982 = vmatpush.msra.mxu0 %v963
    %983 = vmatpush.msra.mxu0 %v962
    %984 = vmatpush.msra.mxu0 %v961
    %985 = vmatpush.msra.mxu0 %v960
    %986 = vmatpush.msra.mxu0 %v959
    %987 = vmatpush.msra.mxu0 %v958
    %988 = vmatpush.msra.mxu0 %v957
    %989 = vmatmul.f32.gmra.mxu0 %v955
    %v990 = vpop.f32.mrf.mxu0
    %v991 = vadd.f32 0.0, %v990
    %992 = vdwg.mxu0
    %v993 = vadd.f32 %v616, %v991
    %s994 = scalar_lea.vmem %s0, 16
    %v995 = vld [vmem:[%s994] sm:$0xff]
    %v997 = vsel %vm232, %v995, 0
    %999 = vmatpush.msra.mxu0 0.0
    %1000 = vmatpush.msra.mxu0 0.0
    %1001 = vmatpush.msra.mxu0 0.0
    %1002 = vmatpush.msra.mxu0 0.0
    %1003 = vmatpush.msra.mxu0 0.0
    %1004 = vmatpush.msra.mxu0 0.0
    %1005 = vmatpush.msra.mxu0 0.0
    %1006 = vmatpush.msra.mxu0 0.0
    %1007 = vmatpush.msra.mxu0 0.0
    %1008 = vmatpush.msra.mxu0 0.0
    %1009 = vmatpush.msra.mxu0 0.0
    %1010 = vmatpush.msra.mxu0 0.0
    %1011 = vmatpush.msra.mxu0 %v238
    %1012 = vmatpush.msra.mxu0 %v45
    %1013 = vmatpush.msra.mxu0 %v42
    %1014 = vmatpush.msra.mxu0 %v39
    %1015 = vmatmul.f32.gmra.mxu0 %v997
    %v1016 = vpop.f32.mrf.mxu0
    %v1017 = vadd.f32 %v197, %v1016
    %1018 = vdwg.mxu0
    %1019 = vmatpush.msra.mxu0 0.0
    %1020 = vmatpush.msra.mxu0 0.0
    %1021 = vmatpush.msra.mxu0 0.0
    %1022 = vmatpush.msra.mxu0 0.0
    %1023 = vmatpush.msra.mxu0 0.0
    %1024 = vmatpush.msra.mxu0 0.0
    %1025 = vmatpush.msra.mxu0 0.0
    %1026 = vmatpush.msra.mxu0 0.0
    %1027 = vmatpush.msra.mxu0 0.0
    %1028 = vmatpush.msra.mxu0 0.0
    %1029 = vmatpush.msra.mxu0 0.0
    %1030 = vmatpush.msra.mxu0 0.0
    %1031 = vmatpush.msra.mxu0 %v241
    %1032 = vmatpush.msra.mxu0 %v46
    %1033 = vmatpush.msra.mxu0 %v43
    %1034 = vmatpush.msra.mxu0 %v40
    %1035 = vmatmul.f32.gmra.mxu0 %v997
    %v1036 = vpop.f32.mrf.mxu0
    %v1037 = vadd.f32 %v198, %v1036
    %1038 = vdwg.mxu0
    %1039 = vmatpush.msra.mxu0 0.0
    %1040 = vmatpush.msra.mxu0 0.0
    %1041 = vmatpush.msra.mxu0 0.0
    %1042 = vmatpush.msra.mxu0 0.0
    %1043 = vmatpush.msra.mxu0 0.0
    %1044 = vmatpush.msra.mxu0 0.0
    %1045 = vmatpush.msra.mxu0 0.0
    %1046 = vmatpush.msra.mxu0 0.0
    %1047 = vmatpush.msra.mxu0 0.0
    %1048 = vmatpush.msra.mxu0 0.0
    %1049 = vmatpush.msra.mxu0 0.0
    %1050 = vmatpush.msra.mxu0 0.0
    %1051 = vmatpush.msra.mxu0 %v244
    %1052 = vmatpush.msra.mxu0 %v47
    %1053 = vmatpush.msra.mxu0 %v44
    %1054 = vmatpush.msra.mxu0 %v41
    %1055 = vmatmul.f32.gmra.mxu0 %v997
    %v1056 = vpop.f32.mrf.mxu0
    %v1057 = vadd.f32 %v199, %v1056
    %1058 = vdwg.mxu0
    %1059 = vmatpush.msra.mxu0 %v96
    %1060 = vmatpush.msra.mxu0 %v93
    %1061 = vmatpush.msra.mxu0 %v90
    %1062 = vmatpush.msra.mxu0 %v87
    %1063 = vmatpush.msra.mxu0 %v84
    %1064 = vmatpush.msra.mxu0 %v81
    %1065 = vmatpush.msra.mxu0 %v78
    %1066 = vmatpush.msra.mxu0 %v75
    %1067 = vmatpush.msra.mxu0 %v72
    %1068 = vmatpush.msra.mxu0 %v69
    %1069 = vmatpush.msra.mxu0 %v66
    %1070 = vmatpush.msra.mxu0 %v63
    %1071 = vmatpush.msra.mxu0 %v60
    %1072 = vmatpush.msra.mxu0 %v57
    %1073 = vmatpush.msra.mxu0 %v54
    %1074 = vmatpush.msra.mxu0 %v51
    %1075 = vmatmul.f32.gmra.mxu0 %v788
    %v1076 = vpop.f32.mrf.mxu0
    %v1077 = vadd.f32 %v205, %v1076
    %1078 = vdwg.mxu0
    %1079 = vmatpush.msra.mxu0 %v97
    %1080 = vmatpush.msra.mxu0 %v94
    %1081 = vmatpush.msra.mxu0 %v91
    %1082 = vmatpush.msra.mxu0 %v88
    %1083 = vmatpush.msra.mxu0 %v85
    %1084 = vmatpush.msra.mxu0 %v82
    %1085 = vmatpush.msra.mxu0 %v79
    %1086 = vmatpush.msra.mxu0 %v76
    %1087 = vmatpush.msra.mxu0 %v73
    %1088 = vmatpush.msra.mxu0 %v70
    %1089 = vmatpush.msra.mxu0 %v67
    %1090 = vmatpush.msra.mxu0 %v64
    %1091 = vmatpush.msra.mxu0 %v61
    %1092 = vmatpush.msra.mxu0 %v58
    %1093 = vmatpush.msra.mxu0 %v55
    %1094 = vmatpush.msra.mxu0 %v52
    %1095 = vmatmul.f32.gmra.mxu0 %v788
    %v1096 = vpop.f32.mrf.mxu0
    %v1097 = vadd.f32 %v206, %v1096
    %1098 = vdwg.mxu0
    %1099 = vmatpush.msra.mxu0 %v98
    %1100 = vmatpush.msra.mxu0 %v95
    %1101 = vmatpush.msra.mxu0 %v92
    %1102 = vmatpush.msra.mxu0 %v89
    %1103 = vmatpush.msra.mxu0 %v86
    %1104 = vmatpush.msra.mxu0 %v83
    %1105 = vmatpush.msra.mxu0 %v80
    %1106 = vmatpush.msra.mxu0 %v77
    %1107 = vmatpush.msra.mxu0 %v74
    %1108 = vmatpush.msra.mxu0 %v71
    %1109 = vmatpush.msra.mxu0 %v68
    %1110 = vmatpush.msra.mxu0 %v65
    %1111 = vmatpush.msra.mxu0 %v62
    %1112 = vmatpush.msra.mxu0 %v59
    %1113 = vmatpush.msra.mxu0 %v56
    %1114 = vmatpush.msra.mxu0 %v53
    %1115 = vmatmul.f32.gmra.mxu0 %v788
    %v1116 = vpop.f32.mrf.mxu0
    %v1117 = vadd.f32 %v207, %v1116
    %1118 = vdwg.mxu0
    %v1119 = vadd.f32 %v1017, %v1077
    %v1120 = vxor.u32 %v1119, 2147483648
    %v1121 = vmul.f32 %v1120, 1.442695
    %v1122 = vpow.pop %v1121
    %v1123 = vadd.f32 %v1122, 1.0
    %v1124 = vrcp.pop %v1123
    %v1125 = vmul.f32 %v1123, %v1124
    %v1126 = vsub.f32 1.0, %v1125
    %v1127 = vmul.f32 %v1124, %v1126
    %v1128 = vadd.f32 %v1124, %v1127
    %vm1129 = vweird.f32 %v1123
    %vm1130 = vweird.f32 %v1124
    %vm1131 = vmor %vm1129, %vm1130
    %v1132 = vsel %vm1131, %v1124, %v1128
    %v1133 = vand.u32 2147483647, %v1123
    %vm1134 = vcmp.eq.f32.partialorder %v1133, 8.507059e+37
    %v1135 = vand.u32 %v1123, 2147483648
    %v1136 = vor.u32 1.1754944e-38, %v1135
    %v1137 = vsel %vm1134, %v1136, %v1132
    %v1138 = vmul.f32 1.0, %v1137
    %v1139 = vadd.f32 %v1037, %v1097
    %v1140 = vxor.u32 %v1139, 2147483648
    %v1141 = vmul.f32 %v1140, 1.442695
    %v1142 = vpow.pop %v1141
    %v1143 = vadd.f32 %v1142, 1.0
    %v1144 = vrcp.pop %v1143
    %v1145 = vmul.f32 %v1143, %v1144
    %v1146 = vsub.f32 1.0, %v1145
    %v1147 = vmul.f32 %v1144, %v1146
    %v1148 = vadd.f32 %v1144, %v1147
    %vm1149 = vweird.f32 %v1143
    %vm1150 = vweird.f32 %v1144
    %vm1151 = vmor %vm1149, %vm1150
    %v1152 = vsel %vm1151, %v1144, %v1148
    %v1153 = vand.u32 2147483647, %v1143
    %vm1154 = vcmp.eq.f32.partialorder %v1153, 8.507059e+37
    %v1155 = vand.u32 %v1143, 2147483648
    %v1156 = vor.u32 1.1754944e-38, %v1155
    %v1157 = vsel %vm1154, %v1156, %v1152
    %v1158 = vmul.f32 1.0, %v1157
    %v1159 = vmul.f32 %v1138, %v1117
    %v1160 = vadd.f32 %v1057, %v1159
    %v1161 = vtanh.pop %v1160
    %v1162 = vsub.f32 1.0, %v1158
    %v1163 = vmul.f32 %v1162, %v1161
    %v1164 = vmul.f32 %v1158, %v788
    %v1165 = vadd.f32 %v1163, %v1164
    %1166 = vmatpush.msra.mxu0 %v144
    %1167 = vmatpush.msra.mxu0 %v141
    %1168 = vmatpush.msra.mxu0 %v138
    %1169 = vmatpush.msra.mxu0 %v135
    %1170 = vmatpush.msra.mxu0 %v132
    %1171 = vmatpush.msra.mxu0 %v129
    %1172 = vmatpush.msra.mxu0 %v126
    %1173 = vmatpush.msra.mxu0 %v123
    %1174 = vmatpush.msra.mxu0 %v120
    %1175 = vmatpush.msra.mxu0 %v117
    %1176 = vmatpush.msra.mxu0 %v114
    %1177 = vmatpush.msra.mxu0 %v111
    %1178 = vmatpush.msra.mxu0 %v108
    %1179 = vmatpush.msra.mxu0 %v105
    %1180 = vmatpush.msra.mxu0 %v102
    %1181 = vmatpush.msra.mxu0 %v99
    %1182 = vmatmul.f32.gmra.mxu0 %v1165
    %v1183 = vpop.f32.mrf.mxu0
    %v1184 = vadd.f32 %v213, %v1183
    %1185 = vdwg.mxu0
    %1186 = vmatpush.msra.mxu0 %v145
    %1187 = vmatpush.msra.mxu0 %v142
    %1188 = vmatpush.msra.mxu0 %v139
    %1189 = vmatpush.msra.mxu0 %v136
    %1190 = vmatpush.msra.mxu0 %v133
    %1191 = vmatpush.msra.mxu0 %v130
    %1192 = vmatpush.msra.mxu0 %v127
    %1193 = vmatpush.msra.mxu0 %v124
    %1194 = vmatpush.msra.mxu0 %v121
    %1195 = vmatpush.msra.mxu0 %v118
    %1196 = vmatpush.msra.mxu0 %v115
    %1197 = vmatpush.msra.mxu0 %v112
    %1198 = vmatpush.msra.mxu0 %v109
    %1199 = vmatpush.msra.mxu0 %v106
    %1200 = vmatpush.msra.mxu0 %v103
    %1201 = vmatpush.msra.mxu0 %v100
    %1202 = vmatmul.f32.gmra.mxu0 %v1165
    %v1203 = vpop.f32.mrf.mxu0
    %v1204 = vadd.f32 %v214, %v1203
    %1205 = vdwg.mxu0
    %1206 = vmatpush.msra.mxu0 %v146
    %1207 = vmatpush.msra.mxu0 %v143
    %1208 = vmatpush.msra.mxu0 %v140
    %1209 = vmatpush.msra.mxu0 %v137
    %1210 = vmatpush.msra.mxu0 %v134
    %1211 = vmatpush.msra.mxu0 %v131
    %1212 = vmatpush.msra.mxu0 %v128
    %1213 = vmatpush.msra.mxu0 %v125
    %1214 = vmatpush.msra.mxu0 %v122
    %1215 = vmatpush.msra.mxu0 %v119
    %1216 = vmatpush.msra.mxu0 %v116
    %1217 = vmatpush.msra.mxu0 %v113
    %1218 = vmatpush.msra.mxu0 %v110
    %1219 = vmatpush.msra.mxu0 %v107
    %1220 = vmatpush.msra.mxu0 %v104
    %1221 = vmatpush.msra.mxu0 %v101
    %1222 = vmatmul.f32.gmra.mxu0 %v1165
    %v1223 = vpop.f32.mrf.mxu0
    %v1224 = vadd.f32 %v215, %v1223
    %1225 = vdwg.mxu0
    %1226 = vmatpush.msra.mxu0 %v192
    %1227 = vmatpush.msra.mxu0 %v189
    %1228 = vmatpush.msra.mxu0 %v186
    %1229 = vmatpush.msra.mxu0 %v183
    %1230 = vmatpush.msra.mxu0 %v180
    %1231 = vmatpush.msra.mxu0 %v177
    %1232 = vmatpush.msra.mxu0 %v174
    %1233 = vmatpush.msra.mxu0 %v171
    %1234 = vmatpush.msra.mxu0 %v168
    %1235 = vmatpush.msra.mxu0 %v165
    %1236 = vmatpush.msra.mxu0 %v162
    %1237 = vmatpush.msra.mxu0 %v159
    %1238 = vmatpush.msra.mxu0 %v156
    %1239 = vmatpush.msra.mxu0 %v153
    %1240 = vmatpush.msra.mxu0 %v150
    %1241 = vmatpush.msra.mxu0 %v147
    %1242 = vmatmul.f32.gmra.mxu0 %v955
    %v1243 = vpop.f32.mrf.mxu0
    %v1244 = vadd.f32 %v221, %v1243
    %1245 = vdwg.mxu0
    %1246 = vmatpush.msra.mxu0 %v193
    %1247 = vmatpush.msra.mxu0 %v190
    %1248 = vmatpush.msra.mxu0 %v187
    %1249 = vmatpush.msra.mxu0 %v184
    %1250 = vmatpush.msra.mxu0 %v181
    %1251 = vmatpush.msra.mxu0 %v178
    %1252 = vmatpush.msra.mxu0 %v175
    %1253 = vmatpush.msra.mxu0 %v172
    %1254 = vmatpush.msra.mxu0 %v169
    %1255 = vmatpush.msra.mxu0 %v166
    %1256 = vmatpush.msra.mxu0 %v163
    %1257 = vmatpush.msra.mxu0 %v160
    %1258 = vmatpush.msra.mxu0 %v157
    %1259 = vmatpush.msra.mxu0 %v154
    %1260 = vmatpush.msra.mxu0 %v151
    %1261 = vmatpush.msra.mxu0 %v148
    %1262 = vmatmul.f32.gmra.mxu0 %v955
    %v1263 = vpop.f32.mrf.mxu0
    %v1264 = vadd.f32 %v222, %v1263
    %1265 = vdwg.mxu0
    %1266 = vmatpush.msra.mxu0 %v194
    %1267 = vmatpush.msra.mxu0 %v191
    %1268 = vmatpush.msra.mxu0 %v188
    %1269 = vmatpush.msra.mxu0 %v185
    %1270 = vmatpush.msra.mxu0 %v182
    %1271 = vmatpush.msra.mxu0 %v179
    %1272 = vmatpush.msra.mxu0 %v176
    %1273 = vmatpush.msra.mxu0 %v173
    %1274 = vmatpush.msra.mxu0 %v170
    %1275 = vmatpush.msra.mxu0 %v167
    %1276 = vmatpush.msra.mxu0 %v164
    %1277 = vmatpush.msra.mxu0 %v161
    %1278 = vmatpush.msra.mxu0 %v158
    %1279 = vmatpush.msra.mxu0 %v155
    %1280 = vmatpush.msra.mxu0 %v152
    %1281 = vmatpush.msra.mxu0 %v149
    %1282 = vmatmul.f32.gmra.mxu0 %v955
    %v1283 = vpop.f32.mrf.mxu0
    %v1284 = vadd.f32 %v223, %v1283
    %1285 = vdwg.mxu0
    %v1286 = vadd.f32 %v1184, %v1244
    %v1287 = vxor.u32 %v1286, 2147483648
    %v1288 = vmul.f32 %v1287, 1.442695
    %v1289 = vpow.pop %v1288
    %v1290 = vadd.f32 %v1289, 1.0
    %v1291 = vrcp.pop %v1290
    %v1292 = vmul.f32 %v1290, %v1291
    %v1293 = vsub.f32 1.0, %v1292
    %v1294 = vmul.f32 %v1291, %v1293
    %v1295 = vadd.f32 %v1291, %v1294
    %vm1296 = vweird.f32 %v1290
    %vm1297 = vweird.f32 %v1291
    %vm1298 = vmor %vm1296, %vm1297
    %v1299 = vsel %vm1298, %v1291, %v1295
    %v1300 = vand.u32 2147483647, %v1290
    %vm1301 = vcmp.eq.f32.partialorder %v1300, 8.507059e+37
    %v1302 = vand.u32 %v1290, 2147483648
    %v1303 = vor.u32 1.1754944e-38, %v1302
    %v1304 = vsel %vm1301, %v1303, %v1299
    %v1305 = vmul.f32 1.0, %v1304
    %v1306 = vadd.f32 %v1204, %v1264
    %v1307 = vxor.u32 %v1306, 2147483648
    %v1308 = vmul.f32 %v1307, 1.442695
    %v1309 = vpow.pop %v1308
    %v1310 = vadd.f32 %v1309, 1.0
    %v1311 = vrcp.pop %v1310
    %v1312 = vmul.f32 %v1310, %v1311
    %v1313 = vsub.f32 1.0, %v1312
    %v1314 = vmul.f32 %v1311, %v1313
    %v1315 = vadd.f32 %v1311, %v1314
    %vm1316 = vweird.f32 %v1310
    %vm1317 = vweird.f32 %v1311
    %vm1318 = vmor %vm1316, %vm1317
    %v1319 = vsel %vm1318, %v1311, %v1315
    %v1320 = vand.u32 2147483647, %v1310
    %vm1321 = vcmp.eq.f32.partialorder %v1320, 8.507059e+37
    %v1322 = vand.u32 %v1310, 2147483648
    %v1323 = vor.u32 1.1754944e-38, %v1322
    %v1324 = vsel %vm1321, %v1323, %v1319
    %v1325 = vmul.f32 1.0, %v1324
    %v1326 = vmul.f32 %v1305, %v1284
    %v1327 = vadd.f32 %v1224, %v1326
    %v1328 = vtanh.pop %v1327
    %v1329 = vsub.f32 1.0, %v1325
    %v1330 = vmul.f32 %v1329, %v1328
    %v1331 = vmul.f32 %v1325, %v955
    %v1332 = vadd.f32 %v1330, %v1331
    %s1333 = scalar_lea.vmem %s9, 256
    %v1334 = vld [vmem:[%s1333] sm:$0xff]
    %v1335 = vld [vmem:[%s1333 + $0x8] sm:$0xff]
    %v1336 = vld [vmem:[%s1333 + $0x10] sm:$0xff]
    %v1337 = vld [vmem:[%s1333 + $0x18] sm:$0xff]
    %v1338 = vld [vmem:[%s1333 + $0x20] sm:$0xff]
    %v1339 = vld [vmem:[%s1333 + $0x28] sm:$0xff]
    %v1340 = vld [vmem:[%s1333 + $0x30] sm:$0xff]
    %v1341 = vld [vmem:[%s1333 + $0x38] sm:$0xff]
    %v1342 = vld [vmem:[%s1333 + $0x40] sm:$0xff]
    %v1343 = vld [vmem:[%s1333 + $0x48] sm:$0xff]
    %v1344 = vld [vmem:[%s1333 + $0x50] sm:$0xff]
    %v1345 = vld [vmem:[%s1333 + $0x58] sm:$0xff]
    %v1346 = vld [vmem:[%s1333 + $0x60] sm:$0xff]
    %v1347 = vld [vmem:[%s1333 + $0x68] sm:$0xff]
    %v1348 = vld [vmem:[%s1333 + $0x70] sm:$0xff]
    %v1349 = vld [vmem:[%s1333 + $0x78] sm:$0xff]
    %1350 = vmatpush.msra.mxu0 %v1349
    %1351 = vmatpush.msra.mxu0 %v1348
    %1352 = vmatpush.msra.mxu0 %v1347
    %1353 = vmatpush.msra.mxu0 %v1346
    %1354 = vmatpush.msra.mxu0 %v1345
    %1355 = vmatpush.msra.mxu0 %v1344
    %1356 = vmatpush.msra.mxu0 %v1343
    %1357 = vmatpush.msra.mxu0 %v1342
    %1358 = vmatpush.msra.mxu0 %v1341
    %1359 = vmatpush.msra.mxu0 %v1340
    %1360 = vmatpush.msra.mxu0 %v1339
    %1361 = vmatpush.msra.mxu0 %v1338
    %1362 = vmatpush.msra.mxu0 %v1337
    %1363 = vmatpush.msra.mxu0 %v1336
    %1364 = vmatpush.msra.mxu0 %v1335
    %1365 = vmatpush.msra.mxu0 %v1334
    %1366 = vmatmul.f32.gmra.mxu0 %v1332
    %v1367 = vpop.f32.mrf.mxu0
    %v1368 = vadd.f32 0.0, %v1367
    %1369 = vdwg.mxu0
    %v1370 = vadd.f32 %v993, %v1368
    %s1371 = scalar_lea.vmem %s0, 24
    %v1372 = vld [vmem:[%s1371] sm:$0xff]
    %v1374 = vsel %vm232, %v1372, 0
    %1376 = vmatpush.msra.mxu0 0.0
    %1377 = vmatpush.msra.mxu0 0.0
    %1378 = vmatpush.msra.mxu0 0.0
    %1379 = vmatpush.msra.mxu0 0.0
    %1380 = vmatpush.msra.mxu0 0.0
    %1381 = vmatpush.msra.mxu0 0.0
    %1382 = vmatpush.msra.mxu0 0.0
    %1383 = vmatpush.msra.mxu0 0.0
    %1384 = vmatpush.msra.mxu0 0.0
    %1385 = vmatpush.msra.mxu0 0.0
    %1386 = vmatpush.msra.mxu0 0.0
    %1387 = vmatpush.msra.mxu0 0.0
    %1388 = vmatpush.msra.mxu0 %v238
    %1389 = vmatpush.msra.mxu0 %v45
    %1390 = vmatpush.msra.mxu0 %v42
    %1391 = vmatpush.msra.mxu0 %v39
    %1392 = vmatmul.f32.gmra.mxu0 %v1374
    %v1393 = vpop.f32.mrf.mxu0
    %v1394 = vadd.f32 %v197, %v1393
    %1395 = vdwg.mxu0
    %1396 = vmatpush.msra.mxu0 0.0
    %1397 = vmatpush.msra.mxu0 0.0
    %1398 = vmatpush.msra.mxu0 0.0
    %1399 = vmatpush.msra.mxu0 0.0
    %1400 = vmatpush.msra.mxu0 0.0
    %1401 = vmatpush.msra.mxu0 0.0
    %1402 = vmatpush.msra.mxu0 0.0
    %1403 = vmatpush.msra.mxu0 0.0
    %1404 = vmatpush.msra.mxu0 0.0
    %1405 = vmatpush.msra.mxu0 0.0
    %1406 = vmatpush.msra.mxu0 0.0
    %1407 = vmatpush.msra.mxu0 0.0
    %1408 = vmatpush.msra.mxu0 %v241
    %1409 = vmatpush.msra.mxu0 %v46
    %1410 = vmatpush.msra.mxu0 %v43
    %1411 = vmatpush.msra.mxu0 %v40
    %1412 = vmatmul.f32.gmra.mxu0 %v1374
    %v1413 = vpop.f32.mrf.mxu0
    %v1414 = vadd.f32 %v198, %v1413
    %1415 = vdwg.mxu0
    %1416 = vmatpush.msra.mxu0 0.0
    %1417 = vmatpush.msra.mxu0 0.0
    %1418 = vmatpush.msra.mxu0 0.0
    %1419 = vmatpush.msra.mxu0 0.0
    %1420 = vmatpush.msra.mxu0 0.0
    %1421 = vmatpush.msra.mxu0 0.0
    %1422 = vmatpush.msra.mxu0 0.0
    %1423 = vmatpush.msra.mxu0 0.0
    %1424 = vmatpush.msra.mxu0 0.0
    %1425 = vmatpush.msra.mxu0 0.0
    %1426 = vmatpush.msra.mxu0 0.0
    %1427 = vmatpush.msra.mxu0 0.0
    %1428 = vmatpush.msra.mxu0 %v244
    %1429 = vmatpush.msra.mxu0 %v47
    %1430 = vmatpush.msra.mxu0 %v44
    %1431 = vmatpush.msra.mxu0 %v41
    %1432 = vmatmul.f32.gmra.mxu0 %v1374
    %v1433 = vpop.f32.mrf.mxu0
    %v1434 = vadd.f32 %v199, %v1433
    %1435 = vdwg.mxu0
    %1436 = vmatpush.msra.mxu0 %v96
    %1437 = vmatpush.msra.mxu0 %v93
    %1438 = vmatpush.msra.mxu0 %v90
    %1439 = vmatpush.msra.mxu0 %v87
    %1440 = vmatpush.msra.mxu0 %v84
    %1441 = vmatpush.msra.mxu0 %v81
    %1442 = vmatpush.msra.mxu0 %v78
    %1443 = vmatpush.msra.mxu0 %v75
    %1444 = vmatpush.msra.mxu0 %v72
    %1445 = vmatpush.msra.mxu0 %v69
    %1446 = vmatpush.msra.mxu0 %v66
    %1447 = vmatpush.msra.mxu0 %v63
    %1448 = vmatpush.msra.mxu0 %v60
    %1449 = vmatpush.msra.mxu0 %v57
    %1450 = vmatpush.msra.mxu0 %v54
    %1451 = vmatpush.msra.mxu0 %v51
    %1452 = vmatmul.f32.gmra.mxu0 %v1165
    %v1453 = vpop.f32.mrf.mxu0
    %v1454 = vadd.f32 %v205, %v1453
    %1455 = vdwg.mxu0
    %1456 = vmatpush.msra.mxu0 %v97
    %1457 = vmatpush.msra.mxu0 %v94
    %1458 = vmatpush.msra.mxu0 %v91
    %1459 = vmatpush.msra.mxu0 %v88
    %1460 = vmatpush.msra.mxu0 %v85
    %1461 = vmatpush.msra.mxu0 %v82
    %1462 = vmatpush.msra.mxu0 %v79
    %1463 = vmatpush.msra.mxu0 %v76
    %1464 = vmatpush.msra.mxu0 %v73
    %1465 = vmatpush.msra.mxu0 %v70
    %1466 = vmatpush.msra.mxu0 %v67
    %1467 = vmatpush.msra.mxu0 %v64
    %1468 = vmatpush.msra.mxu0 %v61
    %1469 = vmatpush.msra.mxu0 %v58
    %1470 = vmatpush.msra.mxu0 %v55
    %1471 = vmatpush.msra.mxu0 %v52
    %1472 = vmatmul.f32.gmra.mxu0 %v1165
    %v1473 = vpop.f32.mrf.mxu0
    %v1474 = vadd.f32 %v206, %v1473
    %1475 = vdwg.mxu0
    %1476 = vmatpush.msra.mxu0 %v98
    %1477 = vmatpush.msra.mxu0 %v95
    %1478 = vmatpush.msra.mxu0 %v92
    %1479 = vmatpush.msra.mxu0 %v89
    %1480 = vmatpush.msra.mxu0 %v86
    %1481 = vmatpush.msra.mxu0 %v83
    %1482 = vmatpush.msra.mxu0 %v80
    %1483 = vmatpush.msra.mxu0 %v77
    %1484 = vmatpush.msra.mxu0 %v74
    %1485 = vmatpush.msra.mxu0 %v71
    %1486 = vmatpush.msra.mxu0 %v68
    %1487 = vmatpush.msra.mxu0 %v65
    %1488 = vmatpush.msra.mxu0 %v62
    %1489 = vmatpush.msra.mxu0 %v59
    %1490 = vmatpush.msra.mxu0 %v56
    %1491 = vmatpush.msra.mxu0 %v53
    %1492 = vmatmul.f32.gmra.mxu0 %v1165
    %v1493 = vpop.f32.mrf.mxu0
    %v1494 = vadd.f32 %v207, %v1493
    %1495 = vdwg.mxu0
    %v1496 = vadd.f32 %v1394, %v1454
    %v1497 = vxor.u32 %v1496, 2147483648
    %v1498 = vmul.f32 %v1497, 1.442695
    %v1499 = vpow.pop %v1498
    %v1500 = vadd.f32 %v1499, 1.0
    %v1501 = vrcp.pop %v1500
    %v1502 = vmul.f32 %v1500, %v1501
    %v1503 = vsub.f32 1.0, %v1502
    %v1504 = vmul.f32 %v1501, %v1503
    %v1505 = vadd.f32 %v1501, %v1504
    %vm1506 = vweird.f32 %v1500
    %vm1507 = vweird.f32 %v1501
    %vm1508 = vmor %vm1506, %vm1507
    %v1509 = vsel %vm1508, %v1501, %v1505
    %v1510 = vand.u32 2147483647, %v1500
    %vm1511 = vcmp.eq.f32.partialorder %v1510, 8.507059e+37
    %v1512 = vand.u32 %v1500, 2147483648
    %v1513 = vor.u32 1.1754944e-38, %v1512
    %v1514 = vsel %vm1511, %v1513, %v1509
    %v1515 = vmul.f32 1.0, %v1514
    %v1516 = vadd.f32 %v1414, %v1474
    %v1517 = vxor.u32 %v1516, 2147483648
    %v1518 = vmul.f32 %v1517, 1.442695
    %v1519 = vpow.pop %v1518
    %v1520 = vadd.f32 %v1519, 1.0
    %v1521 = vrcp.pop %v1520
    %v1522 = vmul.f32 %v1520, %v1521
    %v1523 = vsub.f32 1.0, %v1522
    %v1524 = vmul.f32 %v1521, %v1523
    %v1525 = vadd.f32 %v1521, %v1524
    %vm1526 = vweird.f32 %v1520
    %vm1527 = vweird.f32 %v1521
    %vm1528 = vmor %vm1526, %vm1527
    %v1529 = vsel %vm1528, %v1521, %v1525
    %v1530 = vand.u32 2147483647, %v1520
    %vm1531 = vcmp.eq.f32.partialorder %v1530, 8.507059e+37
    %v1532 = vand.u32 %v1520, 2147483648
    %v1533 = vor.u32 1.1754944e-38, %v1532
    %v1534 = vsel %vm1531, %v1533, %v1529
    %v1535 = vmul.f32 1.0, %v1534
    %v1536 = vmul.f32 %v1515, %v1494
    %v1537 = vadd.f32 %v1434, %v1536
    %v1538 = vtanh.pop %v1537
    %v1539 = vsub.f32 1.0, %v1535
    %v1540 = vmul.f32 %v1539, %v1538
    %v1541 = vmul.f32 %v1535, %v1165
    %v1542 = vadd.f32 %v1540, %v1541
    %1543 = vmatpush.msra.mxu0 %v144
    %1544 = vmatpush.msra.mxu0 %v141
    %1545 = vmatpush.msra.mxu0 %v138
    %1546 = vmatpush.msra.mxu0 %v135
    %1547 = vmatpush.msra.mxu0 %v132
    %1548 = vmatpush.msra.mxu0 %v129
    %1549 = vmatpush.msra.mxu0 %v126
    %1550 = vmatpush.msra.mxu0 %v123
    %1551 = vmatpush.msra.mxu0 %v120
    %1552 = vmatpush.msra.mxu0 %v117
    %1553 = vmatpush.msra.mxu0 %v114
    %1554 = vmatpush.msra.mxu0 %v111
    %1555 = vmatpush.msra.mxu0 %v108
    %1556 = vmatpush.msra.mxu0 %v105
    %1557 = vmatpush.msra.mxu0 %v102
    %1558 = vmatpush.msra.mxu0 %v99
    %1559 = vmatmul.f32.gmra.mxu0 %v1542
    %v1560 = vpop.f32.mrf.mxu0
    %v1561 = vadd.f32 %v213, %v1560
    %1562 = vdwg.mxu0
    %1563 = vmatpush.msra.mxu0 %v145
    %1564 = vmatpush.msra.mxu0 %v142
    %1565 = vmatpush.msra.mxu0 %v139
    %1566 = vmatpush.msra.mxu0 %v136
    %1567 = vmatpush.msra.mxu0 %v133
    %1568 = vmatpush.msra.mxu0 %v130
    %1569 = vmatpush.msra.mxu0 %v127
    %1570 = vmatpush.msra.mxu0 %v124
    %1571 = vmatpush.msra.mxu0 %v121
    %1572 = vmatpush.msra.mxu0 %v118
    %1573 = vmatpush.msra.mxu0 %v115
    %1574 = vmatpush.msra.mxu0 %v112
    %1575 = vmatpush.msra.mxu0 %v109
    %1576 = vmatpush.msra.mxu0 %v106
    %1577 = vmatpush.msra.mxu0 %v103
    %1578 = vmatpush.msra.mxu0 %v100
    %1579 = vmatmul.f32.gmra.mxu0 %v1542
    %v1580 = vpop.f32.mrf.mxu0
    %v1581 = vadd.f32 %v214, %v1580
    %1582 = vdwg.mxu0
    %1583 = vmatpush.msra.mxu0 %v146
    %1584 = vmatpush.msra.mxu0 %v143
    %1585 = vmatpush.msra.mxu0 %v140
    %1586 = vmatpush.msra.mxu0 %v137
    %1587 = vmatpush.msra.mxu0 %v134
    %1588 = vmatpush.msra.mxu0 %v131
    %1589 = vmatpush.msra.mxu0 %v128
    %1590 = vmatpush.msra.mxu0 %v125
    %1591 = vmatpush.msra.mxu0 %v122
    %1592 = vmatpush.msra.mxu0 %v119
    %1593 = vmatpush.msra.mxu0 %v116
    %1594 = vmatpush.msra.mxu0 %v113
    %1595 = vmatpush.msra.mxu0 %v110
    %1596 = vmatpush.msra.mxu0 %v107
    %1597 = vmatpush.msra.mxu0 %v104
    %1598 = vmatpush.msra.mxu0 %v101
    %1599 = vmatmul.f32.gmra.mxu0 %v1542
    %v1600 = vpop.f32.mrf.mxu0
    %v1601 = vadd.f32 %v215, %v1600
    %1602 = vdwg.mxu0
    %1603 = vmatpush.msra.mxu0 %v192
    %1604 = vmatpush.msra.mxu0 %v189
    %1605 = vmatpush.msra.mxu0 %v186
    %1606 = vmatpush.msra.mxu0 %v183
    %1607 = vmatpush.msra.mxu0 %v180
    %1608 = vmatpush.msra.mxu0 %v177
    %1609 = vmatpush.msra.mxu0 %v174
    %1610 = vmatpush.msra.mxu0 %v171
    %1611 = vmatpush.msra.mxu0 %v168
    %1612 = vmatpush.msra.mxu0 %v165
    %1613 = vmatpush.msra.mxu0 %v162
    %1614 = vmatpush.msra.mxu0 %v159
    %1615 = vmatpush.msra.mxu0 %v156
    %1616 = vmatpush.msra.mxu0 %v153
    %1617 = vmatpush.msra.mxu0 %v150
    %1618 = vmatpush.msra.mxu0 %v147
    %1619 = vmatmul.f32.gmra.mxu0 %v1332
    %v1620 = vpop.f32.mrf.mxu0
    %v1621 = vadd.f32 %v221, %v1620
    %1622 = vdwg.mxu0
    %1623 = vmatpush.msra.mxu0 %v193
    %1624 = vmatpush.msra.mxu0 %v190
    %1625 = vmatpush.msra.mxu0 %v187
    %1626 = vmatpush.msra.mxu0 %v184
    %1627 = vmatpush.msra.mxu0 %v181
    %1628 = vmatpush.msra.mxu0 %v178
    %1629 = vmatpush.msra.mxu0 %v175
    %1630 = vmatpush.msra.mxu0 %v172
    %1631 = vmatpush.msra.mxu0 %v169
    %1632 = vmatpush.msra.mxu0 %v166
    %1633 = vmatpush.msra.mxu0 %v163
    %1634 = vmatpush.msra.mxu0 %v160
    %1635 = vmatpush.msra.mxu0 %v157
    %1636 = vmatpush.msra.mxu0 %v154
    %1637 = vmatpush.msra.mxu0 %v151
    %1638 = vmatpush.msra.mxu0 %v148
    %1639 = vmatmul.f32.gmra.mxu0 %v1332
    %v1640 = vpop.f32.mrf.mxu0
    %v1641 = vadd.f32 %v222, %v1640
    %1642 = vdwg.mxu0
    %1643 = vmatpush.msra.mxu0 %v194
    %1644 = vmatpush.msra.mxu0 %v191
    %1645 = vmatpush.msra.mxu0 %v188
    %1646 = vmatpush.msra.mxu0 %v185
    %1647 = vmatpush.msra.mxu0 %v182
    %1648 = vmatpush.msra.mxu0 %v179
    %1649 = vmatpush.msra.mxu0 %v176
    %1650 = vmatpush.msra.mxu0 %v173
    %1651 = vmatpush.msra.mxu0 %v170
    %1652 = vmatpush.msra.mxu0 %v167
    %1653 = vmatpush.msra.mxu0 %v164
    %1654 = vmatpush.msra.mxu0 %v161
    %1655 = vmatpush.msra.mxu0 %v158
    %1656 = vmatpush.msra.mxu0 %v155
    %1657 = vmatpush.msra.mxu0 %v152
    %1658 = vmatpush.msra.mxu0 %v149
    %1659 = vmatmul.f32.gmra.mxu0 %v1332
    %v1660 = vpop.f32.mrf.mxu0
    %v1661 = vadd.f32 %v223, %v1660
    %1662 = vdwg.mxu0
    %v1663 = vadd.f32 %v1561, %v1621
    %v1664 = vxor.u32 %v1663, 2147483648
    %v1665 = vmul.f32 %v1664, 1.442695
    %v1666 = vpow.pop %v1665
    %v1667 = vadd.f32 %v1666, 1.0
    %v1668 = vrcp.pop %v1667
    %v1669 = vmul.f32 %v1667, %v1668
    %v1670 = vsub.f32 1.0, %v1669
    %v1671 = vmul.f32 %v1668, %v1670
    %v1672 = vadd.f32 %v1668, %v1671
    %vm1673 = vweird.f32 %v1667
    %vm1674 = vweird.f32 %v1668
    %vm1675 = vmor %vm1673, %vm1674
    %v1676 = vsel %vm1675, %v1668, %v1672
    %v1677 = vand.u32 2147483647, %v1667
    %vm1678 = vcmp.eq.f32.partialorder %v1677, 8.507059e+37
    %v1679 = vand.u32 %v1667, 2147483648
    %v1680 = vor.u32 1.1754944e-38, %v1679
    %v1681 = vsel %vm1678, %v1680, %v1676
    %v1682 = vmul.f32 1.0, %v1681
    %v1683 = vadd.f32 %v1581, %v1641
    %v1684 = vxor.u32 %v1683, 2147483648
    %v1685 = vmul.f32 %v1684, 1.442695
    %v1686 = vpow.pop %v1685
    %v1687 = vadd.f32 %v1686, 1.0
    %v1688 = vrcp.pop %v1687
    %v1689 = vmul.f32 %v1687, %v1688
    %v1690 = vsub.f32 1.0, %v1689
    %v1691 = vmul.f32 %v1688, %v1690
    %v1692 = vadd.f32 %v1688, %v1691
    %vm1693 = vweird.f32 %v1687
    %vm1694 = vweird.f32 %v1688
    %vm1695 = vmor %vm1693, %vm1694
    %v1696 = vsel %vm1695, %v1688, %v1692
    %v1697 = vand.u32 2147483647, %v1687
    %vm1698 = vcmp.eq.f32.partialorder %v1697, 8.507059e+37
    %v1699 = vand.u32 %v1687, 2147483648
    %v1700 = vor.u32 1.1754944e-38, %v1699
    %v1701 = vsel %vm1698, %v1700, %v1696
    %v1702 = vmul.f32 1.0, %v1701
    %v1703 = vmul.f32 %v1682, %v1661
    %v1704 = vadd.f32 %v1601, %v1703
    %v1705 = vtanh.pop %v1704
    %v1706 = vsub.f32 1.0, %v1702
    %v1707 = vmul.f32 %v1706, %v1705
    %v1708 = vmul.f32 %v1702, %v1332
    %v1709 = vadd.f32 %v1707, %v1708
    %s1710 = scalar_lea.vmem %s9, 384
    %v1711 = vld [vmem:[%s1710] sm:$0xff]
    %v1712 = vld [vmem:[%s1710 + $0x8] sm:$0xff]
    %v1713 = vld [vmem:[%s1710 + $0x10] sm:$0xff]
    %v1714 = vld [vmem:[%s1710 + $0x18] sm:$0xff]
    %v1715 = vld [vmem:[%s1710 + $0x20] sm:$0xff]
    %v1716 = vld [vmem:[%s1710 + $0x28] sm:$0xff]
    %v1717 = vld [vmem:[%s1710 + $0x30] sm:$0xff]
    %v1718 = vld [vmem:[%s1710 + $0x38] sm:$0xff]
    %v1719 = vld [vmem:[%s1710 + $0x40] sm:$0xff]
    %v1720 = vld [vmem:[%s1710 + $0x48] sm:$0xff]
    %v1721 = vld [vmem:[%s1710 + $0x50] sm:$0xff]
    %v1722 = vld [vmem:[%s1710 + $0x58] sm:$0xff]
    %v1723 = vld [vmem:[%s1710 + $0x60] sm:$0xff]
    %v1724 = vld [vmem:[%s1710 + $0x68] sm:$0xff]
    %v1725 = vld [vmem:[%s1710 + $0x70] sm:$0xff]
    %v1726 = vld [vmem:[%s1710 + $0x78] sm:$0xff]
    %1727 = vmatpush.msra.mxu0 %v1726
    %1728 = vmatpush.msra.mxu0 %v1725
    %1729 = vmatpush.msra.mxu0 %v1724
    %1730 = vmatpush.msra.mxu0 %v1723
    %1731 = vmatpush.msra.mxu0 %v1722
    %1732 = vmatpush.msra.mxu0 %v1721
    %1733 = vmatpush.msra.mxu0 %v1720
    %1734 = vmatpush.msra.mxu0 %v1719
    %1735 = vmatpush.msra.mxu0 %v1718
    %1736 = vmatpush.msra.mxu0 %v1717
    %1737 = vmatpush.msra.mxu0 %v1716
    %1738 = vmatpush.msra.mxu0 %v1715
    %1739 = vmatpush.msra.mxu0 %v1714
    %1740 = vmatpush.msra.mxu0 %v1713
    %1741 = vmatpush.msra.mxu0 %v1712
    %1742 = vmatpush.msra.mxu0 %v1711
    %1743 = vmatmul.f32.gmra.mxu0 %v1709
    %v1744 = vpop.f32.mrf.mxu0
    %v1745 = vadd.f32 0.0, %v1744
    %1746 = vdwg.mxu0
    %v1747 = vadd.f32 %v1370, %v1745
    %s1748 = scalar_lea.vmem %s0, 32
    %v1749 = vld [vmem:[%s1748] sm:$0xff]
    %v1751 = vsel %vm232, %v1749, 0
    %1753 = vmatpush.msra.mxu0 0.0
    %1754 = vmatpush.msra.mxu0 0.0
    %1755 = vmatpush.msra.mxu0 0.0
    %1756 = vmatpush.msra.mxu0 0.0
    %1757 = vmatpush.msra.mxu0 0.0
    %1758 = vmatpush.msra.mxu0 0.0
    %1759 = vmatpush.msra.mxu0 0.0
    %1760 = vmatpush.msra.mxu0 0.0
    %1761 = vmatpush.msra.mxu0 0.0
    %1762 = vmatpush.msra.mxu0 0.0
    %1763 = vmatpush.msra.mxu0 0.0
    %1764 = vmatpush.msra.mxu0 0.0
    %1765 = vmatpush.msra.mxu0 %v238
    %1766 = vmatpush.msra.mxu0 %v45
    %1767 = vmatpush.msra.mxu0 %v42
    %1768 = vmatpush.msra.mxu0 %v39
    %1769 = vmatmul.f32.gmra.mxu0 %v1751
    %v1770 = vpop.f32.mrf.mxu0
    %v1771 = vadd.f32 %v197, %v1770
    %1772 = vdwg.mxu0
    %1773 = vmatpush.msra.mxu0 0.0
    %1774 = vmatpush.msra.mxu0 0.0
    %1775 = vmatpush.msra.mxu0 0.0
    %1776 = vmatpush.msra.mxu0 0.0
    %1777 = vmatpush.msra.mxu0 0.0
    %1778 = vmatpush.msra.mxu0 0.0
    %1779 = vmatpush.msra.mxu0 0.0
    %1780 = vmatpush.msra.mxu0 0.0
    %1781 = vmatpush.msra.mxu0 0.0
    %1782 = vmatpush.msra.mxu0 0.0
    %1783 = vmatpush.msra.mxu0 0.0
    %1784 = vmatpush.msra.mxu0 0.0
    %1785 = vmatpush.msra.mxu0 %v241
    %1786 = vmatpush.msra.mxu0 %v46
    %1787 = vmatpush.msra.mxu0 %v43
    %1788 = vmatpush.msra.mxu0 %v40
    %1789 = vmatmul.f32.gmra.mxu0 %v1751
    %v1790 = vpop.f32.mrf.mxu0
    %v1791 = vadd.f32 %v198, %v1790
    %1792 = vdwg.mxu0
    %1793 = vmatpush.msra.mxu0 0.0
    %1794 = vmatpush.msra.mxu0 0.0
    %1795 = vmatpush.msra.mxu0 0.0
    %1796 = vmatpush.msra.mxu0 0.0
    %1797 = vmatpush.msra.mxu0 0.0
    %1798 = vmatpush.msra.mxu0 0.0
    %1799 = vmatpush.msra.mxu0 0.0
    %1800 = vmatpush.msra.mxu0 0.0
    %1801 = vmatpush.msra.mxu0 0.0
    %1802 = vmatpush.msra.mxu0 0.0
    %1803 = vmatpush.msra.mxu0 0.0
    %1804 = vmatpush.msra.mxu0 0.0
    %1805 = vmatpush.msra.mxu0 %v244
    %1806 = vmatpush.msra.mxu0 %v47
    %1807 = vmatpush.msra.mxu0 %v44
    %1808 = vmatpush.msra.mxu0 %v41
    %1809 = vmatmul.f32.gmra.mxu0 %v1751
    %v1810 = vpop.f32.mrf.mxu0
    %v1811 = vadd.f32 %v199, %v1810
    %1812 = vdwg.mxu0
    %1813 = vmatpush.msra.mxu0 %v96
    %1814 = vmatpush.msra.mxu0 %v93
    %1815 = vmatpush.msra.mxu0 %v90
    %1816 = vmatpush.msra.mxu0 %v87
    %1817 = vmatpush.msra.mxu0 %v84
    %1818 = vmatpush.msra.mxu0 %v81
    %1819 = vmatpush.msra.mxu0 %v78
    %1820 = vmatpush.msra.mxu0 %v75
    %1821 = vmatpush.msra.mxu0 %v72
    %1822 = vmatpush.msra.mxu0 %v69
    %1823 = vmatpush.msra.mxu0 %v66
    %1824 = vmatpush.msra.mxu0 %v63
    %1825 = vmatpush.msra.mxu0 %v60
    %1826 = vmatpush.msra.mxu0 %v57
    %1827 = vmatpush.msra.mxu0 %v54
    %1828 = vmatpush.msra.mxu0 %v51
    %1829 = vmatmul.f32.gmra.mxu0 %v1542
    %v1830 = vpop.f32.mrf.mxu0
    %v1831 = vadd.f32 %v205, %v1830
    %1832 = vdwg.mxu0
    %1833 = vmatpush.msra.mxu0 %v97
    %1834 = vmatpush.msra.mxu0 %v94
    %1835 = vmatpush.msra.mxu0 %v91
    %1836 = vmatpush.msra.mxu0 %v88
    %1837 = vmatpush.msra.mxu0 %v85
    %1838 = vmatpush.msra.mxu0 %v82
    %1839 = vmatpush.msra.mxu0 %v79
    %1840 = vmatpush.msra.mxu0 %v76
    %1841 = vmatpush.msra.mxu0 %v73
    %1842 = vmatpush.msra.mxu0 %v70
    %1843 = vmatpush.msra.mxu0 %v67
    %1844 = vmatpush.msra.mxu0 %v64
    %1845 = vmatpush.msra.mxu0 %v61
    %1846 = vmatpush.msra.mxu0 %v58
    %1847 = vmatpush.msra.mxu0 %v55
    %1848 = vmatpush.msra.mxu0 %v52
    %1849 = vmatmul.f32.gmra.mxu0 %v1542
    %v1850 = vpop.f32.mrf.mxu0
    %v1851 = vadd.f32 %v206, %v1850
    %1852 = vdwg.mxu0
    %1853 = vmatpush.msra.mxu0 %v98
    %1854 = vmatpush.msra.mxu0 %v95
    %1855 = vmatpush.msra.mxu0 %v92
    %1856 = vmatpush.msra.mxu0 %v89
    %1857 = vmatpush.msra.mxu0 %v86
    %1858 = vmatpush.msra.mxu0 %v83
    %1859 = vmatpush.msra.mxu0 %v80
    %1860 = vmatpush.msra.mxu0 %v77
    %1861 = vmatpush.msra.mxu0 %v74
    %1862 = vmatpush.msra.mxu0 %v71
    %1863 = vmatpush.msra.mxu0 %v68
    %1864 = vmatpush.msra.mxu0 %v65
    %1865 = vmatpush.msra.mxu0 %v62
    %1866 = vmatpush.msra.mxu0 %v59
    %1867 = vmatpush.msra.mxu0 %v56
    %1868 = vmatpush.msra.mxu0 %v53
    %1869 = vmatmul.f32.gmra.mxu0 %v1542
    %v1870 = vpop.f32.mrf.mxu0
    %v1871 = vadd.f32 %v207, %v1870
    %1872 = vdwg.mxu0
    %v1873 = vadd.f32 %v1771, %v1831
    %v1874 = vxor.u32 %v1873, 2147483648
    %v1875 = vmul.f32 %v1874, 1.442695
    %v1876 = vpow.pop %v1875
    %v1877 = vadd.f32 %v1876, 1.0
    %v1878 = vrcp.pop %v1877
    %v1879 = vmul.f32 %v1877, %v1878
    %v1880 = vsub.f32 1.0, %v1879
    %v1881 = vmul.f32 %v1878, %v1880
    %v1882 = vadd.f32 %v1878, %v1881
    %vm1883 = vweird.f32 %v1877
    %vm1884 = vweird.f32 %v1878
    %vm1885 = vmor %vm1883, %vm1884
    %v1886 = vsel %vm1885, %v1878, %v1882
    %v1887 = vand.u32 2147483647, %v1877
    %vm1888 = vcmp.eq.f32.partialorder %v1887, 8.507059e+37
    %v1889 = vand.u32 %v1877, 2147483648
    %v1890 = vor.u32 1.1754944e-38, %v1889
    %v1891 = vsel %vm1888, %v1890, %v1886
    %v1892 = vmul.f32 1.0, %v1891
    %v1893 = vadd.f32 %v1791, %v1851
    %v1894 = vxor.u32 %v1893, 2147483648
    %v1895 = vmul.f32 %v1894, 1.442695
    %v1896 = vpow.pop %v1895
    %v1897 = vadd.f32 %v1896, 1.0
    %v1898 = vrcp.pop %v1897
    %v1899 = vmul.f32 %v1897, %v1898
    %v1900 = vsub.f32 1.0, %v1899
    %v1901 = vmul.f32 %v1898, %v1900
    %v1902 = vadd.f32 %v1898, %v1901
    %vm1903 = vweird.f32 %v1897
    %vm1904 = vweird.f32 %v1898
    %vm1905 = vmor %vm1903, %vm1904
    %v1906 = vsel %vm1905, %v1898, %v1902
    %v1907 = vand.u32 2147483647, %v1897
    %vm1908 = vcmp.eq.f32.partialorder %v1907, 8.507059e+37
    %v1909 = vand.u32 %v1897, 2147483648
    %v1910 = vor.u32 1.1754944e-38, %v1909
    %v1911 = vsel %vm1908, %v1910, %v1906
    %v1912 = vmul.f32 1.0, %v1911
    %v1913 = vmul.f32 %v1892, %v1871
    %v1914 = vadd.f32 %v1811, %v1913
    %v1915 = vtanh.pop %v1914
    %v1916 = vsub.f32 1.0, %v1912
    %v1917 = vmul.f32 %v1916, %v1915
    %v1918 = vmul.f32 %v1912, %v1542
    %v1919 = vadd.f32 %v1917, %v1918
    %1920 = vmatpush.msra.mxu0 %v144
    %1921 = vmatpush.msra.mxu0 %v141
    %1922 = vmatpush.msra.mxu0 %v138
    %1923 = vmatpush.msra.mxu0 %v135
    %1924 = vmatpush.msra.mxu0 %v132
    %1925 = vmatpush.msra.mxu0 %v129
    %1926 = vmatpush.msra.mxu0 %v126
    %1927 = vmatpush.msra.mxu0 %v123
    %1928 = vmatpush.msra.mxu0 %v120
    %1929 = vmatpush.msra.mxu0 %v117
    %1930 = vmatpush.msra.mxu0 %v114
    %1931 = vmatpush.msra.mxu0 %v111
    %1932 = vmatpush.msra.mxu0 %v108
    %1933 = vmatpush.msra.mxu0 %v105
    %1934 = vmatpush.msra.mxu0 %v102
    %1935 = vmatpush.msra.mxu0 %v99
    %1936 = vmatmul.f32.gmra.mxu0 %v1919
    %v1937 = vpop.f32.mrf.mxu0
    %v1938 = vadd.f32 %v213, %v1937
    %1939 = vdwg.mxu0
    %1940 = vmatpush.msra.mxu0 %v145
    %1941 = vmatpush.msra.mxu0 %v142
    %1942 = vmatpush.msra.mxu0 %v139
    %1943 = vmatpush.msra.mxu0 %v136
    %1944 = vmatpush.msra.mxu0 %v133
    %1945 = vmatpush.msra.mxu0 %v130
    %1946 = vmatpush.msra.mxu0 %v127
    %1947 = vmatpush.msra.mxu0 %v124
    %1948 = vmatpush.msra.mxu0 %v121
    %1949 = vmatpush.msra.mxu0 %v118
    %1950 = vmatpush.msra.mxu0 %v115
    %1951 = vmatpush.msra.mxu0 %v112
    %1952 = vmatpush.msra.mxu0 %v109
    %1953 = vmatpush.msra.mxu0 %v106
    %1954 = vmatpush.msra.mxu0 %v103
    %1955 = vmatpush.msra.mxu0 %v100
    %1956 = vmatmul.f32.gmra.mxu0 %v1919
    %v1957 = vpop.f32.mrf.mxu0
    %v1958 = vadd.f32 %v214, %v1957
    %1959 = vdwg.mxu0
    %1960 = vmatpush.msra.mxu0 %v146
    %1961 = vmatpush.msra.mxu0 %v143
    %1962 = vmatpush.msra.mxu0 %v140
    %1963 = vmatpush.msra.mxu0 %v137
    %1964 = vmatpush.msra.mxu0 %v134
    %1965 = vmatpush.msra.mxu0 %v131
    %1966 = vmatpush.msra.mxu0 %v128
    %1967 = vmatpush.msra.mxu0 %v125
    %1968 = vmatpush.msra.mxu0 %v122
    %1969 = vmatpush.msra.mxu0 %v119
    %1970 = vmatpush.msra.mxu0 %v116
    %1971 = vmatpush.msra.mxu0 %v113
    %1972 = vmatpush.msra.mxu0 %v110
    %1973 = vmatpush.msra.mxu0 %v107
    %1974 = vmatpush.msra.mxu0 %v104
    %1975 = vmatpush.msra.mxu0 %v101
    %1976 = vmatmul.f32.gmra.mxu0 %v1919
    %v1977 = vpop.f32.mrf.mxu0
    %v1978 = vadd.f32 %v215, %v1977
    %1979 = vdwg.mxu0
    %1980 = vmatpush.msra.mxu0 %v192
    %1981 = vmatpush.msra.mxu0 %v189
    %1982 = vmatpush.msra.mxu0 %v186
    %1983 = vmatpush.msra.mxu0 %v183
    %1984 = vmatpush.msra.mxu0 %v180
    %1985 = vmatpush.msra.mxu0 %v177
    %1986 = vmatpush.msra.mxu0 %v174
    %1987 = vmatpush.msra.mxu0 %v171
    %1988 = vmatpush.msra.mxu0 %v168
    %1989 = vmatpush.msra.mxu0 %v165
    %1990 = vmatpush.msra.mxu0 %v162
    %1991 = vmatpush.msra.mxu0 %v159
    %1992 = vmatpush.msra.mxu0 %v156
    %1993 = vmatpush.msra.mxu0 %v153
    %1994 = vmatpush.msra.mxu0 %v150
    %1995 = vmatpush.msra.mxu0 %v147
    %1996 = vmatmul.f32.gmra.mxu0 %v1709
    %v1997 = vpop.f32.mrf.mxu0
    %v1998 = vadd.f32 %v221, %v1997
    %1999 = vdwg.mxu0
    %2000 = vmatpush.msra.mxu0 %v193
    %2001 = vmatpush.msra.mxu0 %v190
    %2002 = vmatpush.msra.mxu0 %v187
    %2003 = vmatpush.msra.mxu0 %v184
    %2004 = vmatpush.msra.mxu0 %v181
    %2005 = vmatpush.msra.mxu0 %v178
    %2006 = vmatpush.msra.mxu0 %v175
    %2007 = vmatpush.msra.mxu0 %v172
    %2008 = vmatpush.msra.mxu0 %v169
    %2009 = vmatpush.msra.mxu0 %v166
    %2010 = vmatpush.msra.mxu0 %v163
    %2011 = vmatpush.msra.mxu0 %v160
    %2012 = vmatpush.msra.mxu0 %v157
    %2013 = vmatpush.msra.mxu0 %v154
    %2014 = vmatpush.msra.mxu0 %v151
    %2015 = vmatpush.msra.mxu0 %v148
    %2016 = vmatmul.f32.gmra.mxu0 %v1709
    %v2017 = vpop.f32.mrf.mxu0
    %v2018 = vadd.f32 %v222, %v2017
    %2019 = vdwg.mxu0
    %2020 = vmatpush.msra.mxu0 %v194
    %2021 = vmatpush.msra.mxu0 %v191
    %2022 = vmatpush.msra.mxu0 %v188
    %2023 = vmatpush.msra.mxu0 %v185
    %2024 = vmatpush.msra.mxu0 %v182
    %2025 = vmatpush.msra.mxu0 %v179
    %2026 = vmatpush.msra.mxu0 %v176
    %2027 = vmatpush.msra.mxu0 %v173
    %2028 = vmatpush.msra.mxu0 %v170
    %2029 = vmatpush.msra.mxu0 %v167
    %2030 = vmatpush.msra.mxu0 %v164
    %2031 = vmatpush.msra.mxu0 %v161
    %2032 = vmatpush.msra.mxu0 %v158
    %2033 = vmatpush.msra.mxu0 %v155
    %2034 = vmatpush.msra.mxu0 %v152
    %2035 = vmatpush.msra.mxu0 %v149
    %2036 = vmatmul.f32.gmra.mxu0 %v1709
    %v2037 = vpop.f32.mrf.mxu0
    %v2038 = vadd.f32 %v223, %v2037
    %2039 = vdwg.mxu0
    %v2040 = vadd.f32 %v1938, %v1998
    %v2041 = vxor.u32 %v2040, 2147483648
    %v2042 = vmul.f32 %v2041, 1.442695
    %v2043 = vpow.pop %v2042
    %v2044 = vadd.f32 %v2043, 1.0
    %v2045 = vrcp.pop %v2044
    %v2046 = vmul.f32 %v2044, %v2045
    %v2047 = vsub.f32 1.0, %v2046
    %v2048 = vmul.f32 %v2045, %v2047
    %v2049 = vadd.f32 %v2045, %v2048
    %vm2050 = vweird.f32 %v2044
    %vm2051 = vweird.f32 %v2045
    %vm2052 = vmor %vm2050, %vm2051
    %v2053 = vsel %vm2052, %v2045, %v2049
    %v2054 = vand.u32 2147483647, %v2044
    %vm2055 = vcmp.eq.f32.partialorder %v2054, 8.507059e+37
    %v2056 = vand.u32 %v2044, 2147483648
    %v2057 = vor.u32 1.1754944e-38, %v2056
    %v2058 = vsel %vm2055, %v2057, %v2053
    %v2059 = vmul.f32 1.0, %v2058
    %v2060 = vadd.f32 %v1958, %v2018
    %v2061 = vxor.u32 %v2060, 2147483648
    %v2062 = vmul.f32 %v2061, 1.442695
    %v2063 = vpow.pop %v2062
    %v2064 = vadd.f32 %v2063, 1.0
    %v2065 = vrcp.pop %v2064
    %v2066 = vmul.f32 %v2064, %v2065
    %v2067 = vsub.f32 1.0, %v2066
    %v2068 = vmul.f32 %v2065, %v2067
    %v2069 = vadd.f32 %v2065, %v2068
    %vm2070 = vweird.f32 %v2064
    %vm2071 = vweird.f32 %v2065
    %vm2072 = vmor %vm2070, %vm2071
    %v2073 = vsel %vm2072, %v2065, %v2069
    %v2074 = vand.u32 2147483647, %v2064
    %vm2075 = vcmp.eq.f32.partialorder %v2074, 8.507059e+37
    %v2076 = vand.u32 %v2064, 2147483648
    %v2077 = vor.u32 1.1754944e-38, %v2076
    %v2078 = vsel %vm2075, %v2077, %v2073
    %v2079 = vmul.f32 1.0, %v2078
    %v2080 = vmul.f32 %v2059, %v2038
    %v2081 = vadd.f32 %v1978, %v2080
    %v2082 = vtanh.pop %v2081
    %v2083 = vsub.f32 1.0, %v2079
    %v2084 = vmul.f32 %v2083, %v2082
    %v2085 = vmul.f32 %v2079, %v1709
    %v2086 = vadd.f32 %v2084, %v2085
    %s2087 = scalar_lea.vmem %s9, 512
    %v2088 = vld [vmem:[%s2087] sm:$0xff]
    %v2089 = vld [vmem:[%s2087 + $0x8] sm:$0xff]
    %v2090 = vld [vmem:[%s2087 + $0x10] sm:$0xff]
    %v2091 = vld [vmem:[%s2087 + $0x18] sm:$0xff]
    %v2092 = vld [vmem:[%s2087 + $0x20] sm:$0xff]
    %v2093 = vld [vmem:[%s2087 + $0x28] sm:$0xff]
    %v2094 = vld [vmem:[%s2087 + $0x30] sm:$0xff]
    %v2095 = vld [vmem:[%s2087 + $0x38] sm:$0xff]
    %v2096 = vld [vmem:[%s2087 + $0x40] sm:$0xff]
    %v2097 = vld [vmem:[%s2087 + $0x48] sm:$0xff]
    %v2098 = vld [vmem:[%s2087 + $0x50] sm:$0xff]
    %v2099 = vld [vmem:[%s2087 + $0x58] sm:$0xff]
    %v2100 = vld [vmem:[%s2087 + $0x60] sm:$0xff]
    %v2101 = vld [vmem:[%s2087 + $0x68] sm:$0xff]
    %v2102 = vld [vmem:[%s2087 + $0x70] sm:$0xff]
    %v2103 = vld [vmem:[%s2087 + $0x78] sm:$0xff]
    %2104 = vmatpush.msra.mxu0 %v2103
    %2105 = vmatpush.msra.mxu0 %v2102
    %2106 = vmatpush.msra.mxu0 %v2101
    %2107 = vmatpush.msra.mxu0 %v2100
    %2108 = vmatpush.msra.mxu0 %v2099
    %2109 = vmatpush.msra.mxu0 %v2098
    %2110 = vmatpush.msra.mxu0 %v2097
    %2111 = vmatpush.msra.mxu0 %v2096
    %2112 = vmatpush.msra.mxu0 %v2095
    %2113 = vmatpush.msra.mxu0 %v2094
    %2114 = vmatpush.msra.mxu0 %v2093
    %2115 = vmatpush.msra.mxu0 %v2092
    %2116 = vmatpush.msra.mxu0 %v2091
    %2117 = vmatpush.msra.mxu0 %v2090
    %2118 = vmatpush.msra.mxu0 %v2089
    %2119 = vmatpush.msra.mxu0 %v2088
    %2120 = vmatmul.f32.gmra.mxu0 %v2086
    %v2121 = vpop.f32.mrf.mxu0
    %v2122 = vadd.f32 0.0, %v2121
    %2123 = vdwg.mxu0
    %v2124 = vadd.f32 %v1747, %v2122
    %s2125 = scalar_lea.vmem %s0, 40
    %v2126 = vld [vmem:[%s2125] sm:$0xff]
    %v2128 = vsel %vm232, %v2126, 0
    %2130 = vmatpush.msra.mxu0 0.0
    %2131 = vmatpush.msra.mxu0 0.0
    %2132 = vmatpush.msra.mxu0 0.0
    %2133 = vmatpush.msra.mxu0 0.0
    %2134 = vmatpush.msra.mxu0 0.0
    %2135 = vmatpush.msra.mxu0 0.0
    %2136 = vmatpush.msra.mxu0 0.0
    %2137 = vmatpush.msra.mxu0 0.0
    %2138 = vmatpush.msra.mxu0 0.0
    %2139 = vmatpush.msra.mxu0 0.0
    %2140 = vmatpush.msra.mxu0 0.0
    %2141 = vmatpush.msra.mxu0 0.0
    %2142 = vmatpush.msra.mxu0 %v238
    %2143 = vmatpush.msra.mxu0 %v45
    %2144 = vmatpush.msra.mxu0 %v42
    %2145 = vmatpush.msra.mxu0 %v39
    %2146 = vmatmul.f32.gmra.mxu0 %v2128
    %v2147 = vpop.f32.mrf.mxu0
    %v2148 = vadd.f32 %v197, %v2147
    %2149 = vdwg.mxu0
    %2150 = vmatpush.msra.mxu0 0.0
    %2151 = vmatpush.msra.mxu0 0.0
    %2152 = vmatpush.msra.mxu0 0.0
    %2153 = vmatpush.msra.mxu0 0.0
    %2154 = vmatpush.msra.mxu0 0.0
    %2155 = vmatpush.msra.mxu0 0.0
    %2156 = vmatpush.msra.mxu0 0.0
    %2157 = vmatpush.msra.mxu0 0.0
    %2158 = vmatpush.msra.mxu0 0.0
    %2159 = vmatpush.msra.mxu0 0.0
    %2160 = vmatpush.msra.mxu0 0.0
    %2161 = vmatpush.msra.mxu0 0.0
    %2162 = vmatpush.msra.mxu0 %v241
    %2163 = vmatpush.msra.mxu0 %v46
    %2164 = vmatpush.msra.mxu0 %v43
    %2165 = vmatpush.msra.mxu0 %v40
    %2166 = vmatmul.f32.gmra.mxu0 %v2128
    %v2167 = vpop.f32.mrf.mxu0
    %v2168 = vadd.f32 %v198, %v2167
    %2169 = vdwg.mxu0
    %2170 = vmatpush.msra.mxu0 0.0
    %2171 = vmatpush.msra.mxu0 0.0
    %2172 = vmatpush.msra.mxu0 0.0
    %2173 = vmatpush.msra.mxu0 0.0
    %2174 = vmatpush.msra.mxu0 0.0
    %2175 = vmatpush.msra.mxu0 0.0
    %2176 = vmatpush.msra.mxu0 0.0
    %2177 = vmatpush.msra.mxu0 0.0
    %2178 = vmatpush.msra.mxu0 0.0
    %2179 = vmatpush.msra.mxu0 0.0
    %2180 = vmatpush.msra.mxu0 0.0
    %2181 = vmatpush.msra.mxu0 0.0
    %2182 = vmatpush.msra.mxu0 %v244
    %2183 = vmatpush.msra.mxu0 %v47
    %2184 = vmatpush.msra.mxu0 %v44
    %2185 = vmatpush.msra.mxu0 %v41
    %2186 = vmatmul.f32.gmra.mxu0 %v2128
    %v2187 = vpop.f32.mrf.mxu0
    %v2188 = vadd.f32 %v199, %v2187
    %2189 = vdwg.mxu0
    %2190 = vmatpush.msra.mxu0 %v96
    %2191 = vmatpush.msra.mxu0 %v93
    %2192 = vmatpush.msra.mxu0 %v90
    %2193 = vmatpush.msra.mxu0 %v87
    %2194 = vmatpush.msra.mxu0 %v84
    %2195 = vmatpush.msra.mxu0 %v81
    %2196 = vmatpush.msra.mxu0 %v78
    %2197 = vmatpush.msra.mxu0 %v75
    %2198 = vmatpush.msra.mxu0 %v72
    %2199 = vmatpush.msra.mxu0 %v69
    %2200 = vmatpush.msra.mxu0 %v66
    %2201 = vmatpush.msra.mxu0 %v63
    %2202 = vmatpush.msra.mxu0 %v60
    %2203 = vmatpush.msra.mxu0 %v57
    %2204 = vmatpush.msra.mxu0 %v54
    %2205 = vmatpush.msra.mxu0 %v51
    %2206 = vmatmul.f32.gmra.mxu0 %v1919
    %v2207 = vpop.f32.mrf.mxu0
    %v2208 = vadd.f32 %v205, %v2207
    %2209 = vdwg.mxu0
    %2210 = vmatpush.msra.mxu0 %v97
    %2211 = vmatpush.msra.mxu0 %v94
    %2212 = vmatpush.msra.mxu0 %v91
    %2213 = vmatpush.msra.mxu0 %v88
    %2214 = vmatpush.msra.mxu0 %v85
    %2215 = vmatpush.msra.mxu0 %v82
    %2216 = vmatpush.msra.mxu0 %v79
    %2217 = vmatpush.msra.mxu0 %v76
    %2218 = vmatpush.msra.mxu0 %v73
    %2219 = vmatpush.msra.mxu0 %v70
    %2220 = vmatpush.msra.mxu0 %v67
    %2221 = vmatpush.msra.mxu0 %v64
    %2222 = vmatpush.msra.mxu0 %v61
    %2223 = vmatpush.msra.mxu0 %v58
    %2224 = vmatpush.msra.mxu0 %v55
    %2225 = vmatpush.msra.mxu0 %v52
    %2226 = vmatmul.f32.gmra.mxu0 %v1919
    %v2227 = vpop.f32.mrf.mxu0
    %v2228 = vadd.f32 %v206, %v2227
    %2229 = vdwg.mxu0
    %2230 = vmatpush.msra.mxu0 %v98
    %2231 = vmatpush.msra.mxu0 %v95
    %2232 = vmatpush.msra.mxu0 %v92
    %2233 = vmatpush.msra.mxu0 %v89
    %2234 = vmatpush.msra.mxu0 %v86
    %2235 = vmatpush.msra.mxu0 %v83
    %2236 = vmatpush.msra.mxu0 %v80
    %2237 = vmatpush.msra.mxu0 %v77
    %2238 = vmatpush.msra.mxu0 %v74
    %2239 = vmatpush.msra.mxu0 %v71
    %2240 = vmatpush.msra.mxu0 %v68
    %2241 = vmatpush.msra.mxu0 %v65
    %2242 = vmatpush.msra.mxu0 %v62
    %2243 = vmatpush.msra.mxu0 %v59
    %2244 = vmatpush.msra.mxu0 %v56
    %2245 = vmatpush.msra.mxu0 %v53
    %2246 = vmatmul.f32.gmra.mxu0 %v1919
    %v2247 = vpop.f32.mrf.mxu0
    %v2248 = vadd.f32 %v207, %v2247
    %2249 = vdwg.mxu0
    %v2250 = vadd.f32 %v2148, %v2208
    %v2251 = vxor.u32 %v2250, 2147483648
    %v2252 = vmul.f32 %v2251, 1.442695
    %v2253 = vpow.pop %v2252
    %v2254 = vadd.f32 %v2253, 1.0
    %v2255 = vrcp.pop %v2254
    %v2256 = vmul.f32 %v2254, %v2255
    %v2257 = vsub.f32 1.0, %v2256
    %v2258 = vmul.f32 %v2255, %v2257
    %v2259 = vadd.f32 %v2255, %v2258
    %vm2260 = vweird.f32 %v2254
    %vm2261 = vweird.f32 %v2255
    %vm2262 = vmor %vm2260, %vm2261
    %v2263 = vsel %vm2262, %v2255, %v2259
    %v2264 = vand.u32 2147483647, %v2254
    %vm2265 = vcmp.eq.f32.partialorder %v2264, 8.507059e+37
    %v2266 = vand.u32 %v2254, 2147483648
    %v2267 = vor.u32 1.1754944e-38, %v2266
    %v2268 = vsel %vm2265, %v2267, %v2263
    %v2269 = vmul.f32 1.0, %v2268
    %v2270 = vadd.f32 %v2168, %v2228
    %v2271 = vxor.u32 %v2270, 2147483648
    %v2272 = vmul.f32 %v2271, 1.442695
    %v2273 = vpow.pop %v2272
    %v2274 = vadd.f32 %v2273, 1.0
    %v2275 = vrcp.pop %v2274
    %v2276 = vmul.f32 %v2274, %v2275
    %v2277 = vsub.f32 1.0, %v2276
    %v2278 = vmul.f32 %v2275, %v2277
    %v2279 = vadd.f32 %v2275, %v2278
    %vm2280 = vweird.f32 %v2274
    %vm2281 = vweird.f32 %v2275
    %vm2282 = vmor %vm2280, %vm2281
    %v2283 = vsel %vm2282, %v2275, %v2279
    %v2284 = vand.u32 2147483647, %v2274
    %vm2285 = vcmp.eq.f32.partialorder %v2284, 8.507059e+37
    %v2286 = vand.u32 %v2274, 2147483648
    %v2287 = vor.u32 1.1754944e-38, %v2286
    %v2288 = vsel %vm2285, %v2287, %v2283
    %v2289 = vmul.f32 1.0, %v2288
    %v2290 = vmul.f32 %v2269, %v2248
    %v2291 = vadd.f32 %v2188, %v2290
    %v2292 = vtanh.pop %v2291
    %v2293 = vsub.f32 1.0, %v2289
    %v2294 = vmul.f32 %v2293, %v2292
    %v2295 = vmul.f32 %v2289, %v1919
    %v2296 = vadd.f32 %v2294, %v2295
    %2297 = vmatpush.msra.mxu0 %v144
    %2298 = vmatpush.msra.mxu0 %v141
    %2299 = vmatpush.msra.mxu0 %v138
    %2300 = vmatpush.msra.mxu0 %v135
    %2301 = vmatpush.msra.mxu0 %v132
    %2302 = vmatpush.msra.mxu0 %v129
    %2303 = vmatpush.msra.mxu0 %v126
    %2304 = vmatpush.msra.mxu0 %v123
    %2305 = vmatpush.msra.mxu0 %v120
    %2306 = vmatpush.msra.mxu0 %v117
    %2307 = vmatpush.msra.mxu0 %v114
    %2308 = vmatpush.msra.mxu0 %v111
    %2309 = vmatpush.msra.mxu0 %v108
    %2310 = vmatpush.msra.mxu0 %v105
    %2311 = vmatpush.msra.mxu0 %v102
    %2312 = vmatpush.msra.mxu0 %v99
    %2313 = vmatmul.f32.gmra.mxu0 %v2296
    %v2314 = vpop.f32.mrf.mxu0
    %v2315 = vadd.f32 %v213, %v2314
    %2316 = vdwg.mxu0
    %2317 = vmatpush.msra.mxu0 %v145
    %2318 = vmatpush.msra.mxu0 %v142
    %2319 = vmatpush.msra.mxu0 %v139
    %2320 = vmatpush.msra.mxu0 %v136
    %2321 = vmatpush.msra.mxu0 %v133
    %2322 = vmatpush.msra.mxu0 %v130
    %2323 = vmatpush.msra.mxu0 %v127
    %2324 = vmatpush.msra.mxu0 %v124
    %2325 = vmatpush.msra.mxu0 %v121
    %2326 = vmatpush.msra.mxu0 %v118
    %2327 = vmatpush.msra.mxu0 %v115
    %2328 = vmatpush.msra.mxu0 %v112
    %2329 = vmatpush.msra.mxu0 %v109
    %2330 = vmatpush.msra.mxu0 %v106
    %2331 = vmatpush.msra.mxu0 %v103
    %2332 = vmatpush.msra.mxu0 %v100
    %2333 = vmatmul.f32.gmra.mxu0 %v2296
    %v2334 = vpop.f32.mrf.mxu0
    %v2335 = vadd.f32 %v214, %v2334
    %2336 = vdwg.mxu0
    %2337 = vmatpush.msra.mxu0 %v146
    %2338 = vmatpush.msra.mxu0 %v143
    %2339 = vmatpush.msra.mxu0 %v140
    %2340 = vmatpush.msra.mxu0 %v137
    %2341 = vmatpush.msra.mxu0 %v134
    %2342 = vmatpush.msra.mxu0 %v131
    %2343 = vmatpush.msra.mxu0 %v128
    %2344 = vmatpush.msra.mxu0 %v125
    %2345 = vmatpush.msra.mxu0 %v122
    %2346 = vmatpush.msra.mxu0 %v119
    %2347 = vmatpush.msra.mxu0 %v116
    %2348 = vmatpush.msra.mxu0 %v113
    %2349 = vmatpush.msra.mxu0 %v110
    %2350 = vmatpush.msra.mxu0 %v107
    %2351 = vmatpush.msra.mxu0 %v104
    %2352 = vmatpush.msra.mxu0 %v101
    %2353 = vmatmul.f32.gmra.mxu0 %v2296
    %v2354 = vpop.f32.mrf.mxu0
    %v2355 = vadd.f32 %v215, %v2354
    %2356 = vdwg.mxu0
    %2357 = vmatpush.msra.mxu0 %v192
    %2358 = vmatpush.msra.mxu0 %v189
    %2359 = vmatpush.msra.mxu0 %v186
    %2360 = vmatpush.msra.mxu0 %v183
    %2361 = vmatpush.msra.mxu0 %v180
    %2362 = vmatpush.msra.mxu0 %v177
    %2363 = vmatpush.msra.mxu0 %v174
    %2364 = vmatpush.msra.mxu0 %v171
    %2365 = vmatpush.msra.mxu0 %v168
    %2366 = vmatpush.msra.mxu0 %v165
    %2367 = vmatpush.msra.mxu0 %v162
    %2368 = vmatpush.msra.mxu0 %v159
    %2369 = vmatpush.msra.mxu0 %v156
    %2370 = vmatpush.msra.mxu0 %v153
    %2371 = vmatpush.msra.mxu0 %v150
    %2372 = vmatpush.msra.mxu0 %v147
    %2373 = vmatmul.f32.gmra.mxu0 %v2086
    %v2374 = vpop.f32.mrf.mxu0
    %v2375 = vadd.f32 %v221, %v2374
    %2376 = vdwg.mxu0
    %2377 = vmatpush.msra.mxu0 %v193
    %2378 = vmatpush.msra.mxu0 %v190
    %2379 = vmatpush.msra.mxu0 %v187
    %2380 = vmatpush.msra.mxu0 %v184
    %2381 = vmatpush.msra.mxu0 %v181
    %2382 = vmatpush.msra.mxu0 %v178
    %2383 = vmatpush.msra.mxu0 %v175
    %2384 = vmatpush.msra.mxu0 %v172
    %2385 = vmatpush.msra.mxu0 %v169
    %2386 = vmatpush.msra.mxu0 %v166
    %2387 = vmatpush.msra.mxu0 %v163
    %2388 = vmatpush.msra.mxu0 %v160
    %2389 = vmatpush.msra.mxu0 %v157
    %2390 = vmatpush.msra.mxu0 %v154
    %2391 = vmatpush.msra.mxu0 %v151
    %2392 = vmatpush.msra.mxu0 %v148
    %2393 = vmatmul.f32.gmra.mxu0 %v2086
    %v2394 = vpop.f32.mrf.mxu0
    %v2395 = vadd.f32 %v222, %v2394
    %2396 = vdwg.mxu0
    %2397 = vmatpush.msra.mxu0 %v194
    %2398 = vmatpush.msra.mxu0 %v191
    %2399 = vmatpush.msra.mxu0 %v188
    %2400 = vmatpush.msra.mxu0 %v185
    %2401 = vmatpush.msra.mxu0 %v182
    %2402 = vmatpush.msra.mxu0 %v179
    %2403 = vmatpush.msra.mxu0 %v176
    %2404 = vmatpush.msra.mxu0 %v173
    %2405 = vmatpush.msra.mxu0 %v170
    %2406 = vmatpush.msra.mxu0 %v167
    %2407 = vmatpush.msra.mxu0 %v164
    %2408 = vmatpush.msra.mxu0 %v161
    %2409 = vmatpush.msra.mxu0 %v158
    %2410 = vmatpush.msra.mxu0 %v155
    %2411 = vmatpush.msra.mxu0 %v152
    %2412 = vmatpush.msra.mxu0 %v149
    %2413 = vmatmul.f32.gmra.mxu0 %v2086
    %v2414 = vpop.f32.mrf.mxu0
    %v2415 = vadd.f32 %v223, %v2414
    %2416 = vdwg.mxu0
    %v2417 = vadd.f32 %v2315, %v2375
    %v2418 = vxor.u32 %v2417, 2147483648
    %v2419 = vmul.f32 %v2418, 1.442695
    %v2420 = vpow.pop %v2419
    %v2421 = vadd.f32 %v2420, 1.0
    %v2422 = vrcp.pop %v2421
    %v2423 = vmul.f32 %v2421, %v2422
    %v2424 = vsub.f32 1.0, %v2423
    %v2425 = vmul.f32 %v2422, %v2424
    %v2426 = vadd.f32 %v2422, %v2425
    %vm2427 = vweird.f32 %v2421
    %vm2428 = vweird.f32 %v2422
    %vm2429 = vmor %vm2427, %vm2428
    %v2430 = vsel %vm2429, %v2422, %v2426
    %v2431 = vand.u32 2147483647, %v2421
    %vm2432 = vcmp.eq.f32.partialorder %v2431, 8.507059e+37
    %v2433 = vand.u32 %v2421, 2147483648
    %v2434 = vor.u32 1.1754944e-38, %v2433
    %v2435 = vsel %vm2432, %v2434, %v2430
    %v2436 = vmul.f32 1.0, %v2435
    %v2437 = vadd.f32 %v2335, %v2395
    %v2438 = vxor.u32 %v2437, 2147483648
    %v2439 = vmul.f32 %v2438, 1.442695
    %v2440 = vpow.pop %v2439
    %v2441 = vadd.f32 %v2440, 1.0
    %v2442 = vrcp.pop %v2441
    %v2443 = vmul.f32 %v2441, %v2442
    %v2444 = vsub.f32 1.0, %v2443
    %v2445 = vmul.f32 %v2442, %v2444
    %v2446 = vadd.f32 %v2442, %v2445
    %vm2447 = vweird.f32 %v2441
    %vm2448 = vweird.f32 %v2442
    %vm2449 = vmor %vm2447, %vm2448
    %v2450 = vsel %vm2449, %v2442, %v2446
    %v2451 = vand.u32 2147483647, %v2441
    %vm2452 = vcmp.eq.f32.partialorder %v2451, 8.507059e+37
    %v2453 = vand.u32 %v2441, 2147483648
    %v2454 = vor.u32 1.1754944e-38, %v2453
    %v2455 = vsel %vm2452, %v2454, %v2450
    %v2456 = vmul.f32 1.0, %v2455
    %v2457 = vmul.f32 %v2436, %v2415
    %v2458 = vadd.f32 %v2355, %v2457
    %v2459 = vtanh.pop %v2458
    %v2460 = vsub.f32 1.0, %v2456
    %v2461 = vmul.f32 %v2460, %v2459
    %v2462 = vmul.f32 %v2456, %v2086
    %v2463 = vadd.f32 %v2461, %v2462
    %s2464 = scalar_lea.vmem %s9, 640
    %v2465 = vld [vmem:[%s2464] sm:$0xff]
    %v2466 = vld [vmem:[%s2464 + $0x8] sm:$0xff]
    %v2467 = vld [vmem:[%s2464 + $0x10] sm:$0xff]
    %v2468 = vld [vmem:[%s2464 + $0x18] sm:$0xff]
    %v2469 = vld [vmem:[%s2464 + $0x20] sm:$0xff]
    %v2470 = vld [vmem:[%s2464 + $0x28] sm:$0xff]
    %v2471 = vld [vmem:[%s2464 + $0x30] sm:$0xff]
    %v2472 = vld [vmem:[%s2464 + $0x38] sm:$0xff]
    %v2473 = vld [vmem:[%s2464 + $0x40] sm:$0xff]
    %v2474 = vld [vmem:[%s2464 + $0x48] sm:$0xff]
    %v2475 = vld [vmem:[%s2464 + $0x50] sm:$0xff]
    %v2476 = vld [vmem:[%s2464 + $0x58] sm:$0xff]
    %v2477 = vld [vmem:[%s2464 + $0x60] sm:$0xff]
    %v2478 = vld [vmem:[%s2464 + $0x68] sm:$0xff]
    %v2479 = vld [vmem:[%s2464 + $0x70] sm:$0xff]
    %v2480 = vld [vmem:[%s2464 + $0x78] sm:$0xff]
    %2481 = vmatpush.msra.mxu0 %v2480
    %2482 = vmatpush.msra.mxu0 %v2479
    %2483 = vmatpush.msra.mxu0 %v2478
    %2484 = vmatpush.msra.mxu0 %v2477
    %2485 = vmatpush.msra.mxu0 %v2476
    %2486 = vmatpush.msra.mxu0 %v2475
    %2487 = vmatpush.msra.mxu0 %v2474
    %2488 = vmatpush.msra.mxu0 %v2473
    %2489 = vmatpush.msra.mxu0 %v2472
    %2490 = vmatpush.msra.mxu0 %v2471
    %2491 = vmatpush.msra.mxu0 %v2470
    %2492 = vmatpush.msra.mxu0 %v2469
    %2493 = vmatpush.msra.mxu0 %v2468
    %2494 = vmatpush.msra.mxu0 %v2467
    %2495 = vmatpush.msra.mxu0 %v2466
    %2496 = vmatpush.msra.mxu0 %v2465
    %2497 = vmatmul.f32.gmra.mxu0 %v2463
    %v2498 = vpop.f32.mrf.mxu0
    %v2499 = vadd.f32 0.0, %v2498
    %2500 = vdwg.mxu0
    %v2501 = vadd.f32 %v2124, %v2499
    %s2502 = scalar_lea.vmem %s0, 48
    %v2503 = vld [vmem:[%s2502] sm:$0xff]
    %v2505 = vsel %vm232, %v2503, 0
    %2507 = vmatpush.msra.mxu0 0.0
    %2508 = vmatpush.msra.mxu0 0.0
    %2509 = vmatpush.msra.mxu0 0.0
    %2510 = vmatpush.msra.mxu0 0.0
    %2511 = vmatpush.msra.mxu0 0.0
    %2512 = vmatpush.msra.mxu0 0.0
    %2513 = vmatpush.msra.mxu0 0.0
    %2514 = vmatpush.msra.mxu0 0.0
    %2515 = vmatpush.msra.mxu0 0.0
    %2516 = vmatpush.msra.mxu0 0.0
    %2517 = vmatpush.msra.mxu0 0.0
    %2518 = vmatpush.msra.mxu0 0.0
    %2519 = vmatpush.msra.mxu0 %v238
    %2520 = vmatpush.msra.mxu0 %v45
    %2521 = vmatpush.msra.mxu0 %v42
    %2522 = vmatpush.msra.mxu0 %v39
    %2523 = vmatmul.f32.gmra.mxu0 %v2505
    %v2524 = vpop.f32.mrf.mxu0
    %v2525 = vadd.f32 %v197, %v2524
    %2526 = vdwg.mxu0
    %2527 = vmatpush.msra.mxu0 0.0
    %2528 = vmatpush.msra.mxu0 0.0
    %2529 = vmatpush.msra.mxu0 0.0
    %2530 = vmatpush.msra.mxu0 0.0
    %2531 = vmatpush.msra.mxu0 0.0
    %2532 = vmatpush.msra.mxu0 0.0
    %2533 = vmatpush.msra.mxu0 0.0
    %2534 = vmatpush.msra.mxu0 0.0
    %2535 = vmatpush.msra.mxu0 0.0
    %2536 = vmatpush.msra.mxu0 0.0
    %2537 = vmatpush.msra.mxu0 0.0
    %2538 = vmatpush.msra.mxu0 0.0
    %2539 = vmatpush.msra.mxu0 %v241
    %2540 = vmatpush.msra.mxu0 %v46
    %2541 = vmatpush.msra.mxu0 %v43
    %2542 = vmatpush.msra.mxu0 %v40
    %2543 = vmatmul.f32.gmra.mxu0 %v2505
    %v2544 = vpop.f32.mrf.mxu0
    %v2545 = vadd.f32 %v198, %v2544
    %2546 = vdwg.mxu0
    %2547 = vmatpush.msra.mxu0 0.0
    %2548 = vmatpush.msra.mxu0 0.0
    %2549 = vmatpush.msra.mxu0 0.0
    %2550 = vmatpush.msra.mxu0 0.0
    %2551 = vmatpush.msra.mxu0 0.0
    %2552 = vmatpush.msra.mxu0 0.0
    %2553 = vmatpush.msra.mxu0 0.0
    %2554 = vmatpush.msra.mxu0 0.0
    %2555 = vmatpush.msra.mxu0 0.0
    %2556 = vmatpush.msra.mxu0 0.0
    %2557 = vmatpush.msra.mxu0 0.0
    %2558 = vmatpush.msra.mxu0 0.0
    %2559 = vmatpush.msra.mxu0 %v244
    %2560 = vmatpush.msra.mxu0 %v47
    %2561 = vmatpush.msra.mxu0 %v44
    %2562 = vmatpush.msra.mxu0 %v41
    %2563 = vmatmul.f32.gmra.mxu0 %v2505
    %v2564 = vpop.f32.mrf.mxu0
    %v2565 = vadd.f32 %v199, %v2564
    %2566 = vdwg.mxu0
    %2567 = vmatpush.msra.mxu0 %v96
    %2568 = vmatpush.msra.mxu0 %v93
    %2569 = vmatpush.msra.mxu0 %v90
    %2570 = vmatpush.msra.mxu0 %v87
    %2571 = vmatpush.msra.mxu0 %v84
    %2572 = vmatpush.msra.mxu0 %v81
    %2573 = vmatpush.msra.mxu0 %v78
    %2574 = vmatpush.msra.mxu0 %v75
    %2575 = vmatpush.msra.mxu0 %v72
    %2576 = vmatpush.msra.mxu0 %v69
    %2577 = vmatpush.msra.mxu0 %v66
    %2578 = vmatpush.msra.mxu0 %v63
    %2579 = vmatpush.msra.mxu0 %v60
    %2580 = vmatpush.msra.mxu0 %v57
    %2581 = vmatpush.msra.mxu0 %v54
    %2582 = vmatpush.msra.mxu0 %v51
    %2583 = vmatmul.f32.gmra.mxu0 %v2296
    %v2584 = vpop.f32.mrf.mxu0
    %v2585 = vadd.f32 %v205, %v2584
    %2586 = vdwg.mxu0
    %2587 = vmatpush.msra.mxu0 %v97
    %2588 = vmatpush.msra.mxu0 %v94
    %2589 = vmatpush.msra.mxu0 %v91
    %2590 = vmatpush.msra.mxu0 %v88
    %2591 = vmatpush.msra.mxu0 %v85
    %2592 = vmatpush.msra.mxu0 %v82
    %2593 = vmatpush.msra.mxu0 %v79
    %2594 = vmatpush.msra.mxu0 %v76
    %2595 = vmatpush.msra.mxu0 %v73
    %2596 = vmatpush.msra.mxu0 %v70
    %2597 = vmatpush.msra.mxu0 %v67
    %2598 = vmatpush.msra.mxu0 %v64
    %2599 = vmatpush.msra.mxu0 %v61
    %2600 = vmatpush.msra.mxu0 %v58
    %2601 = vmatpush.msra.mxu0 %v55
    %2602 = vmatpush.msra.mxu0 %v52
    %2603 = vmatmul.f32.gmra.mxu0 %v2296
    %v2604 = vpop.f32.mrf.mxu0
    %v2605 = vadd.f32 %v206, %v2604
    %2606 = vdwg.mxu0
    %2607 = vmatpush.msra.mxu0 %v98
    %2608 = vmatpush.msra.mxu0 %v95
    %2609 = vmatpush.msra.mxu0 %v92
    %2610 = vmatpush.msra.mxu0 %v89
    %2611 = vmatpush.msra.mxu0 %v86
    %2612 = vmatpush.msra.mxu0 %v83
    %2613 = vmatpush.msra.mxu0 %v80
    %2614 = vmatpush.msra.mxu0 %v77
    %2615 = vmatpush.msra.mxu0 %v74
    %2616 = vmatpush.msra.mxu0 %v71
    %2617 = vmatpush.msra.mxu0 %v68
    %2618 = vmatpush.msra.mxu0 %v65
    %2619 = vmatpush.msra.mxu0 %v62
    %2620 = vmatpush.msra.mxu0 %v59
    %2621 = vmatpush.msra.mxu0 %v56
    %2622 = vmatpush.msra.mxu0 %v53
    %2623 = vmatmul.f32.gmra.mxu0 %v2296
    %v2624 = vpop.f32.mrf.mxu0
    %v2625 = vadd.f32 %v207, %v2624
    %2626 = vdwg.mxu0
    %v2627 = vadd.f32 %v2525, %v2585
    %v2628 = vxor.u32 %v2627, 2147483648
    %v2629 = vmul.f32 %v2628, 1.442695
    %v2630 = vpow.pop %v2629
    %v2631 = vadd.f32 %v2630, 1.0
    %v2632 = vrcp.pop %v2631
    %v2633 = vmul.f32 %v2631, %v2632
    %v2634 = vsub.f32 1.0, %v2633
    %v2635 = vmul.f32 %v2632, %v2634
    %v2636 = vadd.f32 %v2632, %v2635
    %vm2637 = vweird.f32 %v2631
    %vm2638 = vweird.f32 %v2632
    %vm2639 = vmor %vm2637, %vm2638
    %v2640 = vsel %vm2639, %v2632, %v2636
    %v2641 = vand.u32 2147483647, %v2631
    %vm2642 = vcmp.eq.f32.partialorder %v2641, 8.507059e+37
    %v2643 = vand.u32 %v2631, 2147483648
    %v2644 = vor.u32 1.1754944e-38, %v2643
    %v2645 = vsel %vm2642, %v2644, %v2640
    %v2646 = vmul.f32 1.0, %v2645
    %v2647 = vadd.f32 %v2545, %v2605
    %v2648 = vxor.u32 %v2647, 2147483648
    %v2649 = vmul.f32 %v2648, 1.442695
    %v2650 = vpow.pop %v2649
    %v2651 = vadd.f32 %v2650, 1.0
    %v2652 = vrcp.pop %v2651
    %v2653 = vmul.f32 %v2651, %v2652
    %v2654 = vsub.f32 1.0, %v2653
    %v2655 = vmul.f32 %v2652, %v2654
    %v2656 = vadd.f32 %v2652, %v2655
    %vm2657 = vweird.f32 %v2651
    %vm2658 = vweird.f32 %v2652
    %vm2659 = vmor %vm2657, %vm2658
    %v2660 = vsel %vm2659, %v2652, %v2656
    %v2661 = vand.u32 2147483647, %v2651
    %vm2662 = vcmp.eq.f32.partialorder %v2661, 8.507059e+37
    %v2663 = vand.u32 %v2651, 2147483648
    %v2664 = vor.u32 1.1754944e-38, %v2663
    %v2665 = vsel %vm2662, %v2664, %v2660
    %v2666 = vmul.f32 1.0, %v2665
    %v2667 = vmul.f32 %v2646, %v2625
    %v2668 = vadd.f32 %v2565, %v2667
    %v2669 = vtanh.pop %v2668
    %v2670 = vsub.f32 1.0, %v2666
    %v2671 = vmul.f32 %v2670, %v2669
    %v2672 = vmul.f32 %v2666, %v2296
    %v2673 = vadd.f32 %v2671, %v2672
    %2674 = vmatpush.msra.mxu0 %v144
    %2675 = vmatpush.msra.mxu0 %v141
    %2676 = vmatpush.msra.mxu0 %v138
    %2677 = vmatpush.msra.mxu0 %v135
    %2678 = vmatpush.msra.mxu0 %v132
    %2679 = vmatpush.msra.mxu0 %v129
    %2680 = vmatpush.msra.mxu0 %v126
    %2681 = vmatpush.msra.mxu0 %v123
    %2682 = vmatpush.msra.mxu0 %v120
    %2683 = vmatpush.msra.mxu0 %v117
    %2684 = vmatpush.msra.mxu0 %v114
    %2685 = vmatpush.msra.mxu0 %v111
    %2686 = vmatpush.msra.mxu0 %v108
    %2687 = vmatpush.msra.mxu0 %v105
    %2688 = vmatpush.msra.mxu0 %v102
    %2689 = vmatpush.msra.mxu0 %v99
    %2690 = vmatmul.f32.gmra.mxu0 %v2673
    %v2691 = vpop.f32.mrf.mxu0
    %v2692 = vadd.f32 %v213, %v2691
    %2693 = vdwg.mxu0
    %2694 = vmatpush.msra.mxu0 %v145
    %2695 = vmatpush.msra.mxu0 %v142
    %2696 = vmatpush.msra.mxu0 %v139
    %2697 = vmatpush.msra.mxu0 %v136
    %2698 = vmatpush.msra.mxu0 %v133
    %2699 = vmatpush.msra.mxu0 %v130
    %2700 = vmatpush.msra.mxu0 %v127
    %2701 = vmatpush.msra.mxu0 %v124
    %2702 = vmatpush.msra.mxu0 %v121
    %2703 = vmatpush.msra.mxu0 %v118
    %2704 = vmatpush.msra.mxu0 %v115
    %2705 = vmatpush.msra.mxu0 %v112
    %2706 = vmatpush.msra.mxu0 %v109
    %2707 = vmatpush.msra.mxu0 %v106
    %2708 = vmatpush.msra.mxu0 %v103
    %2709 = vmatpush.msra.mxu0 %v100
    %2710 = vmatmul.f32.gmra.mxu0 %v2673
    %v2711 = vpop.f32.mrf.mxu0
    %v2712 = vadd.f32 %v214, %v2711
    %2713 = vdwg.mxu0
    %2714 = vmatpush.msra.mxu0 %v146
    %2715 = vmatpush.msra.mxu0 %v143
    %2716 = vmatpush.msra.mxu0 %v140
    %2717 = vmatpush.msra.mxu0 %v137
    %2718 = vmatpush.msra.mxu0 %v134
    %2719 = vmatpush.msra.mxu0 %v131
    %2720 = vmatpush.msra.mxu0 %v128
    %2721 = vmatpush.msra.mxu0 %v125
    %2722 = vmatpush.msra.mxu0 %v122
    %2723 = vmatpush.msra.mxu0 %v119
    %2724 = vmatpush.msra.mxu0 %v116
    %2725 = vmatpush.msra.mxu0 %v113
    %2726 = vmatpush.msra.mxu0 %v110
    %2727 = vmatpush.msra.mxu0 %v107
    %2728 = vmatpush.msra.mxu0 %v104
    %2729 = vmatpush.msra.mxu0 %v101
    %2730 = vmatmul.f32.gmra.mxu0 %v2673
    %v2731 = vpop.f32.mrf.mxu0
    %v2732 = vadd.f32 %v215, %v2731
    %2733 = vdwg.mxu0
    %2734 = vmatpush.msra.mxu0 %v192
    %2735 = vmatpush.msra.mxu0 %v189
    %2736 = vmatpush.msra.mxu0 %v186
    %2737 = vmatpush.msra.mxu0 %v183
    %2738 = vmatpush.msra.mxu0 %v180
    %2739 = vmatpush.msra.mxu0 %v177
    %2740 = vmatpush.msra.mxu0 %v174
    %2741 = vmatpush.msra.mxu0 %v171
    %2742 = vmatpush.msra.mxu0 %v168
    %2743 = vmatpush.msra.mxu0 %v165
    %2744 = vmatpush.msra.mxu0 %v162
    %2745 = vmatpush.msra.mxu0 %v159
    %2746 = vmatpush.msra.mxu0 %v156
    %2747 = vmatpush.msra.mxu0 %v153
    %2748 = vmatpush.msra.mxu0 %v150
    %2749 = vmatpush.msra.mxu0 %v147
    %2750 = vmatmul.f32.gmra.mxu0 %v2463
    %v2751 = vpop.f32.mrf.mxu0
    %v2752 = vadd.f32 %v221, %v2751
    %2753 = vdwg.mxu0
    %2754 = vmatpush.msra.mxu0 %v193
    %2755 = vmatpush.msra.mxu0 %v190
    %2756 = vmatpush.msra.mxu0 %v187
    %2757 = vmatpush.msra.mxu0 %v184
    %2758 = vmatpush.msra.mxu0 %v181
    %2759 = vmatpush.msra.mxu0 %v178
    %2760 = vmatpush.msra.mxu0 %v175
    %2761 = vmatpush.msra.mxu0 %v172
    %2762 = vmatpush.msra.mxu0 %v169
    %2763 = vmatpush.msra.mxu0 %v166
    %2764 = vmatpush.msra.mxu0 %v163
    %2765 = vmatpush.msra.mxu0 %v160
    %2766 = vmatpush.msra.mxu0 %v157
    %2767 = vmatpush.msra.mxu0 %v154
    %2768 = vmatpush.msra.mxu0 %v151
    %2769 = vmatpush.msra.mxu0 %v148
    %2770 = vmatmul.f32.gmra.mxu0 %v2463
    %v2771 = vpop.f32.mrf.mxu0
    %v2772 = vadd.f32 %v222, %v2771
    %2773 = vdwg.mxu0
    %2774 = vmatpush.msra.mxu0 %v194
    %2775 = vmatpush.msra.mxu0 %v191
    %2776 = vmatpush.msra.mxu0 %v188
    %2777 = vmatpush.msra.mxu0 %v185
    %2778 = vmatpush.msra.mxu0 %v182
    %2779 = vmatpush.msra.mxu0 %v179
    %2780 = vmatpush.msra.mxu0 %v176
    %2781 = vmatpush.msra.mxu0 %v173
    %2782 = vmatpush.msra.mxu0 %v170
    %2783 = vmatpush.msra.mxu0 %v167
    %2784 = vmatpush.msra.mxu0 %v164
    %2785 = vmatpush.msra.mxu0 %v161
    %2786 = vmatpush.msra.mxu0 %v158
    %2787 = vmatpush.msra.mxu0 %v155
    %2788 = vmatpush.msra.mxu0 %v152
    %2789 = vmatpush.msra.mxu0 %v149
    %2790 = vmatmul.f32.gmra.mxu0 %v2463
    %v2791 = vpop.f32.mrf.mxu0
    %v2792 = vadd.f32 %v223, %v2791
    %2793 = vdwg.mxu0
    %v2794 = vadd.f32 %v2692, %v2752
    %v2795 = vxor.u32 %v2794, 2147483648
    %v2796 = vmul.f32 %v2795, 1.442695
    %v2797 = vpow.pop %v2796
    %v2798 = vadd.f32 %v2797, 1.0
    %v2799 = vrcp.pop %v2798
    %v2800 = vmul.f32 %v2798, %v2799
    %v2801 = vsub.f32 1.0, %v2800
    %v2802 = vmul.f32 %v2799, %v2801
    %v2803 = vadd.f32 %v2799, %v2802
    %vm2804 = vweird.f32 %v2798
    %vm2805 = vweird.f32 %v2799
    %vm2806 = vmor %vm2804, %vm2805
    %v2807 = vsel %vm2806, %v2799, %v2803
    %v2808 = vand.u32 2147483647, %v2798
    %vm2809 = vcmp.eq.f32.partialorder %v2808, 8.507059e+37
    %v2810 = vand.u32 %v2798, 2147483648
    %v2811 = vor.u32 1.1754944e-38, %v2810
    %v2812 = vsel %vm2809, %v2811, %v2807
    %v2813 = vmul.f32 1.0, %v2812
    %v2814 = vadd.f32 %v2712, %v2772
    %v2815 = vxor.u32 %v2814, 2147483648
    %v2816 = vmul.f32 %v2815, 1.442695
    %v2817 = vpow.pop %v2816
    %v2818 = vadd.f32 %v2817, 1.0
    %v2819 = vrcp.pop %v2818
    %v2820 = vmul.f32 %v2818, %v2819
    %v2821 = vsub.f32 1.0, %v2820
    %v2822 = vmul.f32 %v2819, %v2821
    %v2823 = vadd.f32 %v2819, %v2822
    %vm2824 = vweird.f32 %v2818
    %vm2825 = vweird.f32 %v2819
    %vm2826 = vmor %vm2824, %vm2825
    %v2827 = vsel %vm2826, %v2819, %v2823
    %v2828 = vand.u32 2147483647, %v2818
    %vm2829 = vcmp.eq.f32.partialorder %v2828, 8.507059e+37
    %v2830 = vand.u32 %v2818, 2147483648
    %v2831 = vor.u32 1.1754944e-38, %v2830
    %v2832 = vsel %vm2829, %v2831, %v2827
    %v2833 = vmul.f32 1.0, %v2832
    %v2834 = vmul.f32 %v2813, %v2792
    %v2835 = vadd.f32 %v2732, %v2834
    %v2836 = vtanh.pop %v2835
    %v2837 = vsub.f32 1.0, %v2833
    %v2838 = vmul.f32 %v2837, %v2836
    %v2839 = vmul.f32 %v2833, %v2463
    %v2840 = vadd.f32 %v2838, %v2839
    %s2841 = scalar_lea.vmem %s9, 768
    %v2842 = vld [vmem:[%s2841] sm:$0xff]
    %v2843 = vld [vmem:[%s2841 + $0x8] sm:$0xff]
    %v2844 = vld [vmem:[%s2841 + $0x10] sm:$0xff]
    %v2845 = vld [vmem:[%s2841 + $0x18] sm:$0xff]
    %v2846 = vld [vmem:[%s2841 + $0x20] sm:$0xff]
    %v2847 = vld [vmem:[%s2841 + $0x28] sm:$0xff]
    %v2848 = vld [vmem:[%s2841 + $0x30] sm:$0xff]
    %v2849 = vld [vmem:[%s2841 + $0x38] sm:$0xff]
    %v2850 = vld [vmem:[%s2841 + $0x40] sm:$0xff]
    %v2851 = vld [vmem:[%s2841 + $0x48] sm:$0xff]
    %v2852 = vld [vmem:[%s2841 + $0x50] sm:$0xff]
    %v2853 = vld [vmem:[%s2841 + $0x58] sm:$0xff]
    %v2854 = vld [vmem:[%s2841 + $0x60] sm:$0xff]
    %v2855 = vld [vmem:[%s2841 + $0x68] sm:$0xff]
    %v2856 = vld [vmem:[%s2841 + $0x70] sm:$0xff]
    %v2857 = vld [vmem:[%s2841 + $0x78] sm:$0xff]
    %2858 = vmatpush.msra.mxu0 %v2857
    %2859 = vmatpush.msra.mxu0 %v2856
    %2860 = vmatpush.msra.mxu0 %v2855
    %2861 = vmatpush.msra.mxu0 %v2854
    %2862 = vmatpush.msra.mxu0 %v2853
    %2863 = vmatpush.msra.mxu0 %v2852
    %2864 = vmatpush.msra.mxu0 %v2851
    %2865 = vmatpush.msra.mxu0 %v2850
    %2866 = vmatpush.msra.mxu0 %v2849
    %2867 = vmatpush.msra.mxu0 %v2848
    %2868 = vmatpush.msra.mxu0 %v2847
    %2869 = vmatpush.msra.mxu0 %v2846
    %2870 = vmatpush.msra.mxu0 %v2845
    %2871 = vmatpush.msra.mxu0 %v2844
    %2872 = vmatpush.msra.mxu0 %v2843
    %2873 = vmatpush.msra.mxu0 %v2842
    %2874 = vmatmul.f32.gmra.mxu0 %v2840
    %v2875 = vpop.f32.mrf.mxu0
    %v2876 = vadd.f32 0.0, %v2875
    %2877 = vdwg.mxu0
    %v2878 = vadd.f32 %v2501, %v2876
    %s2879 = scalar_lea.vmem %s0, 56
    %v2880 = vld [vmem:[%s2879] sm:$0xff]
    %v2882 = vsel %vm232, %v2880, 0
    %2884 = vmatpush.msra.mxu0 0.0
    %2885 = vmatpush.msra.mxu0 0.0
    %2886 = vmatpush.msra.mxu0 0.0
    %2887 = vmatpush.msra.mxu0 0.0
    %2888 = vmatpush.msra.mxu0 0.0
    %2889 = vmatpush.msra.mxu0 0.0
    %2890 = vmatpush.msra.mxu0 0.0
    %2891 = vmatpush.msra.mxu0 0.0
    %2892 = vmatpush.msra.mxu0 0.0
    %2893 = vmatpush.msra.mxu0 0.0
    %2894 = vmatpush.msra.mxu0 0.0
    %2895 = vmatpush.msra.mxu0 0.0
    %2896 = vmatpush.msra.mxu0 %v238
    %2897 = vmatpush.msra.mxu0 %v45
    %2898 = vmatpush.msra.mxu0 %v42
    %2899 = vmatpush.msra.mxu0 %v39
    %2900 = vmatmul.f32.gmra.mxu0 %v2882
    %v2901 = vpop.f32.mrf.mxu0
    %v2902 = vadd.f32 %v197, %v2901
    %2903 = vdwg.mxu0
    %2904 = vmatpush.msra.mxu0 0.0
    %2905 = vmatpush.msra.mxu0 0.0
    %2906 = vmatpush.msra.mxu0 0.0
    %2907 = vmatpush.msra.mxu0 0.0
    %2908 = vmatpush.msra.mxu0 0.0
    %2909 = vmatpush.msra.mxu0 0.0
    %2910 = vmatpush.msra.mxu0 0.0
    %2911 = vmatpush.msra.mxu0 0.0
    %2912 = vmatpush.msra.mxu0 0.0
    %2913 = vmatpush.msra.mxu0 0.0
    %2914 = vmatpush.msra.mxu0 0.0
    %2915 = vmatpush.msra.mxu0 0.0
    %2916 = vmatpush.msra.mxu0 %v241
    %2917 = vmatpush.msra.mxu0 %v46
    %2918 = vmatpush.msra.mxu0 %v43
    %2919 = vmatpush.msra.mxu0 %v40
    %2920 = vmatmul.f32.gmra.mxu0 %v2882
    %v2921 = vpop.f32.mrf.mxu0
    %v2922 = vadd.f32 %v198, %v2921
    %2923 = vdwg.mxu0
    %2924 = vmatpush.msra.mxu0 0.0
    %2925 = vmatpush.msra.mxu0 0.0
    %2926 = vmatpush.msra.mxu0 0.0
    %2927 = vmatpush.msra.mxu0 0.0
    %2928 = vmatpush.msra.mxu0 0.0
    %2929 = vmatpush.msra.mxu0 0.0
    %2930 = vmatpush.msra.mxu0 0.0
    %2931 = vmatpush.msra.mxu0 0.0
    %2932 = vmatpush.msra.mxu0 0.0
    %2933 = vmatpush.msra.mxu0 0.0
    %2934 = vmatpush.msra.mxu0 0.0
    %2935 = vmatpush.msra.mxu0 0.0
    %2936 = vmatpush.msra.mxu0 %v244
    %2937 = vmatpush.msra.mxu0 %v47
    %2938 = vmatpush.msra.mxu0 %v44
    %2939 = vmatpush.msra.mxu0 %v41
    %2940 = vmatmul.f32.gmra.mxu0 %v2882
    %v2941 = vpop.f32.mrf.mxu0
    %v2942 = vadd.f32 %v199, %v2941
    %2943 = vdwg.mxu0
    %2944 = vmatpush.msra.mxu0 %v96
    %2945 = vmatpush.msra.mxu0 %v93
    %2946 = vmatpush.msra.mxu0 %v90
    %2947 = vmatpush.msra.mxu0 %v87
    %2948 = vmatpush.msra.mxu0 %v84
    %2949 = vmatpush.msra.mxu0 %v81
    %2950 = vmatpush.msra.mxu0 %v78
    %2951 = vmatpush.msra.mxu0 %v75
    %2952 = vmatpush.msra.mxu0 %v72
    %2953 = vmatpush.msra.mxu0 %v69
    %2954 = vmatpush.msra.mxu0 %v66
    %2955 = vmatpush.msra.mxu0 %v63
    %2956 = vmatpush.msra.mxu0 %v60
    %2957 = vmatpush.msra.mxu0 %v57
    %2958 = vmatpush.msra.mxu0 %v54
    %2959 = vmatpush.msra.mxu0 %v51
    %2960 = vmatmul.f32.gmra.mxu0 %v2673
    %v2961 = vpop.f32.mrf.mxu0
    %v2962 = vadd.f32 %v205, %v2961
    %2963 = vdwg.mxu0
    %2964 = vmatpush.msra.mxu0 %v97
    %2965 = vmatpush.msra.mxu0 %v94
    %2966 = vmatpush.msra.mxu0 %v91
    %2967 = vmatpush.msra.mxu0 %v88
    %2968 = vmatpush.msra.mxu0 %v85
    %2969 = vmatpush.msra.mxu0 %v82
    %2970 = vmatpush.msra.mxu0 %v79
    %2971 = vmatpush.msra.mxu0 %v76
    %2972 = vmatpush.msra.mxu0 %v73
    %2973 = vmatpush.msra.mxu0 %v70
    %2974 = vmatpush.msra.mxu0 %v67
    %2975 = vmatpush.msra.mxu0 %v64
    %2976 = vmatpush.msra.mxu0 %v61
    %2977 = vmatpush.msra.mxu0 %v58
    %2978 = vmatpush.msra.mxu0 %v55
    %2979 = vmatpush.msra.mxu0 %v52
    %2980 = vmatmul.f32.gmra.mxu0 %v2673
    %v2981 = vpop.f32.mrf.mxu0
    %v2982 = vadd.f32 %v206, %v2981
    %2983 = vdwg.mxu0
    %2984 = vmatpush.msra.mxu0 %v98
    %2985 = vmatpush.msra.mxu0 %v95
    %2986 = vmatpush.msra.mxu0 %v92
    %2987 = vmatpush.msra.mxu0 %v89
    %2988 = vmatpush.msra.mxu0 %v86
    %2989 = vmatpush.msra.mxu0 %v83
    %2990 = vmatpush.msra.mxu0 %v80
    %2991 = vmatpush.msra.mxu0 %v77
    %2992 = vmatpush.msra.mxu0 %v74
    %2993 = vmatpush.msra.mxu0 %v71
    %2994 = vmatpush.msra.mxu0 %v68
    %2995 = vmatpush.msra.mxu0 %v65
    %2996 = vmatpush.msra.mxu0 %v62
    %2997 = vmatpush.msra.mxu0 %v59
    %2998 = vmatpush.msra.mxu0 %v56
    %2999 = vmatpush.msra.mxu0 %v53
    %3000 = vmatmul.f32.gmra.mxu0 %v2673
    %v3001 = vpop.f32.mrf.mxu0
    %v3002 = vadd.f32 %v207, %v3001
    %3003 = vdwg.mxu0
    %v3004 = vadd.f32 %v2902, %v2962
    %v3005 = vxor.u32 %v3004, 2147483648
    %v3006 = vmul.f32 %v3005, 1.442695
    %v3007 = vpow.pop %v3006
    %v3008 = vadd.f32 %v3007, 1.0
    %v3009 = vrcp.pop %v3008
    %v3010 = vmul.f32 %v3008, %v3009
    %v3011 = vsub.f32 1.0, %v3010
    %v3012 = vmul.f32 %v3009, %v3011
    %v3013 = vadd.f32 %v3009, %v3012
    %vm3014 = vweird.f32 %v3008
    %vm3015 = vweird.f32 %v3009
    %vm3016 = vmor %vm3014, %vm3015
    %v3017 = vsel %vm3016, %v3009, %v3013
    %v3018 = vand.u32 2147483647, %v3008
    %vm3019 = vcmp.eq.f32.partialorder %v3018, 8.507059e+37
    %v3020 = vand.u32 %v3008, 2147483648
    %v3021 = vor.u32 1.1754944e-38, %v3020
    %v3022 = vsel %vm3019, %v3021, %v3017
    %v3023 = vmul.f32 1.0, %v3022
    %v3024 = vadd.f32 %v2922, %v2982
    %v3025 = vxor.u32 %v3024, 2147483648
    %v3026 = vmul.f32 %v3025, 1.442695
    %v3027 = vpow.pop %v3026
    %v3028 = vadd.f32 %v3027, 1.0
    %v3029 = vrcp.pop %v3028
    %v3030 = vmul.f32 %v3028, %v3029
    %v3031 = vsub.f32 1.0, %v3030
    %v3032 = vmul.f32 %v3029, %v3031
    %v3033 = vadd.f32 %v3029, %v3032
    %vm3034 = vweird.f32 %v3028
    %vm3035 = vweird.f32 %v3029
    %vm3036 = vmor %vm3034, %vm3035
    %v3037 = vsel %vm3036, %v3029, %v3033
    %v3038 = vand.u32 2147483647, %v3028
    %vm3039 = vcmp.eq.f32.partialorder %v3038, 8.507059e+37
    %v3040 = vand.u32 %v3028, 2147483648
    %v3041 = vor.u32 1.1754944e-38, %v3040
    %v3042 = vsel %vm3039, %v3041, %v3037
    %v3043 = vmul.f32 1.0, %v3042
    %v3044 = vmul.f32 %v3023, %v3002
    %v3045 = vadd.f32 %v2942, %v3044
    %v3046 = vtanh.pop %v3045
    %v3047 = vsub.f32 1.0, %v3043
    %v3048 = vmul.f32 %v3047, %v3046
    %v3049 = vmul.f32 %v3043, %v2673
    %v3050 = vadd.f32 %v3048, %v3049
    %3051 = vmatpush.msra.mxu0 %v144
    %3052 = vmatpush.msra.mxu0 %v141
    %3053 = vmatpush.msra.mxu0 %v138
    %3054 = vmatpush.msra.mxu0 %v135
    %3055 = vmatpush.msra.mxu0 %v132
    %3056 = vmatpush.msra.mxu0 %v129
    %3057 = vmatpush.msra.mxu0 %v126
    %3058 = vmatpush.msra.mxu0 %v123
    %3059 = vmatpush.msra.mxu0 %v120
    %3060 = vmatpush.msra.mxu0 %v117
    %3061 = vmatpush.msra.mxu0 %v114
    %3062 = vmatpush.msra.mxu0 %v111
    %3063 = vmatpush.msra.mxu0 %v108
    %3064 = vmatpush.msra.mxu0 %v105
    %3065 = vmatpush.msra.mxu0 %v102
    %3066 = vmatpush.msra.mxu0 %v99
    %3067 = vmatmul.f32.gmra.mxu0 %v3050
    %v3068 = vpop.f32.mrf.mxu0
    %v3069 = vadd.f32 %v213, %v3068
    %3070 = vdwg.mxu0
    %3071 = vmatpush.msra.mxu0 %v145
    %3072 = vmatpush.msra.mxu0 %v142
    %3073 = vmatpush.msra.mxu0 %v139
    %3074 = vmatpush.msra.mxu0 %v136
    %3075 = vmatpush.msra.mxu0 %v133
    %3076 = vmatpush.msra.mxu0 %v130
    %3077 = vmatpush.msra.mxu0 %v127
    %3078 = vmatpush.msra.mxu0 %v124
    %3079 = vmatpush.msra.mxu0 %v121
    %3080 = vmatpush.msra.mxu0 %v118
    %3081 = vmatpush.msra.mxu0 %v115
    %3082 = vmatpush.msra.mxu0 %v112
    %3083 = vmatpush.msra.mxu0 %v109
    %3084 = vmatpush.msra.mxu0 %v106
    %3085 = vmatpush.msra.mxu0 %v103
    %3086 = vmatpush.msra.mxu0 %v100
    %3087 = vmatmul.f32.gmra.mxu0 %v3050
    %v3088 = vpop.f32.mrf.mxu0
    %v3089 = vadd.f32 %v214, %v3088
    %3090 = vdwg.mxu0
    %3091 = vmatpush.msra.mxu0 %v146
    %3092 = vmatpush.msra.mxu0 %v143
    %3093 = vmatpush.msra.mxu0 %v140
    %3094 = vmatpush.msra.mxu0 %v137
    %3095 = vmatpush.msra.mxu0 %v134
    %3096 = vmatpush.msra.mxu0 %v131
    %3097 = vmatpush.msra.mxu0 %v128
    %3098 = vmatpush.msra.mxu0 %v125
    %3099 = vmatpush.msra.mxu0 %v122
    %3100 = vmatpush.msra.mxu0 %v119
    %3101 = vmatpush.msra.mxu0 %v116
    %3102 = vmatpush.msra.mxu0 %v113
    %3103 = vmatpush.msra.mxu0 %v110
    %3104 = vmatpush.msra.mxu0 %v107
    %3105 = vmatpush.msra.mxu0 %v104
    %3106 = vmatpush.msra.mxu0 %v101
    %3107 = vmatmul.f32.gmra.mxu0 %v3050
    %v3108 = vpop.f32.mrf.mxu0
    %v3109 = vadd.f32 %v215, %v3108
    %3110 = vdwg.mxu0
    %3111 = vmatpush.msra.mxu0 %v192
    %3112 = vmatpush.msra.mxu0 %v189
    %3113 = vmatpush.msra.mxu0 %v186
    %3114 = vmatpush.msra.mxu0 %v183
    %3115 = vmatpush.msra.mxu0 %v180
    %3116 = vmatpush.msra.mxu0 %v177
    %3117 = vmatpush.msra.mxu0 %v174
    %3118 = vmatpush.msra.mxu0 %v171
    %3119 = vmatpush.msra.mxu0 %v168
    %3120 = vmatpush.msra.mxu0 %v165
    %3121 = vmatpush.msra.mxu0 %v162
    %3122 = vmatpush.msra.mxu0 %v159
    %3123 = vmatpush.msra.mxu0 %v156
    %3124 = vmatpush.msra.mxu0 %v153
    %3125 = vmatpush.msra.mxu0 %v150
    %3126 = vmatpush.msra.mxu0 %v147
    %3127 = vmatmul.f32.gmra.mxu0 %v2840
    %v3128 = vpop.f32.mrf.mxu0
    %v3129 = vadd.f32 %v221, %v3128
    %3130 = vdwg.mxu0
    %3131 = vmatpush.msra.mxu0 %v193
    %3132 = vmatpush.msra.mxu0 %v190
    %3133 = vmatpush.msra.mxu0 %v187
    %3134 = vmatpush.msra.mxu0 %v184
    %3135 = vmatpush.msra.mxu0 %v181
    %3136 = vmatpush.msra.mxu0 %v178
    %3137 = vmatpush.msra.mxu0 %v175
    %3138 = vmatpush.msra.mxu0 %v172
    %3139 = vmatpush.msra.mxu0 %v169
    %3140 = vmatpush.msra.mxu0 %v166
    %3141 = vmatpush.msra.mxu0 %v163
    %3142 = vmatpush.msra.mxu0 %v160
    %3143 = vmatpush.msra.mxu0 %v157
    %3144 = vmatpush.msra.mxu0 %v154
    %3145 = vmatpush.msra.mxu0 %v151
    %3146 = vmatpush.msra.mxu0 %v148
    %3147 = vmatmul.f32.gmra.mxu0 %v2840
    %v3148 = vpop.f32.mrf.mxu0
    %v3149 = vadd.f32 %v222, %v3148
    %3150 = vdwg.mxu0
    %3151 = vmatpush.msra.mxu0 %v194
    %3152 = vmatpush.msra.mxu0 %v191
    %3153 = vmatpush.msra.mxu0 %v188
    %3154 = vmatpush.msra.mxu0 %v185
    %3155 = vmatpush.msra.mxu0 %v182
    %3156 = vmatpush.msra.mxu0 %v179
    %3157 = vmatpush.msra.mxu0 %v176
    %3158 = vmatpush.msra.mxu0 %v173
    %3159 = vmatpush.msra.mxu0 %v170
    %3160 = vmatpush.msra.mxu0 %v167
    %3161 = vmatpush.msra.mxu0 %v164
    %3162 = vmatpush.msra.mxu0 %v161
    %3163 = vmatpush.msra.mxu0 %v158
    %3164 = vmatpush.msra.mxu0 %v155
    %3165 = vmatpush.msra.mxu0 %v152
    %3166 = vmatpush.msra.mxu0 %v149
    %3167 = vmatmul.f32.gmra.mxu0 %v2840
    %v3168 = vpop.f32.mrf.mxu0
    %v3169 = vadd.f32 %v223, %v3168
    %3170 = vdwg.mxu0
    %v3171 = vadd.f32 %v3069, %v3129
    %v3172 = vxor.u32 %v3171, 2147483648
    %v3173 = vmul.f32 %v3172, 1.442695
    %v3174 = vpow.pop %v3173
    %v3175 = vadd.f32 %v3174, 1.0
    %v3176 = vrcp.pop %v3175
    %v3177 = vmul.f32 %v3175, %v3176
    %v3178 = vsub.f32 1.0, %v3177
    %v3179 = vmul.f32 %v3176, %v3178
    %v3180 = vadd.f32 %v3176, %v3179
    %vm3181 = vweird.f32 %v3175
    %vm3182 = vweird.f32 %v3176
    %vm3183 = vmor %vm3181, %vm3182
    %v3184 = vsel %vm3183, %v3176, %v3180
    %v3185 = vand.u32 2147483647, %v3175
    %vm3186 = vcmp.eq.f32.partialorder %v3185, 8.507059e+37
    %v3187 = vand.u32 %v3175, 2147483648
    %v3188 = vor.u32 1.1754944e-38, %v3187
    %v3189 = vsel %vm3186, %v3188, %v3184
    %v3190 = vmul.f32 1.0, %v3189
    %v3191 = vadd.f32 %v3089, %v3149
    %v3192 = vxor.u32 %v3191, 2147483648
    %v3193 = vmul.f32 %v3192, 1.442695
    %v3194 = vpow.pop %v3193
    %v3195 = vadd.f32 %v3194, 1.0
    %v3196 = vrcp.pop %v3195
    %v3197 = vmul.f32 %v3195, %v3196
    %v3198 = vsub.f32 1.0, %v3197
    %v3199 = vmul.f32 %v3196, %v3198
    %v3200 = vadd.f32 %v3196, %v3199
    %vm3201 = vweird.f32 %v3195
    %vm3202 = vweird.f32 %v3196
    %vm3203 = vmor %vm3201, %vm3202
    %v3204 = vsel %vm3203, %v3196, %v3200
    %v3205 = vand.u32 2147483647, %v3195
    %vm3206 = vcmp.eq.f32.partialorder %v3205, 8.507059e+37
    %v3207 = vand.u32 %v3195, 2147483648
    %v3208 = vor.u32 1.1754944e-38, %v3207
    %v3209 = vsel %vm3206, %v3208, %v3204
    %v3210 = vmul.f32 1.0, %v3209
    %v3211 = vmul.f32 %v3190, %v3169
    %v3212 = vadd.f32 %v3109, %v3211
    %v3213 = vtanh.pop %v3212
    %v3214 = vsub.f32 1.0, %v3210
    %v3215 = vmul.f32 %v3214, %v3213
    %v3216 = vmul.f32 %v3210, %v2840
    %v3217 = vadd.f32 %v3215, %v3216
    %s3218 = scalar_lea.vmem %s9, 896
    %v3219 = vld [vmem:[%s3218] sm:$0xff]
    %v3220 = vld [vmem:[%s3218 + $0x8] sm:$0xff]
    %v3221 = vld [vmem:[%s3218 + $0x10] sm:$0xff]
    %v3222 = vld [vmem:[%s3218 + $0x18] sm:$0xff]
    %v3223 = vld [vmem:[%s3218 + $0x20] sm:$0xff]
    %v3224 = vld [vmem:[%s3218 + $0x28] sm:$0xff]
    %v3225 = vld [vmem:[%s3218 + $0x30] sm:$0xff]
    %v3226 = vld [vmem:[%s3218 + $0x38] sm:$0xff]
    %v3227 = vld [vmem:[%s3218 + $0x40] sm:$0xff]
    %v3228 = vld [vmem:[%s3218 + $0x48] sm:$0xff]
    %v3229 = vld [vmem:[%s3218 + $0x50] sm:$0xff]
    %v3230 = vld [vmem:[%s3218 + $0x58] sm:$0xff]
    %v3231 = vld [vmem:[%s3218 + $0x60] sm:$0xff]
    %v3232 = vld [vmem:[%s3218 + $0x68] sm:$0xff]
    %v3233 = vld [vmem:[%s3218 + $0x70] sm:$0xff]
    %v3234 = vld [vmem:[%s3218 + $0x78] sm:$0xff]
    %3235 = vmatpush.msra.mxu0 %v3234
    %3236 = vmatpush.msra.mxu0 %v3233
    %3237 = vmatpush.msra.mxu0 %v3232
    %3238 = vmatpush.msra.mxu0 %v3231
    %3239 = vmatpush.msra.mxu0 %v3230
    %3240 = vmatpush.msra.mxu0 %v3229
    %3241 = vmatpush.msra.mxu0 %v3228
    %3242 = vmatpush.msra.mxu0 %v3227
    %3243 = vmatpush.msra.mxu0 %v3226
    %3244 = vmatpush.msra.mxu0 %v3225
    %3245 = vmatpush.msra.mxu0 %v3224
    %3246 = vmatpush.msra.mxu0 %v3223
    %3247 = vmatpush.msra.mxu0 %v3222
    %3248 = vmatpush.msra.mxu0 %v3221
    %3249 = vmatpush.msra.mxu0 %v3220
    %3250 = vmatpush.msra.mxu0 %v3219
    %3251 = vmatmul.f32.gmra.mxu0 %v3217
    %v3252 = vpop.f32.mrf.mxu0
    %v3253 = vadd.f32 0.0, %v3252
    %3254 = vdwg.mxu0
    %v3255 = vadd.f32 %v2878, %v3253
    %vm3256 = vcmask 80896
    %3257 = vst.msk [vmem:[#allocation2] sm:$0xff] %vm3256, %v3255
    // Predicated region
    $region46: #{gru_model_forward.1} parent=1 // pred_check
      _
    $region47: #{gru_model_forward.1} parent=1 // pred_check_branch
      %3259 = sbr.rel (0) target = $region49
    $region48: #{gru_model_forward.1} parent=1 // pred_region
      %3261 = vsyncadd [#allocation3], 0
      %s3263 = sshll.u32 [#allocation2], 4
      %s3264 = int_to_ptr.vmem [resolvable:$true] %s3263
      %s3265 = sshll.u32 %s11, 4
      %s3266 = int_to_ptr.hbm [resolvable:$true] %s3265
      %3268 = dma.vmem_to_hbm [thread:$0]  %s3264, 128, %s3266, [#allocation3]
    $region49: #{gru_model_forward.1} parent=1 // pred_fallthru
      _
    // Predicated region
    $region50: #{gru_model_forward.1} parent=1 // pred_check
      _
    $region51: #{gru_model_forward.1} parent=1 // pred_check_branch
      %3270 = sbr.rel (0) target = $region53
    $region52: #{gru_model_forward.1} parent=1 // pred_region
      %3272 = dma.done [#allocation3], 128
    $region53: #{gru_model_forward.1} parent=1 // pred_fallthru
      _
    %3273 = vsyncpa [#allocation3], 1

</llo_original>
